<compile_context>
chip_gen: v7x
topology: tpu7x:2x2x1
jax: 0.10.0
libtpu: 0.0.40
codegen_flags: <defaults>
</compile_context>

<pallas_src>
import functools

import jax
import jax.numpy as jnp
from jax import lax
from jax.experimental import pallas as pl
from jax.experimental.pallas import tpu as pltpu


def _round_up(x, m):
    return (x + m - 1) // m * m


# ----------------------------------------------------------------------------
# Host-side helpers: banded conv weights (kh folded into K, BN scale folded in)
# and maxpool selection matrices.
# ----------------------------------------------------------------------------
def _make_banded_weight(w_dhwio, w_in, w_out, scale, k_pad, n_pad):
    """Build B of shape (3, 3*k_pad, n_pad) such that the conv output row for
    (d, h) equals sum_kd LHS[d*H + h + kd*H] @ B[kd], where the LHS lanes are
    laid out as kh*k_pad + (w*Cin + ci) (kh-shifted copies of the input row) and
    the output lanes as wo*Cout + co (zero-padded to n_pad).  The per-output-
    channel BN scale is folded into the weights."""
    kd_, kh_, kw_, cin, cout = w_dhwio.shape
    w_idx = jnp.arange(w_in)[None, :, None]
    wo_idx = jnp.arange(w_out)[None, None, :]
    kw_idx = jnp.arange(kw_)[:, None, None]
    sel = (w_idx == wo_idx + kw_idx).astype(w_dhwio.dtype)        # (kW, w_in, w_out)
    # band[kd, kh, w, ci, wo, co] = W[kd, kh, w-wo, ci, co] * scale[co]  (banded in w)
    band = jnp.einsum("kwv,dhkio->dhwivo", sel, w_dhwio * scale)
    band = band.reshape(kd_, kh_, w_in * cin, w_out * cout)
    band = jnp.pad(band, ((0, 0), (0, 0),
                          (0, k_pad - w_in * cin),
                          (0, n_pad - w_out * cout)))
    return band.reshape(kd_, kh_ * k_pad, n_pad)


def _make_pool_selectors(h_stride, d2, h2, w2, c, n2p, npp):
    """0/1 selection matrices implementing MaxPool3d(2,2) on the packed layout
    (rows = d*h_stride + h, lanes = w*c + channel), lane-padded to n2p/npp."""
    dp, hp, wp = d2 // 2, h2 // 2, w2 // 2
    m2 = (d2 - 1) * h_stride + h2
    # Lane pooling: output lane wp*c + ch picks input lane (2*wp + wi)*c + ch.
    j = jnp.arange(n2p)
    l = jnp.arange(npp)
    live_j = (j < w2 * c)[:, None]
    live_l = (l < wp * c)[None, :]
    sw = jnp.stack([
        (live_j & live_l &
         (j[:, None] // c == 2 * (l[None, :] // c) + wi) &
         (j[:, None] % c == l[None, :] % c)).astype(jnp.float32)
        for wi in range(2)])                                      # (2, n2p, npp)
    # Row pooling: output row dp*hp + hp_ picks input row (2*dp+di)*H + 2*hp_+hi.
    m = jnp.arange(dp * hp)
    r = jnp.arange(m2)
    sr = jnp.stack([
        (r[None, :] ==
         (2 * (m[:, None] // hp) + di) * h_stride + 2 * (m[:, None] % hp) + hi
         ).astype(jnp.float32)
        for di in range(2) for hi in range(2)])                   # (4, dp*hp, m2)
    return sw, sr


# ----------------------------------------------------------------------------
# Fused kernel: conv1 + BN + ReLU -> conv2 + BN + ReLU -> MaxPool3d(2,2).
# ----------------------------------------------------------------------------
def _encoder_kernel(xs_ref, b1_ref, b2_ref, t1_ref, t2_ref, sw_ref, sr_ref,
                    o_ref, y1s_ref, y2_ref, *, h_stride, m1, m2, n1p):
    # ---- conv1: 3 banded matmuls (K = 3*W*Cin), register accumulation;
    #      folded BN shift + ReLU fused into a single store (lane-dense, 128). ----
    acc = jnp.dot(xs_ref[0, 0:m1, :], b1_ref[0],
                  preferred_element_type=jnp.float32)
    for kd in (1, 2):
        acc = acc + jnp.dot(xs_ref[0, kd * h_stride:kd * h_stride + m1, :],
                            b1_ref[kd], preferred_element_type=jnp.float32)
    y1s_ref[0:m1, 0:n1p] = jnp.maximum(acc + t1_ref[...], 0.0)

    # ---- kh-fold of y1 for conv2: 2 sublane-shifted copies into aligned
    #      128-lane column blocks (the only unaligned slices of the kernel). ----
    rows = m2 + 2 * h_stride
    y1s_ref[0:rows, n1p:2 * n1p] = y1s_ref[1:rows + 1, 0:n1p]
    y1s_ref[0:rows, 2 * n1p:3 * n1p] = y1s_ref[2:rows + 2, 0:n1p]

    # ---- conv2: 3 banded matmuls (K = 3*128); kd row offsets are multiples of
    #      h_stride (sublane-aligned views).  Register accumulation again. ----
    acc2 = jnp.dot(y1s_ref[0:m2, :], b2_ref[0],
                   preferred_element_type=jnp.float32)
    for kd in (1, 2):
        acc2 = acc2 + jnp.dot(y1s_ref[kd * h_stride:kd * h_stride + m2, :],
                              b2_ref[kd], preferred_element_type=jnp.float32)
    y2_ref[...] = jnp.maximum(acc2 + t2_ref[...], 0.0)

    # ---- MaxPool3d(2,2): lane (w) pooling then (d,h) row pooling, both as
    #      constant 0/1 selection matmuls + elementwise maxima (vectorized). ----
    y2 = y2_ref[...]
    rw = jnp.maximum(
        jnp.dot(y2, sw_ref[0], preferred_element_type=jnp.float32),
        jnp.dot(y2, sw_ref[1], preferred_element_type=jnp.float32))
    out = jnp.dot(sr_ref[0], rw, preferred_element_type=jnp.float32)
    for i in range(1, 4):
        out = jnp.maximum(
            out, jnp.dot(sr_ref[i], rw, preferred_element_type=jnp.float32))
    o_ref[0] = out.astype(o_ref.dtype)                            # (Dp*Hp, 128)


def encoder_block3d_pallas(x_ncdhw, params):
    """x_ncdhw: (N, Cin, D, H, W) f32.
    params: {"w1","w2"}: DHWIO conv weights (3,3,3,Cin,Cout)/(3,3,3,Cout,Cout);
            {"s1","b1","s2","b2"}: folded (eval-mode) BN scale/shift, shape (Cout,)."""
    n, c0, d, h, w = x_ncdhw.shape
    c1 = params["w1"].shape[-1]
    d1, h1, w1s = d - 2, h - 2, w - 2
    d2, h2, w2s = d1 - 2, h1 - 2, w1s - 2
    dp, hp, wp = d2 // 2, h2 // 2, w2s // 2

    m1 = (d1 - 1) * h + h1            # rows of y1 (flat index d*H + h)
    m2 = (d2 - 1) * h + h2            # rows of y2
    k1 = w * c0                       # per-kh lane width of the input slab
    n1 = w1s * c1
    n1p = _round_up(n1, 128)          # y1 lane width (padded -> unmasked stores)
    n2 = w2s * c1
    n2p = _round_up(n2, 128)          # y2 lane width
    npo = wp * c1
    npp = _round_up(npo, 128)         # pooled output lane width

    # channels-last; rows = d*H + h, lanes = w*Cin + c.  Then host-side kh-fold
    # (pure layout plumbing): lanes become kh*k1 + (w*Cin + c) of the row+kh copy.
    x2 = jnp.transpose(x_ncdhw, (0, 2, 3, 4, 1)).reshape(n, d * h, k1)
    xs = jnp.concatenate(
        [jnp.pad(x2[:, kh:, :], ((0, 0), (0, kh), (0, 0))) for kh in range(3)],
        axis=-1)                                                  # (n, d*h, 3*k1)

    # banded weights with kh folded into K and BN scale folded into the columns
    b1 = _make_banded_weight(params["w1"], w, w1s, params["s1"],
                             k_pad=k1, n_pad=n1p)                 # (3, 3*k1,  n1p)
    b2 = _make_banded_weight(params["w2"], w1s, w2s, params["s2"],
                             k_pad=n1p, n_pad=n2p)                # (3, 3*n1p, n2p)

    # per-lane (w, c)-tiled BN shift (zero-padded to the lane-dense width)
    t1 = jnp.pad(jnp.tile(params["b1"], (w1s,)), (0, n1p - n1)).reshape(1, n1p)
    t2 = jnp.pad(jnp.tile(params["b2"], (w2s,)), (0, n2p - n2)).reshape(1, n2p)

    sw, sr = _make_pool_selectors(h, d2, h2, w2s, c1, n2p, npp)

    kernel = functools.partial(_encoder_kernel, h_stride=h, m1=m1, m2=m2, n1p=n1p)

    out = pl.pallas_call(
        kernel,
        out_shape=jax.ShapeDtypeStruct((n, dp * hp, npp), jnp.float32),
        grid=(n,),
        in_specs=[
            pl.BlockSpec((1, d * h, 3 * k1), lambda i: (i, 0, 0)),
            pl.BlockSpec(b1.shape, lambda i: (0, 0, 0)),
            pl.BlockSpec(b2.shape, lambda i: (0, 0, 0)),
            pl.BlockSpec(t1.shape, lambda i: (0, 0)),
            pl.BlockSpec(t2.shape, lambda i: (0, 0)),
            pl.BlockSpec(sw.shape, lambda i: (0, 0, 0)),
            pl.BlockSpec(sr.shape, lambda i: (0, 0, 0)),
        ],
        out_specs=pl.BlockSpec((1, dp * hp, npp), lambda i: (i, 0, 0)),
        scratch_shapes=[
            pltpu.VMEM((m1, 3 * n1p), jnp.float32),   # y1 (block 0) + kh-shifted copies
            pltpu.VMEM((m2, n2p), jnp.float32),       # y2 activation
        ],
        compiler_params=pltpu.CompilerParams(
            dimension_semantics=("parallel",)),
    )(xs, b1, b2, t1, t2, sw, sr)

    out = out[:, :, :npo].reshape(n, dp, hp, wp, c1)
    return jnp.transpose(out, (0, 4, 1, 2, 3))                    # -> NCDHW


# ----------------------------------------------------------------------------
# Pure-JAX reference and BN folding.
# ----------------------------------------------------------------------------
def encoder_block3d_ref(x_ncdhw, params):
    x = jnp.transpose(x_ncdhw, (0, 2, 3, 4, 1))
    dn = ("NDHWC", "DHWIO", "NDHWC")
    y = lax.conv_general_dilated(x, params["w1"], (1, 1, 1), "VALID",
                                 dimension_numbers=dn)
    y = jnp.maximum(y * params["s1"] + params["b1"], 0.0)
    y = lax.conv_general_dilated(y, params["w2"], (1, 1, 1), "VALID",
                                 dimension_numbers=dn)
    y = jnp.maximum(y * params["s2"] + params["b2"], 0.0)
    y = lax.reduce_window(y, -jnp.inf, lax.max,
                          (1, 2, 2, 2, 1), (1, 2, 2, 2, 1), "VALID")
    return jnp.transpose(y, (0, 4, 1, 2, 3))


def _fold_bn(conv_b, gamma, beta, running_mean, running_var, eps=1e-5):
    scale = gamma / jnp.sqrt(running_var + eps)
    shift = (conv_b - running_mean) * scale + beta
    return scale, shift


if __name__ == "__main__":
    N, C_IN, C_OUT, S = 2, 4, 8, 16   # input: (2, 4, 16, 16, 16) NCDHW

    key = jax.random.PRNGKey(0)
    ks = jax.random.split(key, 13)

    x_ncdhw = jax.random.normal(ks[0], (N, C_IN, S, S, S), jnp.float32)

    # conv1 + bn1 parameters (PyTorch layouts), deterministic init
    w1_t = 0.1 * jax.random.normal(ks[1], (C_OUT, C_IN, 3, 3, 3), jnp.float32)
    b1_t = 0.1 * jax.random.normal(ks[2], (C_OUT,), jnp.float32)
    g1 = 1.0 + 0.1 * jax.random.normal(ks[3], (C_OUT,), jnp.float32)
    be1 = 0.1 * jax.random.normal(ks[4], (C_OUT,), jnp.float32)
    rm1 = 0.1 * jax.random.normal(ks[5], (C_OUT,), jnp.float32)
    rv1 = 1.0 + jnp.abs(0.1 * jax.random.normal(ks[6], (C_OUT,), jnp.float32))

    # conv2 + bn2 parameters
    w2_t = 0.1 * jax.random.normal(ks[7], (C_OUT, C_OUT, 3, 3, 3), jnp.float32)
    b2_t = 0.1 * jax.random.normal(ks[8], (C_OUT,), jnp.float32)
    g2 = 1.0 + 0.1 * jax.random.normal(ks[9], (C_OUT,), jnp.float32)
    be2 = 0.1 * jax.random.normal(ks[10], (C_OUT,), jnp.float32)
    rm2 = 0.1 * jax.random.normal(ks[11], (C_OUT,), jnp.float32)
    rv2 = 1.0 + jnp.abs(0.1 * jax.random.normal(ks[12], (C_OUT,), jnp.float32))

    s1, sb1 = _fold_bn(b1_t, g1, be1, rm1, rv1)
    s2, sb2 = _fold_bn(b2_t, g2, be2, rm2, rv2)

    params = {
        # (Cout, Cin, kD, kH, kW) -> DHWIO (kD, kH, kW, Cin, Cout)
        "w1": jnp.transpose(w1_t, (2, 3, 4, 1, 0)),
        "w2": jnp.transpose(w2_t, (2, 3, 4, 1, 0)),
        "s1": s1, "b1": sb1,
        "s2": s2, "b2": sb2,
    }

    out = encoder_block3d_pallas(x_ncdhw, params)
    out = jax.block_until_ready(out)

    ref = jax.block_until_ready(encoder_block3d_ref(x_ncdhw, params))

    assert out.shape == (N, C_OUT, 6, 6, 6), out.shape
    assert jnp.allclose(out, ref, rtol=2e-4, atol=2e-4), (
        float(jnp.max(jnp.abs(out - ref))))

    print("KERNEL_OK")
</pallas_src>

<mosaic_0001>
module attributes {stable_mosaic.version = 11 : i64} {
  func.func @_encoder_kernel(%arg0: i32, %arg1: memref<1x256x192xf32, #tpu.memory_space<vmem>>, %arg2: memref<3x192x128xf32, #tpu.memory_space<vmem>>, %arg3: memref<3x384x128xf32, #tpu.memory_space<vmem>>, %arg4: memref<1x128xf32, #tpu.memory_space<vmem>>, %arg5: memref<1x128xf32, #tpu.memory_space<vmem>>, %arg6: memref<2x128x128xf32, #tpu.memory_space<vmem>>, %arg7: memref<4x36x188xf32, #tpu.memory_space<vmem>>, %arg8: memref<1x36x128xf32, #tpu.memory_space<vmem>>, %arg9: memref<222x384xf32, #tpu.memory_space<vmem>>, %arg10: memref<188x128xf32, #tpu.memory_space<vmem>>) attributes {dimension_semantics = [#tpu.dimension_semantics<parallel>], iteration_bounds = array<i64: 2>, scalar_prefetch = 0 : i64, scratch_operands = 2 : i64, tpu.core_type = #tpu.core_type<tc>, window_params = [{transform_indices = @transform_0, window_bounds = array<i64: 1, 256, 192>}, {pipeline_mode = #tpu.pipeline_mode<synchronous>, transform_indices = @transform_1, window_bounds = array<i64: 3, 192, 128>}, {pipeline_mode = #tpu.pipeline_mode<synchronous>, transform_indices = @transform_2, window_bounds = array<i64: 3, 384, 128>}, {pipeline_mode = #tpu.pipeline_mode<synchronous>, transform_indices = @transform_3, window_bounds = array<i64: 1, 128>}, {pipeline_mode = #tpu.pipeline_mode<synchronous>, transform_indices = @transform_4, window_bounds = array<i64: 1, 128>}, {pipeline_mode = #tpu.pipeline_mode<synchronous>, transform_indices = @transform_5, window_bounds = array<i64: 2, 128, 128>}, {pipeline_mode = #tpu.pipeline_mode<synchronous>, transform_indices = @transform_6, window_bounds = array<i64: 4, 36, 188>}, {transform_indices = @transform_7, window_bounds = array<i64: 1, 36, 128>}]} {
    %c0 = arith.constant 0 : index
    %c0_0 = arith.constant 0 : index
    %c0_1 = arith.constant 0 : index
    %0 = vector.load %arg1[%c0, %c0_0, %c0_1] : memref<1x256x192xf32, #tpu.memory_space<vmem>>, vector<1x222x192xf32>
    %1 = vector.shape_cast %0 : vector<1x222x192xf32> to vector<222x192xf32>
    %c0_2 = arith.constant 0 : index
    %c0_3 = arith.constant 0 : index
    %c0_4 = arith.constant 0 : index
    %2 = vector.load %arg2[%c0_2, %c0_3, %c0_4] : memref<3x192x128xf32, #tpu.memory_space<vmem>>, vector<1x192x128xf32>
    %3 = vector.shape_cast %2 : vector<1x192x128xf32> to vector<192x128xf32>
    %cst = arith.constant dense<0.000000e+00> : vector<222x128xf32>
    %4 = tpu.matmul %1, %3, %cst {dimension_numbers = #tpu.dot_dimension_numbers<[1], [0], [0], [1], [0, 0, 1, 1], [], []>} : vector<222x192xf32>, vector<192x128xf32>, vector<222x128xf32> -> vector<222x128xf32>
    %c0_5 = arith.constant 0 : index
    %c16 = arith.constant 16 : index
    %c0_6 = arith.constant 0 : index
    %5 = vector.load %arg1[%c0_5, %c16, %c0_6] : memref<1x256x192xf32, #tpu.memory_space<vmem>>, vector<1x222x192xf32>
    %6 = vector.shape_cast %5 : vector<1x222x192xf32> to vector<222x192xf32>
    %c1 = arith.constant 1 : index
    %c0_7 = arith.constant 0 : index
    %c0_8 = arith.constant 0 : index
    %7 = vector.load %arg2[%c1, %c0_7, %c0_8] : memref<3x192x128xf32, #tpu.memory_space<vmem>>, vector<1x192x128xf32>
    %8 = vector.shape_cast %7 : vector<1x192x128xf32> to vector<192x128xf32>
    %cst_9 = arith.constant dense<0.000000e+00> : vector<222x128xf32>
    %9 = tpu.matmul %6, %8, %cst_9 {dimension_numbers = #tpu.dot_dimension_numbers<[1], [0], [0], [1], [0, 0, 1, 1], [], []>} : vector<222x192xf32>, vector<192x128xf32>, vector<222x128xf32> -> vector<222x128xf32>
    %10 = arith.addf %4, %9 : vector<222x128xf32>
    %c0_10 = arith.constant 0 : index
    %c32 = arith.constant 32 : index
    %c0_11 = arith.constant 0 : index
    %11 = vector.load %arg1[%c0_10, %c32, %c0_11] : memref<1x256x192xf32, #tpu.memory_space<vmem>>, vector<1x222x192xf32>
    %12 = vector.shape_cast %11 : vector<1x222x192xf32> to vector<222x192xf32>
    %c2 = arith.constant 2 : index
    %c0_12 = arith.constant 0 : index
    %c0_13 = arith.constant 0 : index
    %13 = vector.load %arg2[%c2, %c0_12, %c0_13] : memref<3x192x128xf32, #tpu.memory_space<vmem>>, vector<1x192x128xf32>
    %14 = vector.shape_cast %13 : vector<1x192x128xf32> to vector<192x128xf32>
    %cst_14 = arith.constant dense<0.000000e+00> : vector<222x128xf32>
    %15 = tpu.matmul %12, %14, %cst_14 {dimension_numbers = #tpu.dot_dimension_numbers<[1], [0], [0], [1], [0, 0, 1, 1], [], []>} : vector<222x192xf32>, vector<192x128xf32>, vector<222x128xf32> -> vector<222x128xf32>
    %16 = arith.addf %10, %15 : vector<222x128xf32>
    %c0_15 = arith.constant 0 : index
    %c0_16 = arith.constant 0 : index
    %17 = vector.load %arg4[%c0_15, %c0_16] : memref<1x128xf32, #tpu.memory_space<vmem>>, vector<1x128xf32>
    %18 = vector.broadcast %17 : vector<1x128xf32> to vector<222x128xf32>
    %19 = arith.addf %16, %18 : vector<222x128xf32>
    %cst_17 = arith.constant 0.000000e+00 : f32
    %20 = vector.broadcast %cst_17 : f32 to vector<222x128xf32>
    %21 = arith.maximumf %19, %20 : vector<222x128xf32>
    %c0_18 = arith.constant 0 : index
    %c0_19 = arith.constant 0 : index
    %22 = vector.load %arg9[%c0_18, %c0_19] : memref<222x384xf32, #tpu.memory_space<vmem>>, vector<222x128xf32>
    tpu.vector_store %arg9[%c0_18, %c0_19], %21 {strides = array<i32>} : memref<222x384xf32, #tpu.memory_space<vmem>>, vector<222x128xf32>,
    %c1_20 = arith.constant 1 : index
    %c0_21 = arith.constant 0 : index
    %23 = vector.load %arg9[%c1_20, %c0_21] : memref<222x384xf32, #tpu.memory_space<vmem>>, vector<220x128xf32>
    %c0_22 = arith.constant 0 : index
    %c128 = arith.constant 128 : index
    %24 = vector.load %arg9[%c0_22, %c128] : memref<222x384xf32, #tpu.memory_space<vmem>>, vector<220x128xf32>
    tpu.vector_store %arg9[%c0_22, %c128], %23 {strides = array<i32>} : memref<222x384xf32, #tpu.memory_space<vmem>>, vector<220x128xf32>,
    %c2_23 = arith.constant 2 : index
    %c0_24 = arith.constant 0 : index
    %25 = vector.load %arg9[%c2_23, %c0_24] : memref<222x384xf32, #tpu.memory_space<vmem>>, vector<220x128xf32>
    %c0_25 = arith.constant 0 : index
    %c256 = arith.constant 256 : index
    %26 = vector.load %arg9[%c0_25, %c256] : memref<222x384xf32, #tpu.memory_space<vmem>>, vector<220x128xf32>
    tpu.vector_store %arg9[%c0_25, %c256], %25 {strides = array<i32>} : memref<222x384xf32, #tpu.memory_space<vmem>>, vector<220x128xf32>,
    %c0_26 = arith.constant 0 : index
    %c0_27 = arith.constant 0 : index
    %27 = vector.load %arg9[%c0_26, %c0_27] : memref<222x384xf32, #tpu.memory_space<vmem>>, vector<188x384xf32>
    %c0_28 = arith.constant 0 : index
    %c0_29 = arith.constant 0 : index
    %c0_30 = arith.constant 0 : index
    %28 = vector.load %arg3[%c0_28, %c0_29, %c0_30] : memref<3x384x128xf32, #tpu.memory_space<vmem>>, vector<1x384x128xf32>
    %29 = vector.shape_cast %28 : vector<1x384x128xf32> to vector<384x128xf32>
    %cst_31 = arith.constant dense<0.000000e+00> : vector<188x128xf32>
    %30 = tpu.matmul %27, %29, %cst_31 {dimension_numbers = #tpu.dot_dimension_numbers<[1], [0], [0], [1], [0, 0, 1, 1], [], []>} : vector<188x384xf32>, vector<384x128xf32>, vector<188x128xf32> -> vector<188x128xf32>
    %c16_32 = arith.constant 16 : index
    %c0_33 = arith.constant 0 : index
    %31 = vector.load %arg9[%c16_32, %c0_33] : memref<222x384xf32, #tpu.memory_space<vmem>>, vector<188x384xf32>
    %c1_34 = arith.constant 1 : index
    %c0_35 = arith.constant 0 : index
    %c0_36 = arith.constant 0 : index
    %32 = vector.load %arg3[%c1_34, %c0_35, %c0_36] : memref<3x384x128xf32, #tpu.memory_space<vmem>>, vector<1x384x128xf32>
    %33 = vector.shape_cast %32 : vector<1x384x128xf32> to vector<384x128xf32>
    %cst_37 = arith.constant dense<0.000000e+00> : vector<188x128xf32>
    %34 = tpu.matmul %31, %33, %cst_37 {dimension_numbers = #tpu.dot_dimension_numbers<[1], [0], [0], [1], [0, 0, 1, 1], [], []>} : vector<188x384xf32>, vector<384x128xf32>, vector<188x128xf32> -> vector<188x128xf32>
    %35 = arith.addf %30, %34 : vector<188x128xf32>
    %c32_38 = arith.constant 32 : index
    %c0_39 = arith.constant 0 : index
    %36 = vector.load %arg9[%c32_38, %c0_39] : memref<222x384xf32, #tpu.memory_space<vmem>>, vector<188x384xf32>
    %c2_40 = arith.constant 2 : index
    %c0_41 = arith.constant 0 : index
    %c0_42 = arith.constant 0 : index
    %37 = vector.load %arg3[%c2_40, %c0_41, %c0_42] : memref<3x384x128xf32, #tpu.memory_space<vmem>>, vector<1x384x128xf32>
    %38 = vector.shape_cast %37 : vector<1x384x128xf32> to vector<384x128xf32>
    %cst_43 = arith.constant dense<0.000000e+00> : vector<188x128xf32>
    %39 = tpu.matmul %36, %38, %cst_43 {dimension_numbers = #tpu.dot_dimension_numbers<[1], [0], [0], [1], [0, 0, 1, 1], [], []>} : vector<188x384xf32>, vector<384x128xf32>, vector<188x128xf32> -> vector<188x128xf32>
    %40 = arith.addf %35, %39 : vector<188x128xf32>
    %c0_44 = arith.constant 0 : index
    %c0_45 = arith.constant 0 : index
    %41 = vector.load %arg5[%c0_44, %c0_45] : memref<1x128xf32, #tpu.memory_space<vmem>>, vector<1x128xf32>
    %42 = vector.broadcast %41 : vector<1x128xf32> to vector<188x128xf32>
    %43 = arith.addf %40, %42 : vector<188x128xf32>
    %cst_46 = arith.constant 0.000000e+00 : f32
    %44 = vector.broadcast %cst_46 : f32 to vector<188x128xf32>
    %45 = arith.maximumf %43, %44 : vector<188x128xf32>
    %c0_47 = arith.constant 0 : index
    %c0_48 = arith.constant 0 : index
    %46 = vector.load %arg10[%c0_47, %c0_48] : memref<188x128xf32, #tpu.memory_space<vmem>>, vector<188x128xf32>
    tpu.vector_store %arg10[%c0_47, %c0_48], %45 {strides = array<i32>} : memref<188x128xf32, #tpu.memory_space<vmem>>, vector<188x128xf32>,
    %c0_49 = arith.constant 0 : index
    %c0_50 = arith.constant 0 : index
    %47 = vector.load %arg10[%c0_49, %c0_50] : memref<188x128xf32, #tpu.memory_space<vmem>>, vector<188x128xf32>
    %c0_51 = arith.constant 0 : index
    %c0_52 = arith.constant 0 : index
    %c0_53 = arith.constant 0 : index
    %48 = vector.load %arg6[%c0_51, %c0_52, %c0_53] : memref<2x128x128xf32, #tpu.memory_space<vmem>>, vector<1x128x128xf32>
    %49 = vector.shape_cast %48 : vector<1x128x128xf32> to vector<128x128xf32>
    %cst_54 = arith.constant dense<0.000000e+00> : vector<188x128xf32>
    %50 = tpu.matmul %47, %49, %cst_54 {dimension_numbers = #tpu.dot_dimension_numbers<[1], [0], [0], [1], [0, 0, 1, 1], [], []>} : vector<188x128xf32>, vector<128x128xf32>, vector<188x128xf32> -> vector<188x128xf32>
    %c1_55 = arith.constant 1 : index
    %c0_56 = arith.constant 0 : index
    %c0_57 = arith.constant 0 : index
    %51 = vector.load %arg6[%c1_55, %c0_56, %c0_57] : memref<2x128x128xf32, #tpu.memory_space<vmem>>, vector<1x128x128xf32>
    %52 = vector.shape_cast %51 : vector<1x128x128xf32> to vector<128x128xf32>
    %cst_58 = arith.constant dense<0.000000e+00> : vector<188x128xf32>
    %53 = tpu.matmul %47, %52, %cst_58 {dimension_numbers = #tpu.dot_dimension_numbers<[1], [0], [0], [1], [0, 0, 1, 1], [], []>} : vector<188x128xf32>, vector<128x128xf32>, vector<188x128xf32> -> vector<188x128xf32>
    %54 = arith.maximumf %50, %53 : vector<188x128xf32>
    %c0_59 = arith.constant 0 : index
    %c0_60 = arith.constant 0 : index
    %c0_61 = arith.constant 0 : index
    %55 = vector.load %arg7[%c0_59, %c0_60, %c0_61] : memref<4x36x188xf32, #tpu.memory_space<vmem>>, vector<1x36x188xf32>
    %56 = vector.shape_cast %55 : vector<1x36x188xf32> to vector<36x188xf32>
    %cst_62 = arith.constant dense<0.000000e+00> : vector<36x128xf32>
    %57 = tpu.matmul %56, %54, %cst_62 {dimension_numbers = #tpu.dot_dimension_numbers<[1], [0], [0], [1], [0, 0, 1, 1], [], []>} : vector<36x188xf32>, vector<188x128xf32>, vector<36x128xf32> -> vector<36x128xf32>
    %c1_63 = arith.constant 1 : index
    %c0_64 = arith.constant 0 : index
    %c0_65 = arith.constant 0 : index
    %58 = vector.load %arg7[%c1_63, %c0_64, %c0_65] : memref<4x36x188xf32, #tpu.memory_space<vmem>>, vector<1x36x188xf32>
    %59 = vector.shape_cast %58 : vector<1x36x188xf32> to vector<36x188xf32>
    %cst_66 = arith.constant dense<0.000000e+00> : vector<36x128xf32>
    %60 = tpu.matmul %59, %54, %cst_66 {dimension_numbers = #tpu.dot_dimension_numbers<[1], [0], [0], [1], [0, 0, 1, 1], [], []>} : vector<36x188xf32>, vector<188x128xf32>, vector<36x128xf32> -> vector<36x128xf32>
    %61 = arith.maximumf %57, %60 : vector<36x128xf32>
    %c2_67 = arith.constant 2 : index
    %c0_68 = arith.constant 0 : index
    %c0_69 = arith.constant 0 : index
    %62 = vector.load %arg7[%c2_67, %c0_68, %c0_69] : memref<4x36x188xf32, #tpu.memory_space<vmem>>, vector<1x36x188xf32>
    %63 = vector.shape_cast %62 : vector<1x36x188xf32> to vector<36x188xf32>
    %cst_70 = arith.constant dense<0.000000e+00> : vector<36x128xf32>
    %64 = tpu.matmul %63, %54, %cst_70 {dimension_numbers = #tpu.dot_dimension_numbers<[1], [0], [0], [1], [0, 0, 1, 1], [], []>} : vector<36x188xf32>, vector<188x128xf32>, vector<36x128xf32> -> vector<36x128xf32>
    %65 = arith.maximumf %61, %64 : vector<36x128xf32>
    %c3 = arith.constant 3 : index
    %c0_71 = arith.constant 0 : index
    %c0_72 = arith.constant 0 : index
    %66 = vector.load %arg7[%c3, %c0_71, %c0_72] : memref<4x36x188xf32, #tpu.memory_space<vmem>>, vector<1x36x188xf32>
    %67 = vector.shape_cast %66 : vector<1x36x188xf32> to vector<36x188xf32>
    %cst_73 = arith.constant dense<0.000000e+00> : vector<36x128xf32>
    %68 = tpu.matmul %67, %54, %cst_73 {dimension_numbers = #tpu.dot_dimension_numbers<[1], [0], [0], [1], [0, 0, 1, 1], [], []>} : vector<36x188xf32>, vector<188x128xf32>, vector<36x128xf32> -> vector<36x128xf32>
    %69 = arith.maximumf %65, %68 : vector<36x128xf32>
    %c0_74 = arith.constant 0 : index
    %c0_75 = arith.constant 0 : index
    %c0_76 = arith.constant 0 : index
    %70 = vector.load %arg8[%c0_74, %c0_75, %c0_76] : memref<1x36x128xf32, #tpu.memory_space<vmem>>, vector<1x36x128xf32>
    %71 = vector.shape_cast %70 : vector<1x36x128xf32> to vector<36x128xf32>
    %72 = vector.shape_cast %69 : vector<36x128xf32> to vector<1x36x128xf32>
    tpu.vector_store %arg8[%c0_74, %c0_75, %c0_76], %72 {strides = array<i32>} : memref<1x36x128xf32, #tpu.memory_space<vmem>>, vector<1x36x128xf32>,
    return
  }
  func.func @transform_0(%arg0: i32) -> (i32, i32, i32) {
    %c0_i32 = arith.constant 0 : i32
    %c0_i32_0 = arith.constant 0 : i32
    %c0_i32_1 = arith.constant 0 : i32
    return %arg0, %c0_i32, %c0_i32_0 : i32, i32, i32
  }
  func.func @transform_1(%arg0: i32) -> (i32, i32, i32) {
    %c0_i32 = arith.constant 0 : i32
    %c0_i32_0 = arith.constant 0 : i32
    %c0_i32_1 = arith.constant 0 : i32
    %c0_i32_2 = arith.constant 0 : i32
    return %c0_i32, %c0_i32_0, %c0_i32_1 : i32, i32, i32
  }
  func.func @transform_2(%arg0: i32) -> (i32, i32, i32) {
    %c0_i32 = arith.constant 0 : i32
    %c0_i32_0 = arith.constant 0 : i32
    %c0_i32_1 = arith.constant 0 : i32
    %c0_i32_2 = arith.constant 0 : i32
    return %c0_i32, %c0_i32_0, %c0_i32_1 : i32, i32, i32
  }
  func.func @transform_3(%arg0: i32) -> (i32, i32) {
    %c0_i32 = arith.constant 0 : i32
    %c0_i32_0 = arith.constant 0 : i32
    %c0_i32_1 = arith.constant 0 : i32
    return %c0_i32, %c0_i32_0 : i32, i32
  }
  func.func @transform_4(%arg0: i32) -> (i32, i32) {
    %c0_i32 = arith.constant 0 : i32
    %c0_i32_0 = arith.constant 0 : i32
    %c0_i32_1 = arith.constant 0 : i32
    return %c0_i32, %c0_i32_0 : i32, i32
  }
  func.func @transform_5(%arg0: i32) -> (i32, i32, i32) {
    %c0_i32 = arith.constant 0 : i32
    %c0_i32_0 = arith.constant 0 : i32
    %c0_i32_1 = arith.constant 0 : i32
    %c0_i32_2 = arith.constant 0 : i32
    return %c0_i32, %c0_i32_0, %c0_i32_1 : i32, i32, i32
  }
  func.func @transform_6(%arg0: i32) -> (i32, i32, i32) {
    %c0_i32 = arith.constant 0 : i32
    %c0_i32_0 = arith.constant 0 : i32
    %c0_i32_1 = arith.constant 0 : i32
    %c0_i32_2 = arith.constant 0 : i32
    return %c0_i32, %c0_i32_0, %c0_i32_1 : i32, i32, i32
  }
  func.func @transform_7(%arg0: i32) -> (i32, i32, i32) {
    %c0_i32 = arith.constant 0 : i32
    %c0_i32_0 = arith.constant 0 : i32
    %c0_i32_1 = arith.constant 0 : i32
    return %arg0, %c0_i32, %c0_i32_0 : i32, i32, i32
  }
}

</mosaic_0001>

<llo_original>
// kernel: tpu_custom_call.1
$region0: #{tpu_custom_call.1}
  #allocation0 [shape = 'u32[]', space=smem, size = 0x4, offset = 0x4, fixed_abs, tag = 'smem constant byte address 0x4 - core index']
  #allocation1 [shape = 'u32[144,128]{1,0:T(1,128)}', space=vmem, size = 0x12000, scoped, tag = 'internal scratch']
  #allocation2 [shape = 'f32[222,384]{1,0:T(8,128)}', space=vmem, size = 0x54000, scoped, tag = 'scratch operand']
  #allocation3 [shape = 'f32[188,128]{1,0:T(8,128)}', space=vmem, size = 0x18000, scoped, tag = 'scratch operand']
  %s0 = inlined_call_operand.vmem [shape: f32[2,256,192], index: 0, kind: input, shape index: {}]
  %s1 = inlined_call_operand.vmem [shape: f32[3,192,128], index: 1, kind: input, shape index: {}]
  %s2 = inlined_call_operand.vmem [shape: f32[3,384,128], index: 2, kind: input, shape index: {}]
  %s3 = inlined_call_operand.vmem [shape: f32[1,128], index: 3, kind: input, shape index: {}]
  %s4 = inlined_call_operand.vmem [shape: f32[1,128], index: 4, kind: input, shape index: {}]
  %s5 = inlined_call_operand.vmem [shape: f32[2,128,128], index: 5, kind: input, shape index: {}]
  %s6 = inlined_call_operand.vmem [shape: f32[4,36,188], index: 6, kind: input, shape index: {}]
  %s7 = inlined_call_operand.vmem [shape: f32[2,36,128], index: 7, kind: output, shape index: {}]
  %s8 = sld [smem:[#allocation0]]
  $region61: #{tpu_custom_call.1} parent=0
    _
  %s10 = ssub.s32 1, %s8
  %s11 = scalar_select 0, %s10, %s8
  loop: start=0, step=1, limit=4
  $region2: #{tpu_custom_call.1} parent=0 // loop_pre_header
    _
  $region3: #{tpu_custom_call.1} parent=0 // loop_header
    %s13 = sphi 0, %s17
    %p14 = scmp.ge.s32.totalorder %s13, 4
    %s23 = sphi 0, %s25
    %s26 = sphi 0, %s23
    %s27 = sphi 0, %s26
    %s43 = sphi 0, %s27
    %s47 = sphi 0, %s47
    %s49 = sphi 0, %s47
    %s50 = sphi 0, %s49
    %s64 = sphi 0, %s50
    %s68 = sphi 0, %s68
    %s70 = sphi 0, %s68
    %s71 = sphi 0, %s70
    %s85 = sphi 0, %s71
    %s89 = sphi 0, %s89
    %s91 = sphi 0, %s89
    %s92 = sphi 0, %s91
    %s106 = sphi 0, %s92
    %s110 = sphi 0, %s110
    %s112 = sphi 0, %s110
    %s113 = sphi 0, %s112
    %s127 = sphi 0, %s113
    %s131 = sphi 0, %s131
    %s133 = sphi 0, %s131
    %s134 = sphi 0, %s133
    %s148 = sphi 0, %s134
    %s152 = sphi 0, %s152
    %s154 = sphi 0, %s152
    %s155 = sphi 0, %s154
    %s169 = sphi 0, %s155
    %s175 = sphi 0, %s177
    %s178 = sphi 0, %s175
    %s179 = sphi 0, %s178
    %s195 = sphi 0, %s179
  $region4: #{tpu_custom_call.1} parent=0 // loop_header_branch
    %16 = sbr.rel (%p14) target = $region8
  $region5: #{tpu_custom_call.1} parent=0 // loop_body
    %s18 = ssub.s32 %s13, 1
    %s19 = ssub.s32 %s13, 2
    %s20 = sadd.s32 %s13, 1
    %s21 = ssub.s32 %s13, %s20
    %p22 = scmp.eq.s32.totalorder %s21, 0
    %s24 = sadd.s32 %s23, 1
    %s25 = scalar_select %p22, %s23, %s24
    %p28 = pneg %p22
    %p29 = scmp.eq.s32.totalorder %s13, 1
    %p30 = por %p28, %p29
    %p31 = scmp.ne.s32.totalorder %s23, %s26
    %p32 = scmp.eq.s32.totalorder %s13, 0
    %p33 = por %p31, %p32
    %p34 = scmp.ne.s32.totalorder %s23, %s26
    %p35 = scmp.eq.s32.totalorder %s18, 1
    %p36 = por %p34, %p35
    %p37 = scmp.ne.s32.totalorder %s26, %s27
    %p38 = scmp.eq.s32.totalorder %s18, 0
    %p39 = por %p37, %p38
    %p40 = scmp.ne.s32.totalorder %s26, %s27
    %p41 = scmp.eq.s32.totalorder %s19, 1
    %p42 = por %p40, %p41
    %p44 = scmp.ne.s32.totalorder %s27, %s43
    %p45 = scmp.eq.s32.totalorder %s19, 0
    %p46 = por %p44, %p45
    %s48 = sadd.s32 %s47, 1
    %p51 = scmp.eq.s32.totalorder %s13, 1
    %p52 = scmp.ne.s32.totalorder %s47, %s49
    %p53 = scmp.eq.s32.totalorder %s13, 0
    %p54 = por %p52, %p53
    %p55 = scmp.ne.s32.totalorder %s47, %s49
    %p56 = scmp.eq.s32.totalorder %s18, 1
    %p57 = por %p55, %p56
    %p58 = scmp.ne.s32.totalorder %s49, %s50
    %p59 = scmp.eq.s32.totalorder %s18, 0
    %p60 = por %p58, %p59
    %p61 = scmp.ne.s32.totalorder %s49, %s50
    %p62 = scmp.eq.s32.totalorder %s19, 1
    %p63 = por %p61, %p62
    %p65 = scmp.ne.s32.totalorder %s50, %s64
    %p66 = scmp.eq.s32.totalorder %s19, 0
    %p67 = por %p65, %p66
    %s69 = sadd.s32 %s68, 1
    %p72 = scmp.eq.s32.totalorder %s13, 1
    %p73 = scmp.ne.s32.totalorder %s68, %s70
    %p74 = scmp.eq.s32.totalorder %s13, 0
    %p75 = por %p73, %p74
    %p76 = scmp.ne.s32.totalorder %s68, %s70
    %p77 = scmp.eq.s32.totalorder %s18, 1
    %p78 = por %p76, %p77
    %p79 = scmp.ne.s32.totalorder %s70, %s71
    %p80 = scmp.eq.s32.totalorder %s18, 0
    %p81 = por %p79, %p80
    %p82 = scmp.ne.s32.totalorder %s70, %s71
    %p83 = scmp.eq.s32.totalorder %s19, 1
    %p84 = por %p82, %p83
    %p86 = scmp.ne.s32.totalorder %s71, %s85
    %p87 = scmp.eq.s32.totalorder %s19, 0
    %p88 = por %p86, %p87
    %s90 = sadd.s32 %s89, 1
    %p93 = scmp.eq.s32.totalorder %s13, 1
    %p94 = scmp.ne.s32.totalorder %s89, %s91
    %p95 = scmp.eq.s32.totalorder %s13, 0
    %p96 = por %p94, %p95
    %p97 = scmp.ne.s32.totalorder %s89, %s91
    %p98 = scmp.eq.s32.totalorder %s18, 1
    %p99 = por %p97, %p98
    %p100 = scmp.ne.s32.totalorder %s91, %s92
    %p101 = scmp.eq.s32.totalorder %s18, 0
    %p102 = por %p100, %p101
    %p103 = scmp.ne.s32.totalorder %s91, %s92
    %p104 = scmp.eq.s32.totalorder %s19, 1
    %p105 = por %p103, %p104
    %p107 = scmp.ne.s32.totalorder %s92, %s106
    %p108 = scmp.eq.s32.totalorder %s19, 0
    %p109 = por %p107, %p108
    %s111 = sadd.s32 %s110, 1
    %p114 = scmp.eq.s32.totalorder %s13, 1
    %p115 = scmp.ne.s32.totalorder %s110, %s112
    %p116 = scmp.eq.s32.totalorder %s13, 0
    %p117 = por %p115, %p116
    %p118 = scmp.ne.s32.totalorder %s110, %s112
    %p119 = scmp.eq.s32.totalorder %s18, 1
    %p120 = por %p118, %p119
    %p121 = scmp.ne.s32.totalorder %s112, %s113
    %p122 = scmp.eq.s32.totalorder %s18, 0
    %p123 = por %p121, %p122
    %p124 = scmp.ne.s32.totalorder %s112, %s113
    %p125 = scmp.eq.s32.totalorder %s19, 1
    %p126 = por %p124, %p125
    %p128 = scmp.ne.s32.totalorder %s113, %s127
    %p129 = scmp.eq.s32.totalorder %s19, 0
    %p130 = por %p128, %p129
    %s132 = sadd.s32 %s131, 1
    %p135 = scmp.eq.s32.totalorder %s13, 1
    %p136 = scmp.ne.s32.totalorder %s131, %s133
    %p137 = scmp.eq.s32.totalorder %s13, 0
    %p138 = por %p136, %p137
    %p139 = scmp.ne.s32.totalorder %s131, %s133
    %p140 = scmp.eq.s32.totalorder %s18, 1
    %p141 = por %p139, %p140
    %p142 = scmp.ne.s32.totalorder %s133, %s134
    %p143 = scmp.eq.s32.totalorder %s18, 0
    %p144 = por %p142, %p143
    %p145 = scmp.ne.s32.totalorder %s133, %s134
    %p146 = scmp.eq.s32.totalorder %s19, 1
    %p147 = por %p145, %p146
    %p149 = scmp.ne.s32.totalorder %s134, %s148
    %p150 = scmp.eq.s32.totalorder %s19, 0
    %p151 = por %p149, %p150
    %s153 = sadd.s32 %s152, 1
    %p156 = scmp.eq.s32.totalorder %s13, 1
    %p157 = scmp.ne.s32.totalorder %s152, %s154
    %p158 = scmp.eq.s32.totalorder %s13, 0
    %p159 = por %p157, %p158
    %p160 = scmp.ne.s32.totalorder %s152, %s154
    %p161 = scmp.eq.s32.totalorder %s18, 1
    %p162 = por %p160, %p161
    %p163 = scmp.ne.s32.totalorder %s154, %s155
    %p164 = scmp.eq.s32.totalorder %s18, 0
    %p165 = por %p163, %p164
    %p166 = scmp.ne.s32.totalorder %s154, %s155
    %p167 = scmp.eq.s32.totalorder %s19, 1
    %p168 = por %p166, %p167
    %p170 = scmp.ne.s32.totalorder %s155, %s169
    %p171 = scmp.eq.s32.totalorder %s19, 0
    %p172 = por %p170, %p171
    %s173 = ssub.s32 %s13, %s20
    %p174 = scmp.eq.s32.totalorder %s173, 0
    %s176 = sadd.s32 %s175, 1
    %s177 = scalar_select %p174, %s175, %s176
    %p180 = pneg %p174
    %p181 = scmp.eq.s32.totalorder %s13, 1
    %p182 = por %p180, %p181
    %p183 = scmp.ne.s32.totalorder %s175, %s178
    %p184 = scmp.eq.s32.totalorder %s13, 0
    %p185 = por %p183, %p184
    %p186 = scmp.ne.s32.totalorder %s175, %s178
    %p187 = scmp.eq.s32.totalorder %s18, 1
    %p188 = por %p186, %p187
    %p189 = scmp.ne.s32.totalorder %s178, %s179
    %p190 = scmp.eq.s32.totalorder %s18, 0
    %p191 = por %p189, %p190
    %p192 = scmp.ne.s32.totalorder %s178, %s179
    %p193 = scmp.eq.s32.totalorder %s19, 1
    %p194 = por %p192, %p193
    %p196 = scmp.ne.s32.totalorder %s179, %s195
    %p197 = scmp.eq.s32.totalorder %s19, 0
    %p198 = por %p196, %p197
    %p199 = scmp.le.s32.totalorder 1, %s13
    %p200 = scmp.lt.s32.totalorder %s13, 3
    %p201 = pnand %p199, %p200
    %p202 = pneg %p201
    // Predicated region
    $region9: #{tpu_custom_call.1} parent=5 // pred_check
      _
    $region10: #{tpu_custom_call.1} parent=5 // pred_check_branch
      %204 = sbr.rel (%p201) target = $region12
    $region11: #{tpu_custom_call.1} parent=5 // pred_region
      %s205 = ssub.s32 %s13, 1
      // Predicated region
      $region13: #{tpu_custom_call.1} parent=11 // pred_check
        %p206 = pneg %p60
      $region14: #{tpu_custom_call.1} parent=11 // pred_check_branch
        %208 = sbr.rel (%p206) target = $region16
      $region15: #{tpu_custom_call.1} parent=11 // pred_region
        _
      $region16: #{tpu_custom_call.1} parent=11 // pred_fallthru
        _
      // Predicated region
      $region17: #{tpu_custom_call.1} parent=11 // pred_check
        %p209 = pneg %p81
      $region18: #{tpu_custom_call.1} parent=11 // pred_check_branch
        %211 = sbr.rel (%p209) target = $region20
      $region19: #{tpu_custom_call.1} parent=11 // pred_region
        _
      $region20: #{tpu_custom_call.1} parent=11 // pred_fallthru
        _
      // Predicated region
      $region21: #{tpu_custom_call.1} parent=11 // pred_check
        %p212 = pneg %p102
      $region22: #{tpu_custom_call.1} parent=11 // pred_check_branch
        %214 = sbr.rel (%p212) target = $region24
      $region23: #{tpu_custom_call.1} parent=11 // pred_region
        _
      $region24: #{tpu_custom_call.1} parent=11 // pred_fallthru
        _
      // Predicated region
      $region25: #{tpu_custom_call.1} parent=11 // pred_check
        %p215 = pneg %p123
      $region26: #{tpu_custom_call.1} parent=11 // pred_check_branch
        %217 = sbr.rel (%p215) target = $region28
      $region27: #{tpu_custom_call.1} parent=11 // pred_region
        _
      $region28: #{tpu_custom_call.1} parent=11 // pred_fallthru
        _
      // Predicated region
      $region29: #{tpu_custom_call.1} parent=11 // pred_check
        %p218 = pneg %p144
      $region30: #{tpu_custom_call.1} parent=11 // pred_check_branch
        %220 = sbr.rel (%p218) target = $region32
      $region31: #{tpu_custom_call.1} parent=11 // pred_region
        _
      $region32: #{tpu_custom_call.1} parent=11 // pred_fallthru
        _
      // Predicated region
      $region33: #{tpu_custom_call.1} parent=11 // pred_check
        %p221 = pneg %p165
      $region34: #{tpu_custom_call.1} parent=11 // pred_check_branch
        %223 = sbr.rel (%p221) target = $region36
      $region35: #{tpu_custom_call.1} parent=11 // pred_region
        _
      $region36: #{tpu_custom_call.1} parent=11 // pred_fallthru
        _
    $region12: #{tpu_custom_call.1} parent=5 // pred_fallthru
      _
    %p224 = scmp.lt.s32.totalorder %s13, 2
    // Predicated region
    $region37: #{tpu_custom_call.1} parent=5 // pred_check
      %p225 = pneg %p224
    $region38: #{tpu_custom_call.1} parent=5 // pred_check_branch
      %227 = sbr.rel (%p225) target = $region40
    $region39: #{tpu_custom_call.1} parent=5 // pred_region
      // Predicated region
      $region41: #{tpu_custom_call.1} parent=39 // pred_check
        %p228 = pneg %p33
      $region42: #{tpu_custom_call.1} parent=39 // pred_check_branch
        %230 = sbr.rel (%p228) target = $region44
      $region43: #{tpu_custom_call.1} parent=39 // pred_region
        %p231 = scmp.lt.s32.totalorder %s13, 1
        %s232 = scalar_select %p231, %s13, 1
        %s233 = smul.addr %s232, 64
        %s234 = smul.addr %s233, 8
        %s235 = scalar_lea.vmem %s0, %s234
      $region44: #{tpu_custom_call.1} parent=39 // pred_fallthru
        _
    $region40: #{tpu_custom_call.1} parent=5 // pred_fallthru
      _
    %p236 = scmp.le.s32.totalorder 1, %s13
    %p237 = scmp.lt.s32.totalorder %s13, 3
    %p238 = pnand %p236, %p237
    %p239 = pneg %p238
    // Predicated region
    $region45: #{tpu_custom_call.1} parent=5 // pred_check
      _
    $region46: #{tpu_custom_call.1} parent=5 // pred_check_branch
      %241 = sbr.rel (%p238) target = $region48
    $region47: #{tpu_custom_call.1} parent=5 // pred_region
      %s242 = ssub.s32 %s13, 1
      %p243 = scmp.lt.s32.totalorder %s18, 1
      %s244 = scalar_select %p243, %s18, 1
      %s245 = smul.addr %s244, 64
      %s246 = smul.addr %s245, 8
      %s247 = scalar_lea.vmem %s0, %s246
      %p248 = pneg %p39
      %p249 = pneg %p36
      %p250 = pneg %p60
      %p251 = pneg %p57
      %p252 = pneg %p81
      %p253 = pneg %p78
      %p254 = pneg %p102
      %p255 = pneg %p99
      %p256 = pneg %p123
      %p257 = pneg %p120
      %p258 = pneg %p144
      %p259 = pneg %p141
      %p260 = pneg %p165
      %p261 = pneg %p162
      %p262 = pneg %p191
      %p263 = pneg %p188
      %p264 = scmp.lt.s32.totalorder %s18, 1
      %s265 = scalar_select %p264, %s18, 1
      %s266 = smul.addr %s265, 5
      %s267 = smul.addr %s266, 8
      %s268 = scalar_lea.vmem %s7, %s267
      %p269 = scmp.lt.s32.totalorder %s18, 1
      %s270 = scalar_select %p269, %s18, 1
      %s271 = smul.addr %s270, 64
      %s272 = smul.addr %s271, 8
      %s273 = scalar_lea.vmem %s0, %s272
      %p274 = scmp.lt.s32.totalorder %s18, 1
      %s275 = scalar_select %p274, %s18, 1
      %s276 = smul.addr %s275, 5
      %s277 = smul.addr %s276, 8
      %s278 = scalar_lea.vmem %s7, %s277
      %v279 = vld [vmem:[%s273] sm:$0xff]
      %v280 = vld [vmem:[%s273 + $0x8] sm:$0xff]
      %v281 = vld [vmem:[%s273 + $0x10] sm:$0xff]
      %v282 = vld [vmem:[%s273 + $0x18] sm:$0xff]
      %v283 = vld [vmem:[%s273 + $0x20] sm:$0xff]
      %v284 = vld [vmem:[%s273 + $0x28] sm:$0xff]
      %v285 = vld [vmem:[%s273 + $0x30] sm:$0xff]
      %v286 = vld [vmem:[%s273 + $0x38] sm:$0xff]
      %v287 = vld [vmem:[%s273 + $0x40] sm:$0xff]
      %v288 = vld [vmem:[%s273 + $0x48] sm:$0xff]
      %v289 = vld [vmem:[%s273 + $0x50] sm:$0xff]
      %v290 = vld [vmem:[%s273 + $0x58] sm:$0xff]
      %v291 = vld [vmem:[%s273 + $0x60] sm:$0xff]
      %v292 = vld [vmem:[%s273 + $0x68] sm:$0xff]
      %v293 = vld [vmem:[%s273 + $0x70] sm:$0xff]
      %v294 = vld [vmem:[%s273 + $0x78] sm:$0xff]
      %v295 = vld [vmem:[%s273 + $0x80] sm:$0xff]
      %v296 = vld [vmem:[%s273 + $0x88] sm:$0xff]
      %v297 = vld [vmem:[%s273 + $0x90] sm:$0xff]
      %v298 = vld [vmem:[%s273 + $0x98] sm:$0xff]
      %v299 = vld [vmem:[%s273 + $0xa0] sm:$0xff]
      %v300 = vld [vmem:[%s273 + $0xa8] sm:$0xff]
      %v301 = vld [vmem:[%s273 + $0xb0] sm:$0xff]
      %v302 = vld [vmem:[%s273 + $0xb8] sm:$0xff]
      %v303 = vld [vmem:[%s273 + $0xc0] sm:$0xff]
      %v304 = vld [vmem:[%s273 + $0xc8] sm:$0xff]
      %v305 = vld [vmem:[%s273 + $0xd0] sm:$0xff]
      %v306 = vld [vmem:[%s273 + $0xd8] sm:$0xff]
      %v307 = vld [vmem:[%s273 + $0xe0] sm:$0xff]
      %v308 = vld [vmem:[%s273 + $0xe8] sm:$0xff]
      %v309 = vld [vmem:[%s273 + $0xf0] sm:$0xff]
      %v310 = vld [vmem:[%s273 + $0xf8] sm:$0xff]
      %v311 = vld [vmem:[%s273 + $0x100] sm:$0xff]
      %v312 = vld [vmem:[%s273 + $0x108] sm:$0xff]
      %v313 = vld [vmem:[%s273 + $0x110] sm:$0xff]
      %v314 = vld [vmem:[%s273 + $0x118] sm:$0xff]
      %v315 = vld [vmem:[%s273 + $0x120] sm:$0xff]
      %v316 = vld [vmem:[%s273 + $0x128] sm:$0xff]
      %v317 = vld [vmem:[%s273 + $0x130] sm:$0xff]
      %v318 = vld [vmem:[%s273 + $0x138] sm:$0xff]
      %v319 = vld [vmem:[%s273 + $0x140] sm:$0xff]
      %v320 = vld [vmem:[%s273 + $0x148] sm:$0xff]
      %v321 = vld [vmem:[%s273 + $0x150] sm:$0xff]
      %v322 = vld [vmem:[%s273 + $0x158] sm:$0xff]
      %v323 = vld [vmem:[%s273 + $0x160] sm:$0xff]
      %v324 = vld [vmem:[%s273 + $0x168] sm:$0xff]
      %v325 = vld [vmem:[%s273 + $0x170] sm:$0xff]
      %v326 = vld [vmem:[%s273 + $0x178] sm:$0xff]
      %v327 = vld [vmem:[%s273 + $0x180] sm:$0xff]
      %v328 = vld [vmem:[%s273 + $0x188] sm:$0xff]
      %v329 = vld [vmem:[%s273 + $0x190] sm:$0xff]
      %v330 = vld [vmem:[%s273 + $0x198] sm:$0xff]
      %v331 = vld [vmem:[%s273 + $0x1a0] sm:$0xff]
      %v332 = vld [vmem:[%s273 + $0x1a8] sm:$0xff]
      %v333 = vld [vmem:[%s273 + $0x1b0] sm:$0x3f]
      %v334 = vld [vmem:[%s273 + $0x1b8] sm:$0x3f]
      %v335 = vld [vmem:[%s1] sm:$0xff]
      %v336 = vld [vmem:[%s1 + $0x8] sm:$0xff]
      %v337 = vld [vmem:[%s1 + $0x10] sm:$0xff]
      %v338 = vld [vmem:[%s1 + $0x18] sm:$0xff]
      %v339 = vld [vmem:[%s1 + $0x20] sm:$0xff]
      %v340 = vld [vmem:[%s1 + $0x28] sm:$0xff]
      %v341 = vld [vmem:[%s1 + $0x30] sm:$0xff]
      %v342 = vld [vmem:[%s1 + $0x38] sm:$0xff]
      %v343 = vld [vmem:[%s1 + $0x40] sm:$0xff]
      %v344 = vld [vmem:[%s1 + $0x48] sm:$0xff]
      %v345 = vld [vmem:[%s1 + $0x50] sm:$0xff]
      %v346 = vld [vmem:[%s1 + $0x58] sm:$0xff]
      %v347 = vld [vmem:[%s1 + $0x60] sm:$0xff]
      %v348 = vld [vmem:[%s1 + $0x68] sm:$0xff]
      %v349 = vld [vmem:[%s1 + $0x70] sm:$0xff]
      %v350 = vld [vmem:[%s1 + $0x78] sm:$0xff]
      %v351 = vld [vmem:[%s1 + $0x80] sm:$0xff]
      %v352 = vld [vmem:[%s1 + $0x88] sm:$0xff]
      %v353 = vld [vmem:[%s1 + $0x90] sm:$0xff]
      %v354 = vld [vmem:[%s1 + $0x98] sm:$0xff]
      %v355 = vld [vmem:[%s1 + $0xa0] sm:$0xff]
      %v356 = vld [vmem:[%s1 + $0xa8] sm:$0xff]
      %v357 = vld [vmem:[%s1 + $0xb0] sm:$0xff]
      %v358 = vld [vmem:[%s1 + $0xb8] sm:$0xff]
      %v359 = vld [vmem:[%s273 + $0x1b0] sm:$0xff]
      %v360 = vld [vmem:[%s273 + $0x1b8] sm:$0xff]
      %v361 = vld [vmem:[%s273 + $0x1c0] sm:$0xff]
      %v362 = vld [vmem:[%s273 + $0x1c8] sm:$0xff]
      %v363 = vld [vmem:[%s273 + $0x1d0] sm:$0x3f]
      %v364 = vld [vmem:[%s273 + $0x1d8] sm:$0x3f]
      %s365 = scalar_lea.vmem %s1, 192
      %v366 = vld [vmem:[%s365] sm:$0xff]
      %v367 = vld [vmem:[%s365 + $0x8] sm:$0xff]
      %v368 = vld [vmem:[%s365 + $0x10] sm:$0xff]
      %v369 = vld [vmem:[%s365 + $0x18] sm:$0xff]
      %v370 = vld [vmem:[%s365 + $0x20] sm:$0xff]
      %v371 = vld [vmem:[%s365 + $0x28] sm:$0xff]
      %v372 = vld [vmem:[%s365 + $0x30] sm:$0xff]
      %v373 = vld [vmem:[%s365 + $0x38] sm:$0xff]
      %v374 = vld [vmem:[%s365 + $0x40] sm:$0xff]
      %v375 = vld [vmem:[%s365 + $0x48] sm:$0xff]
      %v376 = vld [vmem:[%s365 + $0x50] sm:$0xff]
      %v377 = vld [vmem:[%s365 + $0x58] sm:$0xff]
      %v378 = vld [vmem:[%s365 + $0x60] sm:$0xff]
      %v379 = vld [vmem:[%s365 + $0x68] sm:$0xff]
      %v380 = vld [vmem:[%s365 + $0x70] sm:$0xff]
      %v381 = vld [vmem:[%s365 + $0x78] sm:$0xff]
      %v382 = vld [vmem:[%s365 + $0x80] sm:$0xff]
      %v383 = vld [vmem:[%s365 + $0x88] sm:$0xff]
      %v384 = vld [vmem:[%s365 + $0x90] sm:$0xff]
      %v385 = vld [vmem:[%s365 + $0x98] sm:$0xff]
      %v386 = vld [vmem:[%s365 + $0xa0] sm:$0xff]
      %v387 = vld [vmem:[%s365 + $0xa8] sm:$0xff]
      %v388 = vld [vmem:[%s365 + $0xb0] sm:$0xff]
      %v389 = vld [vmem:[%s365 + $0xb8] sm:$0xff]
      %vm390 = vcmask 523264
      %v392 = vsel %vm390, %v284, 0
      %v395 = vsel %vm390, %v286, 0
      %v398 = vsel %vm390, %v288, 0
      %v401 = vsel %vm390, %v290, 0
      %v404 = vsel %vm390, %v292, 0
      %v407 = vsel %vm390, %v294, 0
      %v410 = vsel %vm390, %v296, 0
      %v413 = vsel %vm390, %v298, 0
      %v416 = vsel %vm390, %v300, 0
      %v419 = vsel %vm390, %v302, 0
      %v422 = vsel %vm390, %v304, 0
      %v425 = vsel %vm390, %v306, 0
      %v428 = vsel %vm390, %v308, 0
      %v431 = vsel %vm390, %v310, 0
      %v434 = vsel %vm390, %v312, 0
      %v437 = vsel %vm390, %v314, 0
      %v440 = vsel %vm390, %v316, 0
      %v443 = vsel %vm390, %v318, 0
      %v446 = vsel %vm390, %v320, 0
      %v449 = vsel %vm390, %v322, 0
      %v452 = vsel %vm390, %v324, 0
      %v455 = vsel %vm390, %v326, 0
      %v458 = vsel %vm390, %v328, 0
      %v461 = vsel %vm390, %v330, 0
      %v464 = vsel %vm390, %v332, 0
      %v467 = vsel %vm390, %v360, 0
      %v470 = vsel %vm390, %v362, 0
      %v473 = vsel %vm390, %v364, 0
      %475 = vmatprep.subr.mxu0 0.0
      %476 = vmatpush1.msra.mxu0 %v366
      %477 = vmatprep.subr.mxu0 0.0
      %478 = vmatpush1.msra.mxu0 %v367
      %479 = vmatprep.subr.mxu0 0.0
      %480 = vmatpush1.msra.mxu0 %v368
      %481 = vmatprep.subr.mxu0 0.0
      %482 = vmatpush1.msra.mxu0 %v369
      %483 = vmatprep.subr.mxu0 0.0
      %484 = vmatpush1.msra.mxu0 %v370
      %485 = vmatprep.subr.mxu0 0.0
      %486 = vmatpush1.msra.mxu0 %v371
      %487 = vmatprep.subr.mxu0 0.0
      %488 = vmatpush1.msra.mxu0 %v372
      %489 = vmatprep.subr.mxu0 0.0
      %490 = vmatpush1.msra.mxu0 %v373
      %491 = vmatprep.subr.mxu0 0.0
      %492 = vmatpush1.msra.mxu0 %v374
      %493 = vmatprep.subr.mxu0 0.0
      %494 = vmatpush1.msra.mxu0 %v375
      %495 = vmatprep.subr.mxu0 0.0
      %496 = vmatpush1.msra.mxu0 %v376
      %497 = vmatprep.subr.mxu0 0.0
      %498 = vmatpush1.msra.mxu0 %v377
      %499 = vmatprep.subr.mxu0 0.0
      %500 = vmatpush1.msra.mxu0 %v378
      %501 = vmatprep.subr.mxu0 0.0
      %502 = vmatpush1.msra.mxu0 %v379
      %503 = vmatprep.subr.mxu0 0.0
      %504 = vmatpush1.msra.mxu0 %v380
      %505 = vmatprep.subr.mxu0 0.0
      %506 = vmatpush1.msra.mxu0 %v381
      %507 = vmatprep.subr.mxu0 0.0
      %508 = vmatpush1.msra.mxu0 %v382
      %509 = vmatprep.subr.mxu0 0.0
      %510 = vmatpush1.msra.mxu0 %v383
      %511 = vmatprep.subr.mxu0 0.0
      %512 = vmatpush1.msra.mxu0 %v384
      %513 = vmatprep.subr.mxu0 0.0
      %514 = vmatpush1.msra.mxu0 %v385
      %515 = vmatprep.subr.mxu0 0.0
      %516 = vmatpush1.msra.mxu0 %v386
      %517 = vmatprep.subr.mxu0 0.0
      %518 = vmatpush1.msra.mxu0 %v387
      %519 = vmatprep.subr.mxu0 0.0
      %520 = vmatpush1.msra.mxu0 %v388
      %521 = vmatprep.subr.mxu0 0.0
      %522 = vmatpush1.msra.mxu0 %v389
      %523 = vmatprep.subr.mxu0 0.0
      %524 = vmatpush1.msra.mxu0 0.0
      %525 = vmatprep.subr.mxu0 0.0
      %526 = vmatpush1.msra.mxu0 0.0
      %527 = vmatprep.subr.mxu0 0.0
      %528 = vmatpush1.msra.mxu0 0.0
      %529 = vmatprep.subr.mxu0 0.0
      %530 = vmatpush1.msra.mxu0 0.0
      %531 = vmatprep.subr.mxu0 0.0
      %532 = vmatpush1.msra.mxu0 0.0
      %533 = vmatprep.subr.mxu0 0.0
      %534 = vmatpush1.msra.mxu0 0.0
      %535 = vmatprep.subr.mxu0 0.0
      %536 = vmatpush1.msra.mxu0 0.0
      %537 = vmatprep.subr.mxu0 0.0
      %538 = vmatpush1.msra.mxu0 0.0
      %539 = vmatprep.mubr.f32.mxu0 %v392
      %540 = vmatmul.mubr.f32.gmra.mrb[0].mxu0 %v283
      %v541 = vpop.f32.mrb[0].mxu0
      %v542 = vadd.f32 0.0, %v541
      %v543 = vpop.f32.mrb[0].mxu0
      %544 = vmatprep.mubr.f32.mxu0 %v395
      %545 = vmatmul.mubr.f32.gmra.mrb[0].mxu0 %v285
      %v546 = vpop.f32.mrb[0].mxu0
      %v547 = vadd.f32 0.0, %v546
      %v548 = vpop.f32.mrb[0].mxu0
      %549 = vmatprep.mubr.f32.mxu0 %v398
      %550 = vmatmul.mubr.f32.gmra.mrb[0].mxu0 %v287
      %v551 = vpop.f32.mrb[0].mxu0
      %v552 = vadd.f32 0.0, %v551
      %v553 = vpop.f32.mrb[0].mxu0
      %554 = vmatprep.mubr.f32.mxu0 %v401
      %555 = vmatmul.mubr.f32.gmra.mrb[0].mxu0 %v289
      %v556 = vpop.f32.mrb[0].mxu0
      %v557 = vadd.f32 0.0, %v556
      %v558 = vpop.f32.mrb[0].mxu0
      %559 = vmatprep.mubr.f32.mxu0 %v404
      %560 = vmatmul.mubr.f32.gmra.mrb[0].mxu0 %v291
      %v561 = vpop.f32.mrb[0].mxu0
      %v562 = vadd.f32 0.0, %v561
      %v563 = vpop.f32.mrb[0].mxu0
      %564 = vmatprep.mubr.f32.mxu0 %v407
      %565 = vmatmul.mubr.f32.gmra.mrb[0].mxu0 %v293
      %v566 = vpop.f32.mrb[0].mxu0
      %v567 = vadd.f32 0.0, %v566
      %v568 = vpop.f32.mrb[0].mxu0
      %569 = vmatprep.mubr.f32.mxu0 %v410
      %570 = vmatmul.mubr.f32.gmra.mrb[0].mxu0 %v295
      %v571 = vpop.f32.mrb[0].mxu0
      %v572 = vadd.f32 0.0, %v571
      %v573 = vpop.f32.mrb[0].mxu0
      %574 = vmatprep.mubr.f32.mxu0 %v413
      %575 = vmatmul.mubr.f32.gmra.mrb[0].mxu0 %v297
      %v576 = vpop.f32.mrb[0].mxu0
      %v577 = vadd.f32 0.0, %v576
      %v578 = vpop.f32.mrb[0].mxu0
      %579 = vmatprep.mubr.f32.mxu0 %v416
      %580 = vmatmul.mubr.f32.gmra.mrb[0].mxu0 %v299
      %v581 = vpop.f32.mrb[0].mxu0
      %v582 = vadd.f32 0.0, %v581
      %v583 = vpop.f32.mrb[0].mxu0
      %584 = vmatprep.mubr.f32.mxu0 %v419
      %585 = vmatmul.mubr.f32.gmra.mrb[0].mxu0 %v301
      %v586 = vpop.f32.mrb[0].mxu0
      %v587 = vadd.f32 0.0, %v586
      %v588 = vpop.f32.mrb[0].mxu0
      %589 = vmatprep.mubr.f32.mxu0 %v422
      %590 = vmatmul.mubr.f32.gmra.mrb[0].mxu0 %v303
      %v591 = vpop.f32.mrb[0].mxu0
      %v592 = vadd.f32 0.0, %v591
      %v593 = vpop.f32.mrb[0].mxu0
      %594 = vmatprep.mubr.f32.mxu0 %v425
      %595 = vmatmul.mubr.f32.gmra.mrb[0].mxu0 %v305
      %v596 = vpop.f32.mrb[0].mxu0
      %v597 = vadd.f32 0.0, %v596
      %v598 = vpop.f32.mrb[0].mxu0
      %599 = vmatprep.mubr.f32.mxu0 %v428
      %600 = vmatmul.mubr.f32.gmra.mrb[0].mxu0 %v307
      %v601 = vpop.f32.mrb[0].mxu0
      %v602 = vadd.f32 0.0, %v601
      %v603 = vpop.f32.mrb[0].mxu0
      %604 = vmatprep.mubr.f32.mxu0 %v431
      %605 = vmatmul.mubr.f32.gmra.mrb[0].mxu0 %v309
      %v606 = vpop.f32.mrb[0].mxu0
      %v607 = vadd.f32 0.0, %v606
      %v608 = vpop.f32.mrb[0].mxu0
      %609 = vmatprep.mubr.f32.mxu0 %v434
      %610 = vmatmul.mubr.f32.gmra.mrb[0].mxu0 %v311
      %v611 = vpop.f32.mrb[0].mxu0
      %v612 = vadd.f32 0.0, %v611
      %v613 = vpop.f32.mrb[0].mxu0
      %614 = vmatprep.mubr.f32.mxu0 %v437
      %615 = vmatmul.mubr.f32.gmra.mrb[0].mxu0 %v313
      %v616 = vpop.f32.mrb[0].mxu0
      %v617 = vadd.f32 0.0, %v616
      %v618 = vpop.f32.mrb[0].mxu0
      %619 = vmatprep.mubr.f32.mxu0 %v440
      %620 = vmatmul.mubr.f32.gmra.mrb[0].mxu0 %v315
      %v621 = vpop.f32.mrb[0].mxu0
      %v622 = vadd.f32 0.0, %v621
      %v623 = vpop.f32.mrb[0].mxu0
      %624 = vmatprep.mubr.f32.mxu0 %v443
      %625 = vmatmul.mubr.f32.gmra.mrb[0].mxu0 %v317
      %v626 = vpop.f32.mrb[0].mxu0
      %v627 = vadd.f32 0.0, %v626
      %v628 = vpop.f32.mrb[0].mxu0
      %629 = vmatprep.mubr.f32.mxu0 %v446
      %630 = vmatmul.mubr.f32.gmra.mrb[0].mxu0 %v319
      %v631 = vpop.f32.mrb[0].mxu0
      %v632 = vadd.f32 0.0, %v631
      %v633 = vpop.f32.mrb[0].mxu0
      %634 = vmatprep.mubr.f32.mxu0 %v449
      %635 = vmatmul.mubr.f32.gmra.mrb[0].mxu0 %v321
      %v636 = vpop.f32.mrb[0].mxu0
      %v637 = vadd.f32 0.0, %v636
      %v638 = vpop.f32.mrb[0].mxu0
      %639 = vmatprep.mubr.f32.mxu0 %v452
      %640 = vmatmul.mubr.f32.gmra.mrb[0].mxu0 %v323
      %v641 = vpop.f32.mrb[0].mxu0
      %v642 = vadd.f32 0.0, %v641
      %v643 = vpop.f32.mrb[0].mxu0
      %644 = vmatprep.mubr.f32.mxu0 %v455
      %645 = vmatmul.mubr.f32.gmra.mrb[0].mxu0 %v325
      %v646 = vpop.f32.mrb[0].mxu0
      %v647 = vadd.f32 0.0, %v646
      %v648 = vpop.f32.mrb[0].mxu0
      %649 = vmatprep.mubr.f32.mxu0 %v458
      %650 = vmatmul.mubr.f32.gmra.mrb[0].mxu0 %v327
      %v651 = vpop.f32.mrb[0].mxu0
      %v652 = vadd.f32 0.0, %v651
      %v653 = vpop.f32.mrb[0].mxu0
      %654 = vmatprep.mubr.f32.mxu0 %v461
      %655 = vmatmul.mubr.f32.gmra.mrb[0].mxu0 %v329
      %v656 = vpop.f32.mrb[0].mxu0
      %v657 = vadd.f32 0.0, %v656
      %v658 = vpop.f32.mrb[0].mxu0
      %659 = vmatprep.mubr.f32.mxu0 %v464
      %660 = vmatmul.mubr.f32.gmra.mrb[0].mxu0 %v331
      %v661 = vpop.f32.mrb[0].mxu0
      %v662 = vadd.f32 0.0, %v661
      %v663 = vpop.f32.mrb[0].mxu0
      %664 = vmatprep.mubr.f32.mxu0 %v467
      %665 = vmatmul.mubr.f32.gmra.mrb[0].mxu0 %v359
      %v666 = vpop.f32.mrb[0].mxu0
      %v667 = vadd.f32 0.0, %v666
      %v668 = vpop.f32.mrb[0].mxu0
      %669 = vmatprep.mubr.f32.mxu0 %v470
      %670 = vmatmul.mubr.f32.gmra.mrb[0].mxu0 %v361
      %v671 = vpop.f32.mrb[0].mxu0
      %v672 = vadd.f32 0.0, %v671
      %v673 = vpop.f32.mrb[0].mxu0
      %674 = vmatprep.mubr.f32.mxu0 %v473
      %675 = vmatmul.mubr.f32.gmra.mrb[0].mxu0 %v363
      %v676 = vpop.f32.mrb[0].mxu0
      %v677 = vadd.f32 0.0, %v676
      %v678 = vpop.f32.mrb[0].mxu0
      %679 = vdwg.mxu0
      %v681 = vsel %vm390, %v280, 0
      %v684 = vsel %vm390, %v282, 0
      %v687 = vsel %vm390, %v334, 0
      %689 = vmatprep.subr.mxu0 0.0
      %690 = vmatpush1.msra.mxu0 %v335
      %691 = vmatprep.subr.mxu0 0.0
      %692 = vmatpush1.msra.mxu0 %v336
      %693 = vmatprep.subr.mxu0 0.0
      %694 = vmatpush1.msra.mxu0 %v337
      %695 = vmatprep.subr.mxu0 0.0
      %696 = vmatpush1.msra.mxu0 %v338
      %697 = vmatprep.subr.mxu0 0.0
      %698 = vmatpush1.msra.mxu0 %v339
      %699 = vmatprep.subr.mxu0 0.0
      %700 = vmatpush1.msra.mxu0 %v340
      %701 = vmatprep.subr.mxu0 0.0
      %702 = vmatpush1.msra.mxu0 %v341
      %703 = vmatprep.subr.mxu0 0.0
      %704 = vmatpush1.msra.mxu0 %v342
      %705 = vmatprep.subr.mxu0 0.0
      %706 = vmatpush1.msra.mxu0 %v343
      %707 = vmatprep.subr.mxu0 0.0
      %708 = vmatpush1.msra.mxu0 %v344
      %709 = vmatprep.subr.mxu0 0.0
      %710 = vmatpush1.msra.mxu0 %v345
      %711 = vmatprep.subr.mxu0 0.0
      %712 = vmatpush1.msra.mxu0 %v346
      %713 = vmatprep.subr.mxu0 0.0
      %714 = vmatpush1.msra.mxu0 %v347
      %715 = vmatprep.subr.mxu0 0.0
      %716 = vmatpush1.msra.mxu0 %v348
      %717 = vmatprep.subr.mxu0 0.0
      %718 = vmatpush1.msra.mxu0 %v349
      %719 = vmatprep.subr.mxu0 0.0
      %720 = vmatpush1.msra.mxu0 %v350
      %721 = vmatprep.subr.mxu0 0.0
      %722 = vmatpush1.msra.mxu0 %v351
      %723 = vmatprep.subr.mxu0 0.0
      %724 = vmatpush1.msra.mxu0 %v352
      %725 = vmatprep.subr.mxu0 0.0
      %726 = vmatpush1.msra.mxu0 %v353
      %727 = vmatprep.subr.mxu0 0.0
      %728 = vmatpush1.msra.mxu0 %v354
      %729 = vmatprep.subr.mxu0 0.0
      %730 = vmatpush1.msra.mxu0 %v355
      %731 = vmatprep.subr.mxu0 0.0
      %732 = vmatpush1.msra.mxu0 %v356
      %733 = vmatprep.subr.mxu0 0.0
      %734 = vmatpush1.msra.mxu0 %v357
      %735 = vmatprep.subr.mxu0 0.0
      %736 = vmatpush1.msra.mxu0 %v358
      %737 = vmatprep.subr.mxu0 0.0
      %738 = vmatpush1.msra.mxu0 0.0
      %739 = vmatprep.subr.mxu0 0.0
      %740 = vmatpush1.msra.mxu0 0.0
      %741 = vmatprep.subr.mxu0 0.0
      %742 = vmatpush1.msra.mxu0 0.0
      %743 = vmatprep.subr.mxu0 0.0
      %744 = vmatpush1.msra.mxu0 0.0
      %745 = vmatprep.subr.mxu0 0.0
      %746 = vmatpush1.msra.mxu0 0.0
      %747 = vmatprep.subr.mxu0 0.0
      %748 = vmatpush1.msra.mxu0 0.0
      %749 = vmatprep.subr.mxu0 0.0
      %750 = vmatpush1.msra.mxu0 0.0
      %751 = vmatprep.subr.mxu0 0.0
      %752 = vmatpush1.msra.mxu0 0.0
      %753 = vmatprep.mubr.f32.mxu0 %v681
      %754 = vmatmul.mubr.f32.gmra.mrb[0].mxu0 %v279
      %v755 = vpop.f32.mrb[0].mxu0
      %v756 = vadd.f32 %v542, %v755
      %v757 = vpop.f32.mrb[0].mxu0
      %758 = vmatprep.mubr.f32.mxu0 %v684
      %759 = vmatmul.mubr.f32.gmra.mrb[0].mxu0 %v281
      %v760 = vpop.f32.mrb[0].mxu0
      %v761 = vadd.f32 %v547, %v760
      %v762 = vpop.f32.mrb[0].mxu0
      %763 = vmatprep.mubr.f32.mxu0 %v392
      %764 = vmatmul.mubr.f32.gmra.mrb[0].mxu0 %v283
      %v765 = vpop.f32.mrb[0].mxu0
      %v766 = vadd.f32 %v552, %v765
      %v767 = vpop.f32.mrb[0].mxu0
      %768 = vmatprep.mubr.f32.mxu0 %v395
      %769 = vmatmul.mubr.f32.gmra.mrb[0].mxu0 %v285
      %v770 = vpop.f32.mrb[0].mxu0
      %v771 = vadd.f32 %v557, %v770
      %v772 = vpop.f32.mrb[0].mxu0
      %773 = vmatprep.mubr.f32.mxu0 %v398
      %774 = vmatmul.mubr.f32.gmra.mrb[0].mxu0 %v287
      %v775 = vpop.f32.mrb[0].mxu0
      %v776 = vadd.f32 %v562, %v775
      %v777 = vpop.f32.mrb[0].mxu0
      %778 = vmatprep.mubr.f32.mxu0 %v401
      %779 = vmatmul.mubr.f32.gmra.mrb[0].mxu0 %v289
      %v780 = vpop.f32.mrb[0].mxu0
      %v781 = vadd.f32 %v567, %v780
      %v782 = vpop.f32.mrb[0].mxu0
      %783 = vmatprep.mubr.f32.mxu0 %v404
      %784 = vmatmul.mubr.f32.gmra.mrb[0].mxu0 %v291
      %v785 = vpop.f32.mrb[0].mxu0
      %v786 = vadd.f32 %v572, %v785
      %v787 = vpop.f32.mrb[0].mxu0
      %788 = vmatprep.mubr.f32.mxu0 %v407
      %789 = vmatmul.mubr.f32.gmra.mrb[0].mxu0 %v293
      %v790 = vpop.f32.mrb[0].mxu0
      %v791 = vadd.f32 %v577, %v790
      %v792 = vpop.f32.mrb[0].mxu0
      %793 = vmatprep.mubr.f32.mxu0 %v410
      %794 = vmatmul.mubr.f32.gmra.mrb[0].mxu0 %v295
      %v795 = vpop.f32.mrb[0].mxu0
      %v796 = vadd.f32 %v582, %v795
      %v797 = vpop.f32.mrb[0].mxu0
      %798 = vmatprep.mubr.f32.mxu0 %v413
      %799 = vmatmul.mubr.f32.gmra.mrb[0].mxu0 %v297
      %v800 = vpop.f32.mrb[0].mxu0
      %v801 = vadd.f32 %v587, %v800
      %v802 = vpop.f32.mrb[0].mxu0
      %803 = vmatprep.mubr.f32.mxu0 %v416
      %804 = vmatmul.mubr.f32.gmra.mrb[0].mxu0 %v299
      %v805 = vpop.f32.mrb[0].mxu0
      %v806 = vadd.f32 %v592, %v805
      %v807 = vpop.f32.mrb[0].mxu0
      %808 = vmatprep.mubr.f32.mxu0 %v419
      %809 = vmatmul.mubr.f32.gmra.mrb[0].mxu0 %v301
      %v810 = vpop.f32.mrb[0].mxu0
      %v811 = vadd.f32 %v597, %v810
      %v812 = vpop.f32.mrb[0].mxu0
      %813 = vmatprep.mubr.f32.mxu0 %v422
      %814 = vmatmul.mubr.f32.gmra.mrb[0].mxu0 %v303
      %v815 = vpop.f32.mrb[0].mxu0
      %v816 = vadd.f32 %v602, %v815
      %v817 = vpop.f32.mrb[0].mxu0
      %818 = vmatprep.mubr.f32.mxu0 %v425
      %819 = vmatmul.mubr.f32.gmra.mrb[0].mxu0 %v305
      %v820 = vpop.f32.mrb[0].mxu0
      %v821 = vadd.f32 %v607, %v820
      %v822 = vpop.f32.mrb[0].mxu0
      %823 = vmatprep.mubr.f32.mxu0 %v428
      %824 = vmatmul.mubr.f32.gmra.mrb[0].mxu0 %v307
      %v825 = vpop.f32.mrb[0].mxu0
      %v826 = vadd.f32 %v612, %v825
      %v827 = vpop.f32.mrb[0].mxu0
      %828 = vmatprep.mubr.f32.mxu0 %v431
      %829 = vmatmul.mubr.f32.gmra.mrb[0].mxu0 %v309
      %v830 = vpop.f32.mrb[0].mxu0
      %v831 = vadd.f32 %v617, %v830
      %v832 = vpop.f32.mrb[0].mxu0
      %833 = vmatprep.mubr.f32.mxu0 %v434
      %834 = vmatmul.mubr.f32.gmra.mrb[0].mxu0 %v311
      %v835 = vpop.f32.mrb[0].mxu0
      %v836 = vadd.f32 %v622, %v835
      %v837 = vpop.f32.mrb[0].mxu0
      %838 = vmatprep.mubr.f32.mxu0 %v437
      %839 = vmatmul.mubr.f32.gmra.mrb[0].mxu0 %v313
      %v840 = vpop.f32.mrb[0].mxu0
      %v841 = vadd.f32 %v627, %v840
      %v842 = vpop.f32.mrb[0].mxu0
      %843 = vmatprep.mubr.f32.mxu0 %v440
      %844 = vmatmul.mubr.f32.gmra.mrb[0].mxu0 %v315
      %v845 = vpop.f32.mrb[0].mxu0
      %v846 = vadd.f32 %v632, %v845
      %v847 = vpop.f32.mrb[0].mxu0
      %848 = vmatprep.mubr.f32.mxu0 %v443
      %849 = vmatmul.mubr.f32.gmra.mrb[0].mxu0 %v317
      %v850 = vpop.f32.mrb[0].mxu0
      %v851 = vadd.f32 %v637, %v850
      %v852 = vpop.f32.mrb[0].mxu0
      %853 = vmatprep.mubr.f32.mxu0 %v446
      %854 = vmatmul.mubr.f32.gmra.mrb[0].mxu0 %v319
      %v855 = vpop.f32.mrb[0].mxu0
      %v856 = vadd.f32 %v642, %v855
      %v857 = vpop.f32.mrb[0].mxu0
      %858 = vmatprep.mubr.f32.mxu0 %v449
      %859 = vmatmul.mubr.f32.gmra.mrb[0].mxu0 %v321
      %v860 = vpop.f32.mrb[0].mxu0
      %v861 = vadd.f32 %v647, %v860
      %v862 = vpop.f32.mrb[0].mxu0
      %863 = vmatprep.mubr.f32.mxu0 %v452
      %864 = vmatmul.mubr.f32.gmra.mrb[0].mxu0 %v323
      %v865 = vpop.f32.mrb[0].mxu0
      %v866 = vadd.f32 %v652, %v865
      %v867 = vpop.f32.mrb[0].mxu0
      %868 = vmatprep.mubr.f32.mxu0 %v455
      %869 = vmatmul.mubr.f32.gmra.mrb[0].mxu0 %v325
      %v870 = vpop.f32.mrb[0].mxu0
      %v871 = vadd.f32 %v657, %v870
      %v872 = vpop.f32.mrb[0].mxu0
      %873 = vmatprep.mubr.f32.mxu0 %v458
      %874 = vmatmul.mubr.f32.gmra.mrb[0].mxu0 %v327
      %v875 = vpop.f32.mrb[0].mxu0
      %v876 = vadd.f32 %v662, %v875
      %v877 = vpop.f32.mrb[0].mxu0
      %878 = vmatprep.mubr.f32.mxu0 %v461
      %879 = vmatmul.mubr.f32.gmra.mrb[0].mxu0 %v329
      %v880 = vpop.f32.mrb[0].mxu0
      %v881 = vadd.f32 %v667, %v880
      %v882 = vpop.f32.mrb[0].mxu0
      %883 = vmatprep.mubr.f32.mxu0 %v464
      %884 = vmatmul.mubr.f32.gmra.mrb[0].mxu0 %v331
      %v885 = vpop.f32.mrb[0].mxu0
      %v886 = vadd.f32 %v672, %v885
      %v887 = vpop.f32.mrb[0].mxu0
      %888 = vmatprep.mubr.f32.mxu0 %v687
      %889 = vmatmul.mubr.f32.gmra.mrb[0].mxu0 %v333
      %v890 = vpop.f32.mrb[0].mxu0
      %v891 = vadd.f32 %v677, %v890
      %v892 = vpop.f32.mrb[0].mxu0
      %893 = vdwg.mxu0
      %v894 = vld [vmem:[%s273 + $0x40] sm:$0xff]
      %v895 = vld [vmem:[%s273 + $0x48] sm:$0xff]
      %v896 = vld [vmem:[%s273 + $0x50] sm:$0xff]
      %v897 = vld [vmem:[%s273 + $0x58] sm:$0xff]
      %v898 = vld [vmem:[%s273 + $0x60] sm:$0xff]
      %v899 = vld [vmem:[%s273 + $0x68] sm:$0xff]
      %v900 = vld [vmem:[%s273 + $0x70] sm:$0xff]
      %v901 = vld [vmem:[%s273 + $0x78] sm:$0xff]
      %v902 = vld [vmem:[%s273 + $0x80] sm:$0xff]
      %v903 = vld [vmem:[%s273 + $0x88] sm:$0xff]
      %v904 = vld [vmem:[%s273 + $0x90] sm:$0xff]
      %v905 = vld [vmem:[%s273 + $0x98] sm:$0xff]
      %v906 = vld [vmem:[%s273 + $0xa0] sm:$0xff]
      %v907 = vld [vmem:[%s273 + $0xa8] sm:$0xff]
      %v908 = vld [vmem:[%s273 + $0xb0] sm:$0xff]
      %v909 = vld [vmem:[%s273 + $0xb8] sm:$0xff]
      %v910 = vld [vmem:[%s273 + $0xc0] sm:$0xff]
      %v911 = vld [vmem:[%s273 + $0xc8] sm:$0xff]
      %v912 = vld [vmem:[%s273 + $0xd0] sm:$0xff]
      %v913 = vld [vmem:[%s273 + $0xd8] sm:$0xff]
      %v914 = vld [vmem:[%s273 + $0xe0] sm:$0xff]
      %v915 = vld [vmem:[%s273 + $0xe8] sm:$0xff]
      %v916 = vld [vmem:[%s273 + $0xf0] sm:$0xff]
      %v917 = vld [vmem:[%s273 + $0xf8] sm:$0xff]
      %v918 = vld [vmem:[%s273 + $0x100] sm:$0xff]
      %v919 = vld [vmem:[%s273 + $0x108] sm:$0xff]
      %v920 = vld [vmem:[%s273 + $0x110] sm:$0xff]
      %v921 = vld [vmem:[%s273 + $0x118] sm:$0xff]
      %v922 = vld [vmem:[%s273 + $0x120] sm:$0xff]
      %v923 = vld [vmem:[%s273 + $0x128] sm:$0xff]
      %v924 = vld [vmem:[%s273 + $0x130] sm:$0xff]
      %v925 = vld [vmem:[%s273 + $0x138] sm:$0xff]
      %v926 = vld [vmem:[%s273 + $0x140] sm:$0xff]
      %v927 = vld [vmem:[%s273 + $0x148] sm:$0xff]
      %v928 = vld [vmem:[%s273 + $0x150] sm:$0xff]
      %v929 = vld [vmem:[%s273 + $0x158] sm:$0xff]
      %v930 = vld [vmem:[%s273 + $0x160] sm:$0xff]
      %v931 = vld [vmem:[%s273 + $0x168] sm:$0xff]
      %v932 = vld [vmem:[%s273 + $0x170] sm:$0xff]
      %v933 = vld [vmem:[%s273 + $0x178] sm:$0xff]
      %v934 = vld [vmem:[%s273 + $0x180] sm:$0xff]
      %v935 = vld [vmem:[%s273 + $0x188] sm:$0xff]
      %v936 = vld [vmem:[%s273 + $0x190] sm:$0xff]
      %v937 = vld [vmem:[%s273 + $0x198] sm:$0xff]
      %v938 = vld [vmem:[%s273 + $0x1a0] sm:$0xff]
      %v939 = vld [vmem:[%s273 + $0x1a8] sm:$0xff]
      %v940 = vld [vmem:[%s273 + $0x1b0] sm:$0xff]
      %v941 = vld [vmem:[%s273 + $0x1b8] sm:$0xff]
      %v942 = vld [vmem:[%s273 + $0x1c0] sm:$0xff]
      %v943 = vld [vmem:[%s273 + $0x1c8] sm:$0xff]
      %v944 = vld [vmem:[%s273 + $0x1d0] sm:$0xff]
      %v945 = vld [vmem:[%s273 + $0x1d8] sm:$0xff]
      %v946 = vld [vmem:[%s273 + $0x1e0] sm:$0xff]
      %v947 = vld [vmem:[%s273 + $0x1e8] sm:$0xff]
      %v948 = vld [vmem:[%s273 + $0x1f0] sm:$0x3f]
      %v949 = vld [vmem:[%s273 + $0x1f8] sm:$0x3f]
      %s950 = scalar_lea.vmem %s1, 384
      %v951 = vld [vmem:[%s950] sm:$0xff]
      %v952 = vld [vmem:[%s950 + $0x8] sm:$0xff]
      %v953 = vld [vmem:[%s950 + $0x10] sm:$0xff]
      %v954 = vld [vmem:[%s950 + $0x18] sm:$0xff]
      %v955 = vld [vmem:[%s950 + $0x20] sm:$0xff]
      %v956 = vld [vmem:[%s950 + $0x28] sm:$0xff]
      %v957 = vld [vmem:[%s950 + $0x30] sm:$0xff]
      %v958 = vld [vmem:[%s950 + $0x38] sm:$0xff]
      %v959 = vld [vmem:[%s950 + $0x40] sm:$0xff]
      %v960 = vld [vmem:[%s950 + $0x48] sm:$0xff]
      %v961 = vld [vmem:[%s950 + $0x50] sm:$0xff]
      %v962 = vld [vmem:[%s950 + $0x58] sm:$0xff]
      %v963 = vld [vmem:[%s950 + $0x60] sm:$0xff]
      %v964 = vld [vmem:[%s950 + $0x68] sm:$0xff]
      %v965 = vld [vmem:[%s950 + $0x70] sm:$0xff]
      %v966 = vld [vmem:[%s950 + $0x78] sm:$0xff]
      %v967 = vld [vmem:[%s950 + $0x80] sm:$0xff]
      %v968 = vld [vmem:[%s950 + $0x88] sm:$0xff]
      %v969 = vld [vmem:[%s950 + $0x90] sm:$0xff]
      %v970 = vld [vmem:[%s950 + $0x98] sm:$0xff]
      %v971 = vld [vmem:[%s950 + $0xa0] sm:$0xff]
      %v972 = vld [vmem:[%s950 + $0xa8] sm:$0xff]
      %v973 = vld [vmem:[%s950 + $0xb0] sm:$0xff]
      %v974 = vld [vmem:[%s950 + $0xb8] sm:$0xff]
      %v976 = vsel %vm390, %v895, 0
      %v979 = vsel %vm390, %v897, 0
      %v982 = vsel %vm390, %v899, 0
      %v985 = vsel %vm390, %v901, 0
      %v988 = vsel %vm390, %v903, 0
      %v991 = vsel %vm390, %v905, 0
      %v994 = vsel %vm390, %v907, 0
      %v997 = vsel %vm390, %v909, 0
      %v1000 = vsel %vm390, %v911, 0
      %v1003 = vsel %vm390, %v913, 0
      %v1006 = vsel %vm390, %v915, 0
      %v1009 = vsel %vm390, %v917, 0
      %v1012 = vsel %vm390, %v919, 0
      %v1015 = vsel %vm390, %v921, 0
      %v1018 = vsel %vm390, %v923, 0
      %v1021 = vsel %vm390, %v925, 0
      %v1024 = vsel %vm390, %v927, 0
      %v1027 = vsel %vm390, %v929, 0
      %v1030 = vsel %vm390, %v931, 0
      %v1033 = vsel %vm390, %v933, 0
      %v1036 = vsel %vm390, %v935, 0
      %v1039 = vsel %vm390, %v937, 0
      %v1042 = vsel %vm390, %v939, 0
      %v1045 = vsel %vm390, %v941, 0
      %v1048 = vsel %vm390, %v943, 0
      %v1051 = vsel %vm390, %v945, 0
      %v1054 = vsel %vm390, %v947, 0
      %v1057 = vsel %vm390, %v949, 0
      %1059 = vmatprep.subr.mxu0 0.0
      %1060 = vmatpush1.msra.mxu0 %v951
      %1061 = vmatprep.subr.mxu0 0.0
      %1062 = vmatpush1.msra.mxu0 %v952
      %1063 = vmatprep.subr.mxu0 0.0
      %1064 = vmatpush1.msra.mxu0 %v953
      %1065 = vmatprep.subr.mxu0 0.0
      %1066 = vmatpush1.msra.mxu0 %v954
      %1067 = vmatprep.subr.mxu0 0.0
      %1068 = vmatpush1.msra.mxu0 %v955
      %1069 = vmatprep.subr.mxu0 0.0
      %1070 = vmatpush1.msra.mxu0 %v956
      %1071 = vmatprep.subr.mxu0 0.0
      %1072 = vmatpush1.msra.mxu0 %v957
      %1073 = vmatprep.subr.mxu0 0.0
      %1074 = vmatpush1.msra.mxu0 %v958
      %1075 = vmatprep.subr.mxu0 0.0
      %1076 = vmatpush1.msra.mxu0 %v959
      %1077 = vmatprep.subr.mxu0 0.0
      %1078 = vmatpush1.msra.mxu0 %v960
      %1079 = vmatprep.subr.mxu0 0.0
      %1080 = vmatpush1.msra.mxu0 %v961
      %1081 = vmatprep.subr.mxu0 0.0
      %1082 = vmatpush1.msra.mxu0 %v962
      %1083 = vmatprep.subr.mxu0 0.0
      %1084 = vmatpush1.msra.mxu0 %v963
      %1085 = vmatprep.subr.mxu0 0.0
      %1086 = vmatpush1.msra.mxu0 %v964
      %1087 = vmatprep.subr.mxu0 0.0
      %1088 = vmatpush1.msra.mxu0 %v965
      %1089 = vmatprep.subr.mxu0 0.0
      %1090 = vmatpush1.msra.mxu0 %v966
      %1091 = vmatprep.subr.mxu0 0.0
      %1092 = vmatpush1.msra.mxu0 %v967
      %1093 = vmatprep.subr.mxu0 0.0
      %1094 = vmatpush1.msra.mxu0 %v968
      %1095 = vmatprep.subr.mxu0 0.0
      %1096 = vmatpush1.msra.mxu0 %v969
      %1097 = vmatprep.subr.mxu0 0.0
      %1098 = vmatpush1.msra.mxu0 %v970
      %1099 = vmatprep.subr.mxu0 0.0
      %1100 = vmatpush1.msra.mxu0 %v971
      %1101 = vmatprep.subr.mxu0 0.0
      %1102 = vmatpush1.msra.mxu0 %v972
      %1103 = vmatprep.subr.mxu0 0.0
      %1104 = vmatpush1.msra.mxu0 %v973
      %1105 = vmatprep.subr.mxu0 0.0
      %1106 = vmatpush1.msra.mxu0 %v974
      %1107 = vmatprep.subr.mxu0 0.0
      %1108 = vmatpush1.msra.mxu0 0.0
      %1109 = vmatprep.subr.mxu0 0.0
      %1110 = vmatpush1.msra.mxu0 0.0
      %1111 = vmatprep.subr.mxu0 0.0
      %1112 = vmatpush1.msra.mxu0 0.0
      %1113 = vmatprep.subr.mxu0 0.0
      %1114 = vmatpush1.msra.mxu0 0.0
      %1115 = vmatprep.subr.mxu0 0.0
      %1116 = vmatpush1.msra.mxu0 0.0
      %1117 = vmatprep.subr.mxu0 0.0
      %1118 = vmatpush1.msra.mxu0 0.0
      %1119 = vmatprep.subr.mxu0 0.0
      %1120 = vmatpush1.msra.mxu0 0.0
      %1121 = vmatprep.subr.mxu0 0.0
      %1122 = vmatpush1.msra.mxu0 0.0
      %1123 = vmatprep.mubr.f32.mxu0 %v976
      %1124 = vmatmul.mubr.f32.gmra.mrb[0].mxu0 %v894
      %v1125 = vpop.f32.mrb[0].mxu0
      %v1126 = vadd.f32 0.0, %v1125
      %v1127 = vpop.f32.mrb[0].mxu0
      %1128 = vmatprep.mubr.f32.mxu0 %v979
      %1129 = vmatmul.mubr.f32.gmra.mrb[0].mxu0 %v896
      %v1130 = vpop.f32.mrb[0].mxu0
      %v1131 = vadd.f32 0.0, %v1130
      %v1132 = vpop.f32.mrb[0].mxu0
      %1133 = vmatprep.mubr.f32.mxu0 %v982
      %1134 = vmatmul.mubr.f32.gmra.mrb[0].mxu0 %v898
      %v1135 = vpop.f32.mrb[0].mxu0
      %v1136 = vadd.f32 0.0, %v1135
      %v1137 = vpop.f32.mrb[0].mxu0
      %1138 = vmatprep.mubr.f32.mxu0 %v985
      %1139 = vmatmul.mubr.f32.gmra.mrb[0].mxu0 %v900
      %v1140 = vpop.f32.mrb[0].mxu0
      %v1141 = vadd.f32 0.0, %v1140
      %v1142 = vpop.f32.mrb[0].mxu0
      %1143 = vmatprep.mubr.f32.mxu0 %v988
      %1144 = vmatmul.mubr.f32.gmra.mrb[0].mxu0 %v902
      %v1145 = vpop.f32.mrb[0].mxu0
      %v1146 = vadd.f32 0.0, %v1145
      %v1147 = vpop.f32.mrb[0].mxu0
      %1148 = vmatprep.mubr.f32.mxu0 %v991
      %1149 = vmatmul.mubr.f32.gmra.mrb[0].mxu0 %v904
      %v1150 = vpop.f32.mrb[0].mxu0
      %v1151 = vadd.f32 0.0, %v1150
      %v1152 = vpop.f32.mrb[0].mxu0
      %1153 = vmatprep.mubr.f32.mxu0 %v994
      %1154 = vmatmul.mubr.f32.gmra.mrb[0].mxu0 %v906
      %v1155 = vpop.f32.mrb[0].mxu0
      %v1156 = vadd.f32 0.0, %v1155
      %v1157 = vpop.f32.mrb[0].mxu0
      %1158 = vmatprep.mubr.f32.mxu0 %v997
      %1159 = vmatmul.mubr.f32.gmra.mrb[0].mxu0 %v908
      %v1160 = vpop.f32.mrb[0].mxu0
      %v1161 = vadd.f32 0.0, %v1160
      %v1162 = vpop.f32.mrb[0].mxu0
      %1163 = vmatprep.mubr.f32.mxu0 %v1000
      %1164 = vmatmul.mubr.f32.gmra.mrb[0].mxu0 %v910
      %v1165 = vpop.f32.mrb[0].mxu0
      %v1166 = vadd.f32 0.0, %v1165
      %v1167 = vpop.f32.mrb[0].mxu0
      %1168 = vmatprep.mubr.f32.mxu0 %v1003
      %1169 = vmatmul.mubr.f32.gmra.mrb[0].mxu0 %v912
      %v1170 = vpop.f32.mrb[0].mxu0
      %v1171 = vadd.f32 0.0, %v1170
      %v1172 = vpop.f32.mrb[0].mxu0
      %1173 = vmatprep.mubr.f32.mxu0 %v1006
      %1174 = vmatmul.mubr.f32.gmra.mrb[0].mxu0 %v914
      %v1175 = vpop.f32.mrb[0].mxu0
      %v1176 = vadd.f32 0.0, %v1175
      %v1177 = vpop.f32.mrb[0].mxu0
      %1178 = vmatprep.mubr.f32.mxu0 %v1009
      %1179 = vmatmul.mubr.f32.gmra.mrb[0].mxu0 %v916
      %v1180 = vpop.f32.mrb[0].mxu0
      %v1181 = vadd.f32 0.0, %v1180
      %v1182 = vpop.f32.mrb[0].mxu0
      %1183 = vmatprep.mubr.f32.mxu0 %v1012
      %1184 = vmatmul.mubr.f32.gmra.mrb[0].mxu0 %v918
      %v1185 = vpop.f32.mrb[0].mxu0
      %v1186 = vadd.f32 0.0, %v1185
      %v1187 = vpop.f32.mrb[0].mxu0
      %1188 = vmatprep.mubr.f32.mxu0 %v1015
      %1189 = vmatmul.mubr.f32.gmra.mrb[0].mxu0 %v920
      %v1190 = vpop.f32.mrb[0].mxu0
      %v1191 = vadd.f32 0.0, %v1190
      %v1192 = vpop.f32.mrb[0].mxu0
      %1193 = vmatprep.mubr.f32.mxu0 %v1018
      %1194 = vmatmul.mubr.f32.gmra.mrb[0].mxu0 %v922
      %v1195 = vpop.f32.mrb[0].mxu0
      %v1196 = vadd.f32 0.0, %v1195
      %v1197 = vpop.f32.mrb[0].mxu0
      %1198 = vmatprep.mubr.f32.mxu0 %v1021
      %1199 = vmatmul.mubr.f32.gmra.mrb[0].mxu0 %v924
      %v1200 = vpop.f32.mrb[0].mxu0
      %v1201 = vadd.f32 0.0, %v1200
      %v1202 = vpop.f32.mrb[0].mxu0
      %1203 = vmatprep.mubr.f32.mxu0 %v1024
      %1204 = vmatmul.mubr.f32.gmra.mrb[0].mxu0 %v926
      %v1205 = vpop.f32.mrb[0].mxu0
      %v1206 = vadd.f32 0.0, %v1205
      %v1207 = vpop.f32.mrb[0].mxu0
      %1208 = vmatprep.mubr.f32.mxu0 %v1027
      %1209 = vmatmul.mubr.f32.gmra.mrb[0].mxu0 %v928
      %v1210 = vpop.f32.mrb[0].mxu0
      %v1211 = vadd.f32 0.0, %v1210
      %v1212 = vpop.f32.mrb[0].mxu0
      %1213 = vmatprep.mubr.f32.mxu0 %v1030
      %1214 = vmatmul.mubr.f32.gmra.mrb[0].mxu0 %v930
      %v1215 = vpop.f32.mrb[0].mxu0
      %v1216 = vadd.f32 0.0, %v1215
      %v1217 = vpop.f32.mrb[0].mxu0
      %1218 = vmatprep.mubr.f32.mxu0 %v1033
      %1219 = vmatmul.mubr.f32.gmra.mrb[0].mxu0 %v932
      %v1220 = vpop.f32.mrb[0].mxu0
      %v1221 = vadd.f32 0.0, %v1220
      %v1222 = vpop.f32.mrb[0].mxu0
      %1223 = vmatprep.mubr.f32.mxu0 %v1036
      %1224 = vmatmul.mubr.f32.gmra.mrb[0].mxu0 %v934
      %v1225 = vpop.f32.mrb[0].mxu0
      %v1226 = vadd.f32 0.0, %v1225
      %v1227 = vpop.f32.mrb[0].mxu0
      %1228 = vmatprep.mubr.f32.mxu0 %v1039
      %1229 = vmatmul.mubr.f32.gmra.mrb[0].mxu0 %v936
      %v1230 = vpop.f32.mrb[0].mxu0
      %v1231 = vadd.f32 0.0, %v1230
      %v1232 = vpop.f32.mrb[0].mxu0
      %1233 = vmatprep.mubr.f32.mxu0 %v1042
      %1234 = vmatmul.mubr.f32.gmra.mrb[0].mxu0 %v938
      %v1235 = vpop.f32.mrb[0].mxu0
      %v1236 = vadd.f32 0.0, %v1235
      %v1237 = vpop.f32.mrb[0].mxu0
      %1238 = vmatprep.mubr.f32.mxu0 %v1045
      %1239 = vmatmul.mubr.f32.gmra.mrb[0].mxu0 %v940
      %v1240 = vpop.f32.mrb[0].mxu0
      %v1241 = vadd.f32 0.0, %v1240
      %v1242 = vpop.f32.mrb[0].mxu0
      %1243 = vmatprep.mubr.f32.mxu0 %v1048
      %1244 = vmatmul.mubr.f32.gmra.mrb[0].mxu0 %v942
      %v1245 = vpop.f32.mrb[0].mxu0
      %v1246 = vadd.f32 0.0, %v1245
      %v1247 = vpop.f32.mrb[0].mxu0
      %1248 = vmatprep.mubr.f32.mxu0 %v1051
      %1249 = vmatmul.mubr.f32.gmra.mrb[0].mxu0 %v944
      %v1250 = vpop.f32.mrb[0].mxu0
      %v1251 = vadd.f32 0.0, %v1250
      %v1252 = vpop.f32.mrb[0].mxu0
      %1253 = vmatprep.mubr.f32.mxu0 %v1054
      %1254 = vmatmul.mubr.f32.gmra.mrb[0].mxu0 %v946
      %v1255 = vpop.f32.mrb[0].mxu0
      %v1256 = vadd.f32 0.0, %v1255
      %v1257 = vpop.f32.mrb[0].mxu0
      %1258 = vmatprep.mubr.f32.mxu0 %v1057
      %1259 = vmatmul.mubr.f32.gmra.mrb[0].mxu0 %v948
      %v1260 = vpop.f32.mrb[0].mxu0
      %v1261 = vadd.f32 0.0, %v1260
      %v1262 = vpop.f32.mrb[0].mxu0
      %1263 = vdwg.mxu0
      %v1264 = vadd.f32 %v756, %v1126
      %v1265 = vadd.f32 %v761, %v1131
      %v1266 = vadd.f32 %v766, %v1136
      %v1267 = vadd.f32 %v771, %v1141
      %v1268 = vadd.f32 %v776, %v1146
      %v1269 = vadd.f32 %v781, %v1151
      %v1270 = vadd.f32 %v786, %v1156
      %v1271 = vadd.f32 %v791, %v1161
      %v1272 = vadd.f32 %v796, %v1166
      %v1273 = vadd.f32 %v801, %v1171
      %v1274 = vadd.f32 %v806, %v1176
      %v1275 = vadd.f32 %v811, %v1181
      %v1276 = vadd.f32 %v816, %v1186
      %v1277 = vadd.f32 %v821, %v1191
      %v1278 = vadd.f32 %v826, %v1196
      %v1279 = vadd.f32 %v831, %v1201
      %v1280 = vadd.f32 %v836, %v1206
      %v1281 = vadd.f32 %v841, %v1211
      %v1282 = vadd.f32 %v846, %v1216
      %v1283 = vadd.f32 %v851, %v1221
      %v1284 = vadd.f32 %v856, %v1226
      %v1285 = vadd.f32 %v861, %v1231
      %v1286 = vadd.f32 %v866, %v1236
      %v1287 = vadd.f32 %v871, %v1241
      %v1288 = vadd.f32 %v876, %v1246
      %v1289 = vadd.f32 %v881, %v1251
      %v1290 = vadd.f32 %v886, %v1256
      %v1291 = vadd.f32 %v891, %v1261
      %v1292 = vld [vmem:[%s3] sm:$0x1]
      %v1294 = vlaneseq
      %v1295 = vshrl.u32 %v1294, 7
      %v1296 = vsub.s32 0, %v1295
      %v1297 = vrot.slane %v1292, %v1296
      %v1299 = vadd.f32 %v1264, %v1297
      %v1300 = vadd.f32 %v1265, %v1297
      %v1301 = vadd.f32 %v1266, %v1297
      %v1302 = vadd.f32 %v1267, %v1297
      %v1303 = vadd.f32 %v1268, %v1297
      %v1304 = vadd.f32 %v1269, %v1297
      %v1305 = vadd.f32 %v1270, %v1297
      %v1306 = vadd.f32 %v1271, %v1297
      %v1307 = vadd.f32 %v1272, %v1297
      %v1308 = vadd.f32 %v1273, %v1297
      %v1309 = vadd.f32 %v1274, %v1297
      %v1310 = vadd.f32 %v1275, %v1297
      %v1311 = vadd.f32 %v1276, %v1297
      %v1312 = vadd.f32 %v1277, %v1297
      %v1313 = vadd.f32 %v1278, %v1297
      %v1314 = vadd.f32 %v1279, %v1297
      %v1315 = vadd.f32 %v1280, %v1297
      %v1316 = vadd.f32 %v1281, %v1297
      %v1317 = vadd.f32 %v1282, %v1297
      %v1318 = vadd.f32 %v1283, %v1297
      %v1319 = vadd.f32 %v1284, %v1297
      %v1320 = vadd.f32 %v1285, %v1297
      %v1321 = vadd.f32 %v1286, %v1297
      %v1322 = vadd.f32 %v1287, %v1297
      %v1323 = vadd.f32 %v1288, %v1297
      %v1324 = vadd.f32 %v1289, %v1297
      %v1325 = vadd.f32 %v1290, %v1297
      %v1326 = vadd.f32 %v1291, %v1297
      %v1327 = vmax.f32 %v1299, 0.0
      %v1328 = vmax.f32 %v1300, 0.0
      %v1329 = vmax.f32 %v1301, 0.0
      %v1330 = vmax.f32 %v1302, 0.0
      %v1331 = vmax.f32 %v1303, 0.0
      %v1332 = vmax.f32 %v1304, 0.0
      %v1333 = vmax.f32 %v1305, 0.0
      %v1334 = vmax.f32 %v1306, 0.0
      %v1335 = vmax.f32 %v1307, 0.0
      %v1336 = vmax.f32 %v1308, 0.0
      %v1337 = vmax.f32 %v1309, 0.0
      %v1338 = vmax.f32 %v1310, 0.0
      %v1339 = vmax.f32 %v1311, 0.0
      %v1340 = vmax.f32 %v1312, 0.0
      %v1341 = vmax.f32 %v1313, 0.0
      %v1342 = vmax.f32 %v1314, 0.0
      %v1343 = vmax.f32 %v1315, 0.0
      %v1344 = vmax.f32 %v1316, 0.0
      %v1345 = vmax.f32 %v1317, 0.0
      %v1346 = vmax.f32 %v1318, 0.0
      %v1347 = vmax.f32 %v1319, 0.0
      %v1348 = vmax.f32 %v1320, 0.0
      %v1349 = vmax.f32 %v1321, 0.0
      %v1350 = vmax.f32 %v1322, 0.0
      %v1351 = vmax.f32 %v1323, 0.0
      %v1352 = vmax.f32 %v1324, 0.0
      %v1353 = vmax.f32 %v1325, 0.0
      %v1354 = vmax.f32 %v1326, 0.0
      %1355 = vst [vmem:[#allocation2] sm:$0xff] %v1327
      %1356 = vst [vmem:[#allocation2 + $0x18] sm:$0xff] %v1328
      %1357 = vst [vmem:[#allocation2 + $0x30] sm:$0xff] %v1329
      %1358 = vst [vmem:[#allocation2 + $0x48] sm:$0xff] %v1330
      %1359 = vst [vmem:[#allocation2 + $0x60] sm:$0xff] %v1331
      %1360 = vst [vmem:[#allocation2 + $0x78] sm:$0xff] %v1332
      %1361 = vst [vmem:[#allocation2 + $0x90] sm:$0xff] %v1333
      %1362 = vst [vmem:[#allocation2 + $0xa8] sm:$0xff] %v1334
      %1363 = vst [vmem:[#allocation2 + $0xc0] sm:$0xff] %v1335
      %1364 = vst [vmem:[#allocation2 + $0xd8] sm:$0xff] %v1336
      %1365 = vst [vmem:[#allocation2 + $0xf0] sm:$0xff] %v1337
      %1366 = vst [vmem:[#allocation2 + $0x108] sm:$0xff] %v1338
      %1367 = vst [vmem:[#allocation2 + $0x120] sm:$0xff] %v1339
      %1368 = vst [vmem:[#allocation2 + $0x138] sm:$0xff] %v1340
      %1369 = vst [vmem:[#allocation2 + $0x150] sm:$0xff] %v1341
      %1370 = vst [vmem:[#allocation2 + $0x168] sm:$0xff] %v1342
      %1371 = vst [vmem:[#allocation2 + $0x180] sm:$0xff] %v1343
      %1372 = vst [vmem:[#allocation2 + $0x198] sm:$0xff] %v1344
      %1373 = vst [vmem:[#allocation2 + $0x1b0] sm:$0xff] %v1345
      %1374 = vst [vmem:[#allocation2 + $0x1c8] sm:$0xff] %v1346
      %1375 = vst [vmem:[#allocation2 + $0x1e0] sm:$0xff] %v1347
      %1376 = vst [vmem:[#allocation2 + $0x1f8] sm:$0xff] %v1348
      %1377 = vst [vmem:[#allocation2 + $0x210] sm:$0xff] %v1349
      %1378 = vst [vmem:[#allocation2 + $0x228] sm:$0xff] %v1350
      %1379 = vst [vmem:[#allocation2 + $0x240] sm:$0xff] %v1351
      %1380 = vst [vmem:[#allocation2 + $0x258] sm:$0xff] %v1352
      %1381 = vst [vmem:[#allocation2 + $0x270] sm:$0xff] %v1353
      %1382 = vst [vmem:[#allocation2 + $0x288] sm:$0x3f] %v1354
      %v1383 = vld [vmem:[#allocation2] sm:$0xfe]
      %v1384 = vld [vmem:[#allocation2 + $0x18] sm:$0xff]
      %v1385 = vld [vmem:[#allocation2 + $0x30] sm:$0xff]
      %v1386 = vld [vmem:[#allocation2 + $0x48] sm:$0xff]
      %v1387 = vld [vmem:[#allocation2 + $0x60] sm:$0xff]
      %v1388 = vld [vmem:[#allocation2 + $0x78] sm:$0xff]
      %v1389 = vld [vmem:[#allocation2 + $0x90] sm:$0xff]
      %v1390 = vld [vmem:[#allocation2 + $0xa8] sm:$0xff]
      %v1391 = vld [vmem:[#allocation2 + $0xc0] sm:$0xff]
      %v1392 = vld [vmem:[#allocation2 + $0xd8] sm:$0xff]
      %v1393 = vld [vmem:[#allocation2 + $0xf0] sm:$0xff]
      %v1394 = vld [vmem:[#allocation2 + $0x108] sm:$0xff]
      %v1395 = vld [vmem:[#allocation2 + $0x120] sm:$0xff]
      %v1396 = vld [vmem:[#allocation2 + $0x138] sm:$0xff]
      %v1397 = vld [vmem:[#allocation2 + $0x150] sm:$0xff]
      %v1398 = vld [vmem:[#allocation2 + $0x168] sm:$0xff]
      %v1399 = vld [vmem:[#allocation2 + $0x180] sm:$0xff]
      %v1400 = vld [vmem:[#allocation2 + $0x198] sm:$0xff]
      %v1401 = vld [vmem:[#allocation2 + $0x1b0] sm:$0xff]
      %v1402 = vld [vmem:[#allocation2 + $0x1c8] sm:$0xff]
      %v1403 = vld [vmem:[#allocation2 + $0x1e0] sm:$0xff]
      %v1404 = vld [vmem:[#allocation2 + $0x1f8] sm:$0xff]
      %v1405 = vld [vmem:[#allocation2 + $0x210] sm:$0xff]
      %v1406 = vld [vmem:[#allocation2 + $0x228] sm:$0xff]
      %v1407 = vld [vmem:[#allocation2 + $0x240] sm:$0xff]
      %v1408 = vld [vmem:[#allocation2 + $0x258] sm:$0xff]
      %v1409 = vld [vmem:[#allocation2 + $0x270] sm:$0xff]
      %v1410 = vld [vmem:[#allocation2 + $0x288] sm:$0x1f]
      %vm1439 = vcmask 1046528
      %v1440 = vrot.slane %v1383, 1
      %v1441 = vrot.slane %v1384, 1
      %v1442 = vsel %vm1439, %v1440, %v1441
      %v1443 = vrot.slane %v1385, 1
      %v1444 = vsel %vm1439, %v1441, %v1443
      %v1445 = vrot.slane %v1386, 1
      %v1446 = vsel %vm1439, %v1443, %v1445
      %v1447 = vrot.slane %v1387, 1
      %v1448 = vsel %vm1439, %v1445, %v1447
      %v1449 = vrot.slane %v1388, 1
      %v1450 = vsel %vm1439, %v1447, %v1449
      %v1451 = vrot.slane %v1389, 1
      %v1452 = vsel %vm1439, %v1449, %v1451
      %v1453 = vrot.slane %v1390, 1
      %v1454 = vsel %vm1439, %v1451, %v1453
      %v1455 = vrot.slane %v1391, 1
      %v1456 = vsel %vm1439, %v1453, %v1455
      %v1457 = vrot.slane %v1392, 1
      %v1458 = vsel %vm1439, %v1455, %v1457
      %v1459 = vrot.slane %v1393, 1
      %v1460 = vsel %vm1439, %v1457, %v1459
      %v1461 = vrot.slane %v1394, 1
      %v1462 = vsel %vm1439, %v1459, %v1461
      %v1463 = vrot.slane %v1395, 1
      %v1464 = vsel %vm1439, %v1461, %v1463
      %v1465 = vrot.slane %v1396, 1
      %v1466 = vsel %vm1439, %v1463, %v1465
      %v1467 = vrot.slane %v1397, 1
      %v1468 = vsel %vm1439, %v1465, %v1467
      %v1469 = vrot.slane %v1398, 1
      %v1470 = vsel %vm1439, %v1467, %v1469
      %v1471 = vrot.slane %v1399, 1
      %v1472 = vsel %vm1439, %v1469, %v1471
      %v1473 = vrot.slane %v1400, 1
      %v1474 = vsel %vm1439, %v1471, %v1473
      %v1475 = vrot.slane %v1401, 1
      %v1476 = vsel %vm1439, %v1473, %v1475
      %v1477 = vrot.slane %v1402, 1
      %v1478 = vsel %vm1439, %v1475, %v1477
      %v1479 = vrot.slane %v1403, 1
      %v1480 = vsel %vm1439, %v1477, %v1479
      %v1481 = vrot.slane %v1404, 1
      %v1482 = vsel %vm1439, %v1479, %v1481
      %v1483 = vrot.slane %v1405, 1
      %v1484 = vsel %vm1439, %v1481, %v1483
      %v1485 = vrot.slane %v1406, 1
      %v1486 = vsel %vm1439, %v1483, %v1485
      %v1487 = vrot.slane %v1407, 1
      %v1488 = vsel %vm1439, %v1485, %v1487
      %v1489 = vrot.slane %v1408, 1
      %v1490 = vsel %vm1439, %v1487, %v1489
      %v1491 = vrot.slane %v1409, 1
      %v1492 = vsel %vm1439, %v1489, %v1491
      %v1493 = vrot.slane %v1410, 1
      %v1494 = vsel %vm1439, %v1491, %v1493
      %1523 = vst [vmem:[#allocation2 + $0x8] sm:$0xff] %v1442
      %1524 = vst [vmem:[#allocation2 + $0x20] sm:$0xff] %v1444
      %1525 = vst [vmem:[#allocation2 + $0x38] sm:$0xff] %v1446
      %1526 = vst [vmem:[#allocation2 + $0x50] sm:$0xff] %v1448
      %1527 = vst [vmem:[#allocation2 + $0x68] sm:$0xff] %v1450
      %1528 = vst [vmem:[#allocation2 + $0x80] sm:$0xff] %v1452
      %1529 = vst [vmem:[#allocation2 + $0x98] sm:$0xff] %v1454
      %1530 = vst [vmem:[#allocation2 + $0xb0] sm:$0xff] %v1456
      %1531 = vst [vmem:[#allocation2 + $0xc8] sm:$0xff] %v1458
      %1532 = vst [vmem:[#allocation2 + $0xe0] sm:$0xff] %v1460
      %1533 = vst [vmem:[#allocation2 + $0xf8] sm:$0xff] %v1462
      %1534 = vst [vmem:[#allocation2 + $0x110] sm:$0xff] %v1464
      %1535 = vst [vmem:[#allocation2 + $0x128] sm:$0xff] %v1466
      %1536 = vst [vmem:[#allocation2 + $0x140] sm:$0xff] %v1468
      %1537 = vst [vmem:[#allocation2 + $0x158] sm:$0xff] %v1470
      %1538 = vst [vmem:[#allocation2 + $0x170] sm:$0xff] %v1472
      %1539 = vst [vmem:[#allocation2 + $0x188] sm:$0xff] %v1474
      %1540 = vst [vmem:[#allocation2 + $0x1a0] sm:$0xff] %v1476
      %1541 = vst [vmem:[#allocation2 + $0x1b8] sm:$0xff] %v1478
      %1542 = vst [vmem:[#allocation2 + $0x1d0] sm:$0xff] %v1480
      %1543 = vst [vmem:[#allocation2 + $0x1e8] sm:$0xff] %v1482
      %1544 = vst [vmem:[#allocation2 + $0x200] sm:$0xff] %v1484
      %1545 = vst [vmem:[#allocation2 + $0x218] sm:$0xff] %v1486
      %1546 = vst [vmem:[#allocation2 + $0x230] sm:$0xff] %v1488
      %1547 = vst [vmem:[#allocation2 + $0x248] sm:$0xff] %v1490
      %1548 = vst [vmem:[#allocation2 + $0x260] sm:$0xff] %v1492
      %1549 = vst [vmem:[#allocation2 + $0x278] sm:$0xff] %v1494
      %1550 = vst [vmem:[#allocation2 + $0x290] sm:$0xf] %v1493
      %v1551 = vld [vmem:[#allocation2] sm:$0xfc]
      %v1552 = vld [vmem:[#allocation2 + $0x18] sm:$0xff]
      %v1553 = vld [vmem:[#allocation2 + $0x30] sm:$0xff]
      %v1554 = vld [vmem:[#allocation2 + $0x48] sm:$0xff]
      %v1555 = vld [vmem:[#allocation2 + $0x60] sm:$0xff]
      %v1556 = vld [vmem:[#allocation2 + $0x78] sm:$0xff]
      %v1557 = vld [vmem:[#allocation2 + $0x90] sm:$0xff]
      %v1558 = vld [vmem:[#allocation2 + $0xa8] sm:$0xff]
      %v1559 = vld [vmem:[#allocation2 + $0xc0] sm:$0xff]
      %v1560 = vld [vmem:[#allocation2 + $0xd8] sm:$0xff]
      %v1561 = vld [vmem:[#allocation2 + $0xf0] sm:$0xff]
      %v1562 = vld [vmem:[#allocation2 + $0x108] sm:$0xff]
      %v1563 = vld [vmem:[#allocation2 + $0x120] sm:$0xff]
      %v1564 = vld [vmem:[#allocation2 + $0x138] sm:$0xff]
      %v1565 = vld [vmem:[#allocation2 + $0x150] sm:$0xff]
      %v1566 = vld [vmem:[#allocation2 + $0x168] sm:$0xff]
      %v1567 = vld [vmem:[#allocation2 + $0x180] sm:$0xff]
      %v1568 = vld [vmem:[#allocation2 + $0x198] sm:$0xff]
      %v1569 = vld [vmem:[#allocation2 + $0x1b0] sm:$0xff]
      %v1570 = vld [vmem:[#allocation2 + $0x1c8] sm:$0xff]
      %v1571 = vld [vmem:[#allocation2 + $0x1e0] sm:$0xff]
      %v1572 = vld [vmem:[#allocation2 + $0x1f8] sm:$0xff]
      %v1573 = vld [vmem:[#allocation2 + $0x210] sm:$0xff]
      %v1574 = vld [vmem:[#allocation2 + $0x228] sm:$0xff]
      %v1575 = vld [vmem:[#allocation2 + $0x240] sm:$0xff]
      %v1576 = vld [vmem:[#allocation2 + $0x258] sm:$0xff]
      %v1577 = vld [vmem:[#allocation2 + $0x270] sm:$0xff]
      %v1578 = vld [vmem:[#allocation2 + $0x288] sm:$0x3f]
      %vm1607 = vcmask 1045504
      %v1608 = vrot.slane %v1551, 2
      %v1609 = vrot.slane %v1552, 2
      %v1610 = vsel %vm1607, %v1608, %v1609
      %v1611 = vrot.slane %v1553, 2
      %v1612 = vsel %vm1607, %v1609, %v1611
      %v1613 = vrot.slane %v1554, 2
      %v1614 = vsel %vm1607, %v1611, %v1613
      %v1615 = vrot.slane %v1555, 2
      %v1616 = vsel %vm1607, %v1613, %v1615
      %v1617 = vrot.slane %v1556, 2
      %v1618 = vsel %vm1607, %v1615, %v1617
      %v1619 = vrot.slane %v1557, 2
      %v1620 = vsel %vm1607, %v1617, %v1619
      %v1621 = vrot.slane %v1558, 2
      %v1622 = vsel %vm1607, %v1619, %v1621
      %v1623 = vrot.slane %v1559, 2
      %v1624 = vsel %vm1607, %v1621, %v1623
      %v1625 = vrot.slane %v1560, 2
      %v1626 = vsel %vm1607, %v1623, %v1625
      %v1627 = vrot.slane %v1561, 2
      %v1628 = vsel %vm1607, %v1625, %v1627
      %v1629 = vrot.slane %v1562, 2
      %v1630 = vsel %vm1607, %v1627, %v1629
      %v1631 = vrot.slane %v1563, 2
      %v1632 = vsel %vm1607, %v1629, %v1631
      %v1633 = vrot.slane %v1564, 2
      %v1634 = vsel %vm1607, %v1631, %v1633
      %v1635 = vrot.slane %v1565, 2
      %v1636 = vsel %vm1607, %v1633, %v1635
      %v1637 = vrot.slane %v1566, 2
      %v1638 = vsel %vm1607, %v1635, %v1637
      %v1639 = vrot.slane %v1567, 2
      %v1640 = vsel %vm1607, %v1637, %v1639
      %v1641 = vrot.slane %v1568, 2
      %v1642 = vsel %vm1607, %v1639, %v1641
      %v1643 = vrot.slane %v1569, 2
      %v1644 = vsel %vm1607, %v1641, %v1643
      %v1645 = vrot.slane %v1570, 2
      %v1646 = vsel %vm1607, %v1643, %v1645
      %v1647 = vrot.slane %v1571, 2
      %v1648 = vsel %vm1607, %v1645, %v1647
      %v1649 = vrot.slane %v1572, 2
      %v1650 = vsel %vm1607, %v1647, %v1649
      %v1651 = vrot.slane %v1573, 2
      %v1652 = vsel %vm1607, %v1649, %v1651
      %v1653 = vrot.slane %v1574, 2
      %v1654 = vsel %vm1607, %v1651, %v1653
      %v1655 = vrot.slane %v1575, 2
      %v1656 = vsel %vm1607, %v1653, %v1655
      %v1657 = vrot.slane %v1576, 2
      %v1658 = vsel %vm1607, %v1655, %v1657
      %v1659 = vrot.slane %v1577, 2
      %v1660 = vsel %vm1607, %v1657, %v1659
      %v1661 = vrot.slane %v1578, 2
      %v1662 = vsel %vm1607, %v1659, %v1661
      %1691 = vst [vmem:[#allocation2 + $0x10] sm:$0xff] %v1610
      %1692 = vst [vmem:[#allocation2 + $0x28] sm:$0xff] %v1612
      %1693 = vst [vmem:[#allocation2 + $0x40] sm:$0xff] %v1614
      %1694 = vst [vmem:[#allocation2 + $0x58] sm:$0xff] %v1616
      %1695 = vst [vmem:[#allocation2 + $0x70] sm:$0xff] %v1618
      %1696 = vst [vmem:[#allocation2 + $0x88] sm:$0xff] %v1620
      %1697 = vst [vmem:[#allocation2 + $0xa0] sm:$0xff] %v1622
      %1698 = vst [vmem:[#allocation2 + $0xb8] sm:$0xff] %v1624
      %1699 = vst [vmem:[#allocation2 + $0xd0] sm:$0xff] %v1626
      %1700 = vst [vmem:[#allocation2 + $0xe8] sm:$0xff] %v1628
      %1701 = vst [vmem:[#allocation2 + $0x100] sm:$0xff] %v1630
      %1702 = vst [vmem:[#allocation2 + $0x118] sm:$0xff] %v1632
      %1703 = vst [vmem:[#allocation2 + $0x130] sm:$0xff] %v1634
      %1704 = vst [vmem:[#allocation2 + $0x148] sm:$0xff] %v1636
      %1705 = vst [vmem:[#allocation2 + $0x160] sm:$0xff] %v1638
      %1706 = vst [vmem:[#allocation2 + $0x178] sm:$0xff] %v1640
      %1707 = vst [vmem:[#allocation2 + $0x190] sm:$0xff] %v1642
      %1708 = vst [vmem:[#allocation2 + $0x1a8] sm:$0xff] %v1644
      %1709 = vst [vmem:[#allocation2 + $0x1c0] sm:$0xff] %v1646
      %1710 = vst [vmem:[#allocation2 + $0x1d8] sm:$0xff] %v1648
      %1711 = vst [vmem:[#allocation2 + $0x1f0] sm:$0xff] %v1650
      %1712 = vst [vmem:[#allocation2 + $0x208] sm:$0xff] %v1652
      %1713 = vst [vmem:[#allocation2 + $0x220] sm:$0xff] %v1654
      %1714 = vst [vmem:[#allocation2 + $0x238] sm:$0xff] %v1656
      %1715 = vst [vmem:[#allocation2 + $0x250] sm:$0xff] %v1658
      %1716 = vst [vmem:[#allocation2 + $0x268] sm:$0xff] %v1660
      %1717 = vst [vmem:[#allocation2 + $0x280] sm:$0xff] %v1662
      %1718 = vst [vmem:[#allocation2 + $0x298] sm:$0xf] %v1661
      %v1719 = vld [vmem:[#allocation2] sm:$0xff]
      %v1720 = vld [vmem:[#allocation2 + $0x8] sm:$0xff]
      %v1721 = vld [vmem:[#allocation2 + $0x10] sm:$0xff]
      %v1722 = vld [vmem:[#allocation2 + $0x18] sm:$0xff]
      %v1723 = vld [vmem:[#allocation2 + $0x20] sm:$0xff]
      %v1724 = vld [vmem:[#allocation2 + $0x28] sm:$0xff]
      %v1725 = vld [vmem:[#allocation2 + $0x30] sm:$0xff]
      %v1726 = vld [vmem:[#allocation2 + $0x38] sm:$0xff]
      %v1727 = vld [vmem:[#allocation2 + $0x40] sm:$0xff]
      %v1728 = vld [vmem:[#allocation2 + $0x48] sm:$0xff]
      %v1729 = vld [vmem:[#allocation2 + $0x50] sm:$0xff]
      %v1730 = vld [vmem:[#allocation2 + $0x58] sm:$0xff]
      %v1731 = vld [vmem:[#allocation2 + $0x60] sm:$0xff]
      %v1732 = vld [vmem:[#allocation2 + $0x68] sm:$0xff]
      %v1733 = vld [vmem:[#allocation2 + $0x70] sm:$0xff]
      %v1734 = vld [vmem:[#allocation2 + $0x78] sm:$0xff]
      %v1735 = vld [vmem:[#allocation2 + $0x80] sm:$0xff]
      %v1736 = vld [vmem:[#allocation2 + $0x88] sm:$0xff]
      %v1737 = vld [vmem:[#allocation2 + $0x90] sm:$0xff]
      %v1738 = vld [vmem:[#allocation2 + $0x98] sm:$0xff]
      %v1739 = vld [vmem:[#allocation2 + $0xa0] sm:$0xff]
      %v1740 = vld [vmem:[#allocation2 + $0xa8] sm:$0xff]
      %v1741 = vld [vmem:[#allocation2 + $0xb0] sm:$0xff]
      %v1742 = vld [vmem:[#allocation2 + $0xb8] sm:$0xff]
      %v1743 = vld [vmem:[#allocation2 + $0xc0] sm:$0xff]
      %v1744 = vld [vmem:[#allocation2 + $0xc8] sm:$0xff]
      %v1745 = vld [vmem:[#allocation2 + $0xd0] sm:$0xff]
      %v1746 = vld [vmem:[#allocation2 + $0xd8] sm:$0xff]
      %v1747 = vld [vmem:[#allocation2 + $0xe0] sm:$0xff]
      %v1748 = vld [vmem:[#allocation2 + $0xe8] sm:$0xff]
      %v1749 = vld [vmem:[#allocation2 + $0xf0] sm:$0xff]
      %v1750 = vld [vmem:[#allocation2 + $0xf8] sm:$0xff]
      %v1751 = vld [vmem:[#allocation2 + $0x100] sm:$0xff]
      %v1752 = vld [vmem:[#allocation2 + $0x108] sm:$0xff]
      %v1753 = vld [vmem:[#allocation2 + $0x110] sm:$0xff]
      %v1754 = vld [vmem:[#allocation2 + $0x118] sm:$0xff]
      %v1755 = vld [vmem:[#allocation2 + $0x120] sm:$0xff]
      %v1756 = vld [vmem:[#allocation2 + $0x128] sm:$0xff]
      %v1757 = vld [vmem:[#allocation2 + $0x130] sm:$0xff]
      %v1758 = vld [vmem:[#allocation2 + $0x138] sm:$0xff]
      %v1759 = vld [vmem:[#allocation2 + $0x140] sm:$0xff]
      %v1760 = vld [vmem:[#allocation2 + $0x148] sm:$0xff]
      %v1761 = vld [vmem:[#allocation2 + $0x150] sm:$0xff]
      %v1762 = vld [vmem:[#allocation2 + $0x158] sm:$0xff]
      %v1763 = vld [vmem:[#allocation2 + $0x160] sm:$0xff]
      %v1764 = vld [vmem:[#allocation2 + $0x168] sm:$0xff]
      %v1765 = vld [vmem:[#allocation2 + $0x170] sm:$0xff]
      %v1766 = vld [vmem:[#allocation2 + $0x178] sm:$0xff]
      %v1767 = vld [vmem:[#allocation2 + $0x180] sm:$0xff]
      %v1768 = vld [vmem:[#allocation2 + $0x188] sm:$0xff]
      %v1769 = vld [vmem:[#allocation2 + $0x190] sm:$0xff]
      %v1770 = vld [vmem:[#allocation2 + $0x198] sm:$0xff]
      %v1771 = vld [vmem:[#allocation2 + $0x1a0] sm:$0xff]
      %v1772 = vld [vmem:[#allocation2 + $0x1a8] sm:$0xff]
      %v1773 = vld [vmem:[#allocation2 + $0x1b0] sm:$0xff]
      %v1774 = vld [vmem:[#allocation2 + $0x1b8] sm:$0xff]
      %v1775 = vld [vmem:[#allocation2 + $0x1c0] sm:$0xff]
      %v1776 = vld [vmem:[#allocation2 + $0x1c8] sm:$0xff]
      %v1777 = vld [vmem:[#allocation2 + $0x1d0] sm:$0xff]
      %v1778 = vld [vmem:[#allocation2 + $0x1d8] sm:$0xff]
      %v1779 = vld [vmem:[#allocation2 + $0x1e0] sm:$0xff]
      %v1780 = vld [vmem:[#allocation2 + $0x1e8] sm:$0xff]
      %v1781 = vld [vmem:[#allocation2 + $0x1f0] sm:$0xff]
      %v1782 = vld [vmem:[#allocation2 + $0x1f8] sm:$0xff]
      %v1783 = vld [vmem:[#allocation2 + $0x200] sm:$0xff]
      %v1784 = vld [vmem:[#allocation2 + $0x208] sm:$0xff]
      %v1785 = vld [vmem:[#allocation2 + $0x210] sm:$0xff]
      %v1786 = vld [vmem:[#allocation2 + $0x218] sm:$0xff]
      %v1787 = vld [vmem:[#allocation2 + $0x220] sm:$0xff]
      %v1788 = vld [vmem:[#allocation2 + $0x228] sm:$0xf]
      %v1789 = vld [vmem:[#allocation2 + $0x230] sm:$0xf]
      %v1790 = vld [vmem:[#allocation2 + $0x238] sm:$0xf]
      %v1791 = vld [vmem:[%s2] sm:$0xff]
      %v1792 = vld [vmem:[%s2 + $0x8] sm:$0xff]
      %v1793 = vld [vmem:[%s2 + $0x10] sm:$0xff]
      %v1794 = vld [vmem:[%s2 + $0x18] sm:$0xff]
      %v1795 = vld [vmem:[%s2 + $0x20] sm:$0xff]
      %v1796 = vld [vmem:[%s2 + $0x28] sm:$0xff]
      %v1797 = vld [vmem:[%s2 + $0x30] sm:$0xff]
      %v1798 = vld [vmem:[%s2 + $0x38] sm:$0xff]
      %v1799 = vld [vmem:[%s2 + $0x40] sm:$0xff]
      %v1800 = vld [vmem:[%s2 + $0x48] sm:$0xff]
      %v1801 = vld [vmem:[%s2 + $0x50] sm:$0xff]
      %v1802 = vld [vmem:[%s2 + $0x58] sm:$0xff]
      %v1803 = vld [vmem:[%s2 + $0x60] sm:$0xff]
      %v1804 = vld [vmem:[%s2 + $0x68] sm:$0xff]
      %v1805 = vld [vmem:[%s2 + $0x70] sm:$0xff]
      %v1806 = vld [vmem:[%s2 + $0x78] sm:$0xff]
      %v1807 = vld [vmem:[%s2 + $0x80] sm:$0xff]
      %v1808 = vld [vmem:[%s2 + $0x88] sm:$0xff]
      %v1809 = vld [vmem:[%s2 + $0x90] sm:$0xff]
      %v1810 = vld [vmem:[%s2 + $0x98] sm:$0xff]
      %v1811 = vld [vmem:[%s2 + $0xa0] sm:$0xff]
      %v1812 = vld [vmem:[%s2 + $0xa8] sm:$0xff]
      %v1813 = vld [vmem:[%s2 + $0xb0] sm:$0xff]
      %v1814 = vld [vmem:[%s2 + $0xb8] sm:$0xff]
      %v1815 = vld [vmem:[%s2 + $0xc0] sm:$0xff]
      %v1816 = vld [vmem:[%s2 + $0xc8] sm:$0xff]
      %v1817 = vld [vmem:[%s2 + $0xd0] sm:$0xff]
      %v1818 = vld [vmem:[%s2 + $0xd8] sm:$0xff]
      %v1819 = vld [vmem:[%s2 + $0xe0] sm:$0xff]
      %v1820 = vld [vmem:[%s2 + $0xe8] sm:$0xff]
      %v1821 = vld [vmem:[%s2 + $0xf0] sm:$0xff]
      %v1822 = vld [vmem:[%s2 + $0xf8] sm:$0xff]
      %v1823 = vld [vmem:[%s2 + $0x100] sm:$0xff]
      %v1824 = vld [vmem:[%s2 + $0x108] sm:$0xff]
      %v1825 = vld [vmem:[%s2 + $0x110] sm:$0xff]
      %v1826 = vld [vmem:[%s2 + $0x118] sm:$0xff]
      %v1827 = vld [vmem:[%s2 + $0x120] sm:$0xff]
      %v1828 = vld [vmem:[%s2 + $0x128] sm:$0xff]
      %v1829 = vld [vmem:[%s2 + $0x130] sm:$0xff]
      %v1830 = vld [vmem:[%s2 + $0x138] sm:$0xff]
      %v1831 = vld [vmem:[%s2 + $0x140] sm:$0xff]
      %v1832 = vld [vmem:[%s2 + $0x148] sm:$0xff]
      %v1833 = vld [vmem:[%s2 + $0x150] sm:$0xff]
      %v1834 = vld [vmem:[%s2 + $0x158] sm:$0xff]
      %v1835 = vld [vmem:[%s2 + $0x160] sm:$0xff]
      %v1836 = vld [vmem:[%s2 + $0x168] sm:$0xff]
      %v1837 = vld [vmem:[%s2 + $0x170] sm:$0xff]
      %v1838 = vld [vmem:[%s2 + $0x178] sm:$0xff]
      %v1839 = vld [vmem:[#allocation2 + $0x228] sm:$0xff]
      %v1840 = vld [vmem:[#allocation2 + $0x230] sm:$0xff]
      %v1841 = vld [vmem:[#allocation2 + $0x238] sm:$0xff]
      %v1842 = vld [vmem:[#allocation2 + $0x240] sm:$0xff]
      %v1843 = vld [vmem:[#allocation2 + $0x248] sm:$0xff]
      %v1844 = vld [vmem:[#allocation2 + $0x250] sm:$0xff]
      %v1845 = vld [vmem:[#allocation2 + $0x258] sm:$0xf]
      %v1846 = vld [vmem:[#allocation2 + $0x260] sm:$0xf]
      %v1847 = vld [vmem:[#allocation2 + $0x268] sm:$0xf]
      %s1848 = scalar_lea.vmem %s2, 384
      %v1849 = vld [vmem:[%s1848] sm:$0xff]
      %v1850 = vld [vmem:[%s1848 + $0x8] sm:$0xff]
      %v1851 = vld [vmem:[%s1848 + $0x10] sm:$0xff]
      %v1852 = vld [vmem:[%s1848 + $0x18] sm:$0xff]
      %v1853 = vld [vmem:[%s1848 + $0x20] sm:$0xff]
      %v1854 = vld [vmem:[%s1848 + $0x28] sm:$0xff]
      %v1855 = vld [vmem:[%s1848 + $0x30] sm:$0xff]
      %v1856 = vld [vmem:[%s1848 + $0x38] sm:$0xff]
      %v1857 = vld [vmem:[%s1848 + $0x40] sm:$0xff]
      %v1858 = vld [vmem:[%s1848 + $0x48] sm:$0xff]
      %v1859 = vld [vmem:[%s1848 + $0x50] sm:$0xff]
      %v1860 = vld [vmem:[%s1848 + $0x58] sm:$0xff]
      %v1861 = vld [vmem:[%s1848 + $0x60] sm:$0xff]
      %v1862 = vld [vmem:[%s1848 + $0x68] sm:$0xff]
      %v1863 = vld [vmem:[%s1848 + $0x70] sm:$0xff]
      %v1864 = vld [vmem:[%s1848 + $0x78] sm:$0xff]
      %v1865 = vld [vmem:[%s1848 + $0x80] sm:$0xff]
      %v1866 = vld [vmem:[%s1848 + $0x88] sm:$0xff]
      %v1867 = vld [vmem:[%s1848 + $0x90] sm:$0xff]
      %v1868 = vld [vmem:[%s1848 + $0x98] sm:$0xff]
      %v1869 = vld [vmem:[%s1848 + $0xa0] sm:$0xff]
      %v1870 = vld [vmem:[%s1848 + $0xa8] sm:$0xff]
      %v1871 = vld [vmem:[%s1848 + $0xb0] sm:$0xff]
      %v1872 = vld [vmem:[%s1848 + $0xb8] sm:$0xff]
      %v1873 = vld [vmem:[%s1848 + $0xc0] sm:$0xff]
      %v1874 = vld [vmem:[%s1848 + $0xc8] sm:$0xff]
      %v1875 = vld [vmem:[%s1848 + $0xd0] sm:$0xff]
      %v1876 = vld [vmem:[%s1848 + $0xd8] sm:$0xff]
      %v1877 = vld [vmem:[%s1848 + $0xe0] sm:$0xff]
      %v1878 = vld [vmem:[%s1848 + $0xe8] sm:$0xff]
      %v1879 = vld [vmem:[%s1848 + $0xf0] sm:$0xff]
      %v1880 = vld [vmem:[%s1848 + $0xf8] sm:$0xff]
      %v1881 = vld [vmem:[%s1848 + $0x100] sm:$0xff]
      %v1882 = vld [vmem:[%s1848 + $0x108] sm:$0xff]
      %v1883 = vld [vmem:[%s1848 + $0x110] sm:$0xff]
      %v1884 = vld [vmem:[%s1848 + $0x118] sm:$0xff]
      %v1885 = vld [vmem:[%s1848 + $0x120] sm:$0xff]
      %v1886 = vld [vmem:[%s1848 + $0x128] sm:$0xff]
      %v1887 = vld [vmem:[%s1848 + $0x130] sm:$0xff]
      %v1888 = vld [vmem:[%s1848 + $0x138] sm:$0xff]
      %v1889 = vld [vmem:[%s1848 + $0x140] sm:$0xff]
      %v1890 = vld [vmem:[%s1848 + $0x148] sm:$0xff]
      %v1891 = vld [vmem:[%s1848 + $0x150] sm:$0xff]
      %v1892 = vld [vmem:[%s1848 + $0x158] sm:$0xff]
      %v1893 = vld [vmem:[%s1848 + $0x160] sm:$0xff]
      %v1894 = vld [vmem:[%s1848 + $0x168] sm:$0xff]
      %v1895 = vld [vmem:[%s1848 + $0x170] sm:$0xff]
      %v1896 = vld [vmem:[%s1848 + $0x178] sm:$0xff]
      %1897 = vmatprep.subr.mxu0 0.0
      %1898 = vmatpush1.msra.mxu0 %v1849
      %1899 = vmatprep.subr.mxu0 0.0
      %1900 = vmatpush1.msra.mxu0 %v1850
      %1901 = vmatprep.subr.mxu0 0.0
      %1902 = vmatpush1.msra.mxu0 %v1851
      %1903 = vmatprep.subr.mxu0 0.0
      %1904 = vmatpush1.msra.mxu0 %v1852
      %1905 = vmatprep.subr.mxu0 0.0
      %1906 = vmatpush1.msra.mxu0 %v1853
      %1907 = vmatprep.subr.mxu0 0.0
      %1908 = vmatpush1.msra.mxu0 %v1854
      %1909 = vmatprep.subr.mxu0 0.0
      %1910 = vmatpush1.msra.mxu0 %v1855
      %1911 = vmatprep.subr.mxu0 0.0
      %1912 = vmatpush1.msra.mxu0 %v1856
      %1913 = vmatprep.subr.mxu0 0.0
      %1914 = vmatpush1.msra.mxu0 %v1857
      %1915 = vmatprep.subr.mxu0 0.0
      %1916 = vmatpush1.msra.mxu0 %v1858
      %1917 = vmatprep.subr.mxu0 0.0
      %1918 = vmatpush1.msra.mxu0 %v1859
      %1919 = vmatprep.subr.mxu0 0.0
      %1920 = vmatpush1.msra.mxu0 %v1860
      %1921 = vmatprep.subr.mxu0 0.0
      %1922 = vmatpush1.msra.mxu0 %v1861
      %1923 = vmatprep.subr.mxu0 0.0
      %1924 = vmatpush1.msra.mxu0 %v1862
      %1925 = vmatprep.subr.mxu0 0.0
      %1926 = vmatpush1.msra.mxu0 %v1863
      %1927 = vmatprep.subr.mxu0 0.0
      %1928 = vmatpush1.msra.mxu0 %v1864
      %1929 = vmatprep.subr.mxu0 0.0
      %1930 = vmatpush1.msra.mxu0 %v1865
      %1931 = vmatprep.subr.mxu0 0.0
      %1932 = vmatpush1.msra.mxu0 %v1866
      %1933 = vmatprep.subr.mxu0 0.0
      %1934 = vmatpush1.msra.mxu0 %v1867
      %1935 = vmatprep.subr.mxu0 0.0
      %1936 = vmatpush1.msra.mxu0 %v1868
      %1937 = vmatprep.subr.mxu0 0.0
      %1938 = vmatpush1.msra.mxu0 %v1869
      %1939 = vmatprep.subr.mxu0 0.0
      %1940 = vmatpush1.msra.mxu0 %v1870
      %1941 = vmatprep.subr.mxu0 0.0
      %1942 = vmatpush1.msra.mxu0 %v1871
      %1943 = vmatprep.subr.mxu0 0.0
      %1944 = vmatpush1.msra.mxu0 %v1872
      %1945 = vmatprep.subr.mxu0 0.0
      %1946 = vmatpush1.msra.mxu0 %v1873
      %1947 = vmatprep.subr.mxu0 0.0
      %1948 = vmatpush1.msra.mxu0 %v1874
      %1949 = vmatprep.subr.mxu0 0.0
      %1950 = vmatpush1.msra.mxu0 %v1875
      %1951 = vmatprep.subr.mxu0 0.0
      %1952 = vmatpush1.msra.mxu0 %v1876
      %1953 = vmatprep.subr.mxu0 0.0
      %1954 = vmatpush1.msra.mxu0 %v1877
      %1955 = vmatprep.subr.mxu0 0.0
      %1956 = vmatpush1.msra.mxu0 %v1878
      %1957 = vmatprep.subr.mxu0 0.0
      %1958 = vmatpush1.msra.mxu0 %v1879
      %1959 = vmatprep.subr.mxu0 0.0
      %1960 = vmatpush1.msra.mxu0 %v1880
      %1961 = vmatprep.mubr.f32.mxu0 %v1726
      %1962 = vmatmul.mubr.f32.gmra.mrb[0].mxu0 %v1725
      %v1963 = vpop.f32.mrb[0].mxu0
      %v1964 = vadd.f32 0.0, %v1963
      %v1965 = vpop.f32.mrb[0].mxu0
      %1966 = vmatprep.mubr.f32.mxu0 %v1729
      %1967 = vmatmul.mubr.f32.gmra.mrb[0].mxu0 %v1728
      %v1968 = vpop.f32.mrb[0].mxu0
      %v1969 = vadd.f32 0.0, %v1968
      %v1970 = vpop.f32.mrb[0].mxu0
      %1971 = vmatprep.mubr.f32.mxu0 %v1732
      %1972 = vmatmul.mubr.f32.gmra.mrb[0].mxu0 %v1731
      %v1973 = vpop.f32.mrb[0].mxu0
      %v1974 = vadd.f32 0.0, %v1973
      %v1975 = vpop.f32.mrb[0].mxu0
      %1976 = vmatprep.mubr.f32.mxu0 %v1735
      %1977 = vmatmul.mubr.f32.gmra.mrb[0].mxu0 %v1734
      %v1978 = vpop.f32.mrb[0].mxu0
      %v1979 = vadd.f32 0.0, %v1978
      %v1980 = vpop.f32.mrb[0].mxu0
      %1981 = vmatprep.mubr.f32.mxu0 %v1738
      %1982 = vmatmul.mubr.f32.gmra.mrb[0].mxu0 %v1737
      %v1983 = vpop.f32.mrb[0].mxu0
      %v1984 = vadd.f32 0.0, %v1983
      %v1985 = vpop.f32.mrb[0].mxu0
      %1986 = vmatprep.mubr.f32.mxu0 %v1741
      %1987 = vmatmul.mubr.f32.gmra.mrb[0].mxu0 %v1740
      %v1988 = vpop.f32.mrb[0].mxu0
      %v1989 = vadd.f32 0.0, %v1988
      %v1990 = vpop.f32.mrb[0].mxu0
      %1991 = vmatprep.mubr.f32.mxu0 %v1744
      %1992 = vmatmul.mubr.f32.gmra.mrb[0].mxu0 %v1743
      %v1993 = vpop.f32.mrb[0].mxu0
      %v1994 = vadd.f32 0.0, %v1993
      %v1995 = vpop.f32.mrb[0].mxu0
      %1996 = vmatprep.mubr.f32.mxu0 %v1747
      %1997 = vmatmul.mubr.f32.gmra.mrb[0].mxu0 %v1746
      %v1998 = vpop.f32.mrb[0].mxu0
      %v1999 = vadd.f32 0.0, %v1998
      %v2000 = vpop.f32.mrb[0].mxu0
      %2001 = vmatprep.mubr.f32.mxu0 %v1750
      %2002 = vmatmul.mubr.f32.gmra.mrb[0].mxu0 %v1749
      %v2003 = vpop.f32.mrb[0].mxu0
      %v2004 = vadd.f32 0.0, %v2003
      %v2005 = vpop.f32.mrb[0].mxu0
      %2006 = vmatprep.mubr.f32.mxu0 %v1753
      %2007 = vmatmul.mubr.f32.gmra.mrb[0].mxu0 %v1752
      %v2008 = vpop.f32.mrb[0].mxu0
      %v2009 = vadd.f32 0.0, %v2008
      %v2010 = vpop.f32.mrb[0].mxu0
      %2011 = vmatprep.mubr.f32.mxu0 %v1756
      %2012 = vmatmul.mubr.f32.gmra.mrb[0].mxu0 %v1755
      %v2013 = vpop.f32.mrb[0].mxu0
      %v2014 = vadd.f32 0.0, %v2013
      %v2015 = vpop.f32.mrb[0].mxu0
      %2016 = vmatprep.mubr.f32.mxu0 %v1759
      %2017 = vmatmul.mubr.f32.gmra.mrb[0].mxu0 %v1758
      %v2018 = vpop.f32.mrb[0].mxu0
      %v2019 = vadd.f32 0.0, %v2018
      %v2020 = vpop.f32.mrb[0].mxu0
      %2021 = vmatprep.mubr.f32.mxu0 %v1762
      %2022 = vmatmul.mubr.f32.gmra.mrb[0].mxu0 %v1761
      %v2023 = vpop.f32.mrb[0].mxu0
      %v2024 = vadd.f32 0.0, %v2023
      %v2025 = vpop.f32.mrb[0].mxu0
      %2026 = vmatprep.mubr.f32.mxu0 %v1765
      %2027 = vmatmul.mubr.f32.gmra.mrb[0].mxu0 %v1764
      %v2028 = vpop.f32.mrb[0].mxu0
      %v2029 = vadd.f32 0.0, %v2028
      %v2030 = vpop.f32.mrb[0].mxu0
      %2031 = vmatprep.mubr.f32.mxu0 %v1768
      %2032 = vmatmul.mubr.f32.gmra.mrb[0].mxu0 %v1767
      %v2033 = vpop.f32.mrb[0].mxu0
      %v2034 = vadd.f32 0.0, %v2033
      %v2035 = vpop.f32.mrb[0].mxu0
      %2036 = vmatprep.mubr.f32.mxu0 %v1771
      %2037 = vmatmul.mubr.f32.gmra.mrb[0].mxu0 %v1770
      %v2038 = vpop.f32.mrb[0].mxu0
      %v2039 = vadd.f32 0.0, %v2038
      %v2040 = vpop.f32.mrb[0].mxu0
      %2041 = vmatprep.mubr.f32.mxu0 %v1774
      %2042 = vmatmul.mubr.f32.gmra.mrb[0].mxu0 %v1773
      %v2043 = vpop.f32.mrb[0].mxu0
      %v2044 = vadd.f32 0.0, %v2043
      %v2045 = vpop.f32.mrb[0].mxu0
      %2046 = vmatprep.mubr.f32.mxu0 %v1777
      %2047 = vmatmul.mubr.f32.gmra.mrb[0].mxu0 %v1776
      %v2048 = vpop.f32.mrb[0].mxu0
      %v2049 = vadd.f32 0.0, %v2048
      %v2050 = vpop.f32.mrb[0].mxu0
      %2051 = vmatprep.mubr.f32.mxu0 %v1780
      %2052 = vmatmul.mubr.f32.gmra.mrb[0].mxu0 %v1779
      %v2053 = vpop.f32.mrb[0].mxu0
      %v2054 = vadd.f32 0.0, %v2053
      %v2055 = vpop.f32.mrb[0].mxu0
      %2056 = vmatprep.mubr.f32.mxu0 %v1783
      %2057 = vmatmul.mubr.f32.gmra.mrb[0].mxu0 %v1782
      %v2058 = vpop.f32.mrb[0].mxu0
      %v2059 = vadd.f32 0.0, %v2058
      %v2060 = vpop.f32.mrb[0].mxu0
      %2061 = vmatprep.mubr.f32.mxu0 %v1786
      %2062 = vmatmul.mubr.f32.gmra.mrb[0].mxu0 %v1785
      %v2063 = vpop.f32.mrb[0].mxu0
      %v2064 = vadd.f32 0.0, %v2063
      %v2065 = vpop.f32.mrb[0].mxu0
      %2066 = vmatprep.mubr.f32.mxu0 %v1840
      %2067 = vmatmul.mubr.f32.gmra.mrb[0].mxu0 %v1839
      %v2068 = vpop.f32.mrb[0].mxu0
      %v2069 = vadd.f32 0.0, %v2068
      %v2070 = vpop.f32.mrb[0].mxu0
      %2071 = vmatprep.mubr.f32.mxu0 %v1843
      %2072 = vmatmul.mubr.f32.gmra.mrb[0].mxu0 %v1842
      %v2073 = vpop.f32.mrb[0].mxu0
      %v2074 = vadd.f32 0.0, %v2073
      %v2075 = vpop.f32.mrb[0].mxu0
      %2076 = vmatprep.mubr.f32.mxu0 %v1846
      %2077 = vmatmul.mubr.f32.gmra.mrb[0].mxu0 %v1845
      %v2078 = vpop.f32.mrb[0].mxu0
      %v2079 = vadd.f32 0.0, %v2078
      %v2080 = vpop.f32.mrb[0].mxu0
      %2081 = vdwg.mxu0
      %2082 = vmatprep.subr.mxu0 0.0
      %2083 = vmatpush1.msra.mxu0 %v1881
      %2084 = vmatprep.subr.mxu0 0.0
      %2085 = vmatpush1.msra.mxu0 %v1882
      %2086 = vmatprep.subr.mxu0 0.0
      %2087 = vmatpush1.msra.mxu0 %v1883
      %2088 = vmatprep.subr.mxu0 0.0
      %2089 = vmatpush1.msra.mxu0 %v1884
      %2090 = vmatprep.subr.mxu0 0.0
      %2091 = vmatpush1.msra.mxu0 %v1885
      %2092 = vmatprep.subr.mxu0 0.0
      %2093 = vmatpush1.msra.mxu0 %v1886
      %2094 = vmatprep.subr.mxu0 0.0
      %2095 = vmatpush1.msra.mxu0 %v1887
      %2096 = vmatprep.subr.mxu0 0.0
      %2097 = vmatpush1.msra.mxu0 %v1888
      %2098 = vmatprep.subr.mxu0 0.0
      %2099 = vmatpush1.msra.mxu0 %v1889
      %2100 = vmatprep.subr.mxu0 0.0
      %2101 = vmatpush1.msra.mxu0 %v1890
      %2102 = vmatprep.subr.mxu0 0.0
      %2103 = vmatpush1.msra.mxu0 %v1891
      %2104 = vmatprep.subr.mxu0 0.0
      %2105 = vmatpush1.msra.mxu0 %v1892
      %2106 = vmatprep.subr.mxu0 0.0
      %2107 = vmatpush1.msra.mxu0 %v1893
      %2108 = vmatprep.subr.mxu0 0.0
      %2109 = vmatpush1.msra.mxu0 %v1894
      %2110 = vmatprep.subr.mxu0 0.0
      %2111 = vmatpush1.msra.mxu0 %v1895
      %2112 = vmatprep.subr.mxu0 0.0
      %2113 = vmatpush1.msra.mxu0 %v1896
      %2114 = vmatprep.subr.mxu0 0.0
      %2115 = vmatpush1.msra.mxu0 0.0
      %2116 = vmatprep.subr.mxu0 0.0
      %2117 = vmatpush1.msra.mxu0 0.0
      %2118 = vmatprep.subr.mxu0 0.0
      %2119 = vmatpush1.msra.mxu0 0.0
      %2120 = vmatprep.subr.mxu0 0.0
      %2121 = vmatpush1.msra.mxu0 0.0
      %2122 = vmatprep.subr.mxu0 0.0
      %2123 = vmatpush1.msra.mxu0 0.0
      %2124 = vmatprep.subr.mxu0 0.0
      %2125 = vmatpush1.msra.mxu0 0.0
      %2126 = vmatprep.subr.mxu0 0.0
      %2127 = vmatpush1.msra.mxu0 0.0
      %2128 = vmatprep.subr.mxu0 0.0
      %2129 = vmatpush1.msra.mxu0 0.0
      %2130 = vmatprep.subr.mxu0 0.0
      %2131 = vmatpush1.msra.mxu0 0.0
      %2132 = vmatprep.subr.mxu0 0.0
      %2133 = vmatpush1.msra.mxu0 0.0
      %2134 = vmatprep.subr.mxu0 0.0
      %2135 = vmatpush1.msra.mxu0 0.0
      %2136 = vmatprep.subr.mxu0 0.0
      %2137 = vmatpush1.msra.mxu0 0.0
      %2138 = vmatprep.subr.mxu0 0.0
      %2139 = vmatpush1.msra.mxu0 0.0
      %2140 = vmatprep.subr.mxu0 0.0
      %2141 = vmatpush1.msra.mxu0 0.0
      %2142 = vmatprep.subr.mxu0 0.0
      %2143 = vmatpush1.msra.mxu0 0.0
      %2144 = vmatprep.subr.mxu0 0.0
      %2145 = vmatpush1.msra.mxu0 0.0
      %2146 = vmatprep.mubr.f32.mxu0 0.0
      %2147 = vmatmul.mubr.f32.gmra.mrb[0].mxu0 %v1727
      %v2148 = vpop.f32.mrb[0].mxu0
      %v2149 = vadd.f32 %v1964, %v2148
      %v2150 = vpop.f32.mrb[0].mxu0
      %2151 = vmatprep.mubr.f32.mxu0 0.0
      %2152 = vmatmul.mubr.f32.gmra.mrb[0].mxu0 %v1730
      %v2153 = vpop.f32.mrb[0].mxu0
      %v2154 = vadd.f32 %v1969, %v2153
      %v2155 = vpop.f32.mrb[0].mxu0
      %2156 = vmatprep.mubr.f32.mxu0 0.0
      %2157 = vmatmul.mubr.f32.gmra.mrb[0].mxu0 %v1733
      %v2158 = vpop.f32.mrb[0].mxu0
      %v2159 = vadd.f32 %v1974, %v2158
      %v2160 = vpop.f32.mrb[0].mxu0
      %2161 = vmatprep.mubr.f32.mxu0 0.0
      %2162 = vmatmul.mubr.f32.gmra.mrb[0].mxu0 %v1736
      %v2163 = vpop.f32.mrb[0].mxu0
      %v2164 = vadd.f32 %v1979, %v2163
      %v2165 = vpop.f32.mrb[0].mxu0
      %2166 = vmatprep.mubr.f32.mxu0 0.0
      %2167 = vmatmul.mubr.f32.gmra.mrb[0].mxu0 %v1739
      %v2168 = vpop.f32.mrb[0].mxu0
      %v2169 = vadd.f32 %v1984, %v2168
      %v2170 = vpop.f32.mrb[0].mxu0
      %2171 = vmatprep.mubr.f32.mxu0 0.0
      %2172 = vmatmul.mubr.f32.gmra.mrb[0].mxu0 %v1742
      %v2173 = vpop.f32.mrb[0].mxu0
      %v2174 = vadd.f32 %v1989, %v2173
      %v2175 = vpop.f32.mrb[0].mxu0
      %2176 = vmatprep.mubr.f32.mxu0 0.0
      %2177 = vmatmul.mubr.f32.gmra.mrb[0].mxu0 %v1745
      %v2178 = vpop.f32.mrb[0].mxu0
      %v2179 = vadd.f32 %v1994, %v2178
      %v2180 = vpop.f32.mrb[0].mxu0
      %2181 = vmatprep.mubr.f32.mxu0 0.0
      %2182 = vmatmul.mubr.f32.gmra.mrb[0].mxu0 %v1748
      %v2183 = vpop.f32.mrb[0].mxu0
      %v2184 = vadd.f32 %v1999, %v2183
      %v2185 = vpop.f32.mrb[0].mxu0
      %2186 = vmatprep.mubr.f32.mxu0 0.0
      %2187 = vmatmul.mubr.f32.gmra.mrb[0].mxu0 %v1751
      %v2188 = vpop.f32.mrb[0].mxu0
      %v2189 = vadd.f32 %v2004, %v2188
      %v2190 = vpop.f32.mrb[0].mxu0
      %2191 = vmatprep.mubr.f32.mxu0 0.0
      %2192 = vmatmul.mubr.f32.gmra.mrb[0].mxu0 %v1754
      %v2193 = vpop.f32.mrb[0].mxu0
      %v2194 = vadd.f32 %v2009, %v2193
      %v2195 = vpop.f32.mrb[0].mxu0
      %2196 = vmatprep.mubr.f32.mxu0 0.0
      %2197 = vmatmul.mubr.f32.gmra.mrb[0].mxu0 %v1757
      %v2198 = vpop.f32.mrb[0].mxu0
      %v2199 = vadd.f32 %v2014, %v2198
      %v2200 = vpop.f32.mrb[0].mxu0
      %2201 = vmatprep.mubr.f32.mxu0 0.0
      %2202 = vmatmul.mubr.f32.gmra.mrb[0].mxu0 %v1760
      %v2203 = vpop.f32.mrb[0].mxu0
      %v2204 = vadd.f32 %v2019, %v2203
      %v2205 = vpop.f32.mrb[0].mxu0
      %2206 = vmatprep.mubr.f32.mxu0 0.0
      %2207 = vmatmul.mubr.f32.gmra.mrb[0].mxu0 %v1763
      %v2208 = vpop.f32.mrb[0].mxu0
      %v2209 = vadd.f32 %v2024, %v2208
      %v2210 = vpop.f32.mrb[0].mxu0
      %2211 = vmatprep.mubr.f32.mxu0 0.0
      %2212 = vmatmul.mubr.f32.gmra.mrb[0].mxu0 %v1766
      %v2213 = vpop.f32.mrb[0].mxu0
      %v2214 = vadd.f32 %v2029, %v2213
      %v2215 = vpop.f32.mrb[0].mxu0
      %2216 = vmatprep.mubr.f32.mxu0 0.0
      %2217 = vmatmul.mubr.f32.gmra.mrb[0].mxu0 %v1769
      %v2218 = vpop.f32.mrb[0].mxu0
      %v2219 = vadd.f32 %v2034, %v2218
      %v2220 = vpop.f32.mrb[0].mxu0
      %2221 = vmatprep.mubr.f32.mxu0 0.0
      %2222 = vmatmul.mubr.f32.gmra.mrb[0].mxu0 %v1772
      %v2223 = vpop.f32.mrb[0].mxu0
      %v2224 = vadd.f32 %v2039, %v2223
      %v2225 = vpop.f32.mrb[0].mxu0
      %2226 = vmatprep.mubr.f32.mxu0 0.0
      %2227 = vmatmul.mubr.f32.gmra.mrb[0].mxu0 %v1775
      %v2228 = vpop.f32.mrb[0].mxu0
      %v2229 = vadd.f32 %v2044, %v2228
      %v2230 = vpop.f32.mrb[0].mxu0
      %2231 = vmatprep.mubr.f32.mxu0 0.0
      %2232 = vmatmul.mubr.f32.gmra.mrb[0].mxu0 %v1778
      %v2233 = vpop.f32.mrb[0].mxu0
      %v2234 = vadd.f32 %v2049, %v2233
      %v2235 = vpop.f32.mrb[0].mxu0
      %2236 = vmatprep.mubr.f32.mxu0 0.0
      %2237 = vmatmul.mubr.f32.gmra.mrb[0].mxu0 %v1781
      %v2238 = vpop.f32.mrb[0].mxu0
      %v2239 = vadd.f32 %v2054, %v2238
      %v2240 = vpop.f32.mrb[0].mxu0
      %2241 = vmatprep.mubr.f32.mxu0 0.0
      %2242 = vmatmul.mubr.f32.gmra.mrb[0].mxu0 %v1784
      %v2243 = vpop.f32.mrb[0].mxu0
      %v2244 = vadd.f32 %v2059, %v2243
      %v2245 = vpop.f32.mrb[0].mxu0
      %2246 = vmatprep.mubr.f32.mxu0 0.0
      %2247 = vmatmul.mubr.f32.gmra.mrb[0].mxu0 %v1787
      %v2248 = vpop.f32.mrb[0].mxu0
      %v2249 = vadd.f32 %v2064, %v2248
      %v2250 = vpop.f32.mrb[0].mxu0
      %2251 = vmatprep.mubr.f32.mxu0 0.0
      %2252 = vmatmul.mubr.f32.gmra.mrb[0].mxu0 %v1841
      %v2253 = vpop.f32.mrb[0].mxu0
      %v2254 = vadd.f32 %v2069, %v2253
      %v2255 = vpop.f32.mrb[0].mxu0
      %2256 = vmatprep.mubr.f32.mxu0 0.0
      %2257 = vmatmul.mubr.f32.gmra.mrb[0].mxu0 %v1844
      %v2258 = vpop.f32.mrb[0].mxu0
      %v2259 = vadd.f32 %v2074, %v2258
      %v2260 = vpop.f32.mrb[0].mxu0
      %2261 = vmatprep.mubr.f32.mxu0 0.0
      %2262 = vmatmul.mubr.f32.gmra.mrb[0].mxu0 %v1847
      %v2263 = vpop.f32.mrb[0].mxu0
      %v2264 = vadd.f32 %v2079, %v2263
      %v2265 = vpop.f32.mrb[0].mxu0
      %2266 = vdwg.mxu0
      %2267 = vmatprep.subr.mxu0 0.0
      %2268 = vmatpush1.msra.mxu0 %v1791
      %2269 = vmatprep.subr.mxu0 0.0
      %2270 = vmatpush1.msra.mxu0 %v1792
      %2271 = vmatprep.subr.mxu0 0.0
      %2272 = vmatpush1.msra.mxu0 %v1793
      %2273 = vmatprep.subr.mxu0 0.0
      %2274 = vmatpush1.msra.mxu0 %v1794
      %2275 = vmatprep.subr.mxu0 0.0
      %2276 = vmatpush1.msra.mxu0 %v1795
      %2277 = vmatprep.subr.mxu0 0.0
      %2278 = vmatpush1.msra.mxu0 %v1796
      %2279 = vmatprep.subr.mxu0 0.0
      %2280 = vmatpush1.msra.mxu0 %v1797
      %2281 = vmatprep.subr.mxu0 0.0
      %2282 = vmatpush1.msra.mxu0 %v1798
      %2283 = vmatprep.subr.mxu0 0.0
      %2284 = vmatpush1.msra.mxu0 %v1799
      %2285 = vmatprep.subr.mxu0 0.0
      %2286 = vmatpush1.msra.mxu0 %v1800
      %2287 = vmatprep.subr.mxu0 0.0
      %2288 = vmatpush1.msra.mxu0 %v1801
      %2289 = vmatprep.subr.mxu0 0.0
      %2290 = vmatpush1.msra.mxu0 %v1802
      %2291 = vmatprep.subr.mxu0 0.0
      %2292 = vmatpush1.msra.mxu0 %v1803
      %2293 = vmatprep.subr.mxu0 0.0
      %2294 = vmatpush1.msra.mxu0 %v1804
      %2295 = vmatprep.subr.mxu0 0.0
      %2296 = vmatpush1.msra.mxu0 %v1805
      %2297 = vmatprep.subr.mxu0 0.0
      %2298 = vmatpush1.msra.mxu0 %v1806
      %2299 = vmatprep.subr.mxu0 0.0
      %2300 = vmatpush1.msra.mxu0 %v1807
      %2301 = vmatprep.subr.mxu0 0.0
      %2302 = vmatpush1.msra.mxu0 %v1808
      %2303 = vmatprep.subr.mxu0 0.0
      %2304 = vmatpush1.msra.mxu0 %v1809
      %2305 = vmatprep.subr.mxu0 0.0
      %2306 = vmatpush1.msra.mxu0 %v1810
      %2307 = vmatprep.subr.mxu0 0.0
      %2308 = vmatpush1.msra.mxu0 %v1811
      %2309 = vmatprep.subr.mxu0 0.0
      %2310 = vmatpush1.msra.mxu0 %v1812
      %2311 = vmatprep.subr.mxu0 0.0
      %2312 = vmatpush1.msra.mxu0 %v1813
      %2313 = vmatprep.subr.mxu0 0.0
      %2314 = vmatpush1.msra.mxu0 %v1814
      %2315 = vmatprep.subr.mxu0 0.0
      %2316 = vmatpush1.msra.mxu0 %v1815
      %2317 = vmatprep.subr.mxu0 0.0
      %2318 = vmatpush1.msra.mxu0 %v1816
      %2319 = vmatprep.subr.mxu0 0.0
      %2320 = vmatpush1.msra.mxu0 %v1817
      %2321 = vmatprep.subr.mxu0 0.0
      %2322 = vmatpush1.msra.mxu0 %v1818
      %2323 = vmatprep.subr.mxu0 0.0
      %2324 = vmatpush1.msra.mxu0 %v1819
      %2325 = vmatprep.subr.mxu0 0.0
      %2326 = vmatpush1.msra.mxu0 %v1820
      %2327 = vmatprep.subr.mxu0 0.0
      %2328 = vmatpush1.msra.mxu0 %v1821
      %2329 = vmatprep.subr.mxu0 0.0
      %2330 = vmatpush1.msra.mxu0 %v1822
      %2331 = vmatprep.mubr.f32.mxu0 %v1720
      %2332 = vmatmul.mubr.f32.gmra.mrb[0].mxu0 %v1719
      %v2333 = vpop.f32.mrb[0].mxu0
      %v2334 = vadd.f32 %v2149, %v2333
      %v2335 = vpop.f32.mrb[0].mxu0
      %2336 = vmatprep.mubr.f32.mxu0 %v1723
      %2337 = vmatmul.mubr.f32.gmra.mrb[0].mxu0 %v1722
      %v2338 = vpop.f32.mrb[0].mxu0
      %v2339 = vadd.f32 %v2154, %v2338
      %v2340 = vpop.f32.mrb[0].mxu0
      %2341 = vmatprep.mubr.f32.mxu0 %v1726
      %2342 = vmatmul.mubr.f32.gmra.mrb[0].mxu0 %v1725
      %v2343 = vpop.f32.mrb[0].mxu0
      %v2344 = vadd.f32 %v2159, %v2343
      %v2345 = vpop.f32.mrb[0].mxu0
      %2346 = vmatprep.mubr.f32.mxu0 %v1729
      %2347 = vmatmul.mubr.f32.gmra.mrb[0].mxu0 %v1728
      %v2348 = vpop.f32.mrb[0].mxu0
      %v2349 = vadd.f32 %v2164, %v2348
      %v2350 = vpop.f32.mrb[0].mxu0
      %2351 = vmatprep.mubr.f32.mxu0 %v1732
      %2352 = vmatmul.mubr.f32.gmra.mrb[0].mxu0 %v1731
      %v2353 = vpop.f32.mrb[0].mxu0
      %v2354 = vadd.f32 %v2169, %v2353
      %v2355 = vpop.f32.mrb[0].mxu0
      %2356 = vmatprep.mubr.f32.mxu0 %v1735
      %2357 = vmatmul.mubr.f32.gmra.mrb[0].mxu0 %v1734
      %v2358 = vpop.f32.mrb[0].mxu0
      %v2359 = vadd.f32 %v2174, %v2358
      %v2360 = vpop.f32.mrb[0].mxu0
      %2361 = vmatprep.mubr.f32.mxu0 %v1738
      %2362 = vmatmul.mubr.f32.gmra.mrb[0].mxu0 %v1737
      %v2363 = vpop.f32.mrb[0].mxu0
      %v2364 = vadd.f32 %v2179, %v2363
      %v2365 = vpop.f32.mrb[0].mxu0
      %2366 = vmatprep.mubr.f32.mxu0 %v1741
      %2367 = vmatmul.mubr.f32.gmra.mrb[0].mxu0 %v1740
      %v2368 = vpop.f32.mrb[0].mxu0
      %v2369 = vadd.f32 %v2184, %v2368
      %v2370 = vpop.f32.mrb[0].mxu0
      %2371 = vmatprep.mubr.f32.mxu0 %v1744
      %2372 = vmatmul.mubr.f32.gmra.mrb[0].mxu0 %v1743
      %v2373 = vpop.f32.mrb[0].mxu0
      %v2374 = vadd.f32 %v2189, %v2373
      %v2375 = vpop.f32.mrb[0].mxu0
      %2376 = vmatprep.mubr.f32.mxu0 %v1747
      %2377 = vmatmul.mubr.f32.gmra.mrb[0].mxu0 %v1746
      %v2378 = vpop.f32.mrb[0].mxu0
      %v2379 = vadd.f32 %v2194, %v2378
      %v2380 = vpop.f32.mrb[0].mxu0
      %2381 = vmatprep.mubr.f32.mxu0 %v1750
      %2382 = vmatmul.mubr.f32.gmra.mrb[0].mxu0 %v1749
      %v2383 = vpop.f32.mrb[0].mxu0
      %v2384 = vadd.f32 %v2199, %v2383
      %v2385 = vpop.f32.mrb[0].mxu0
      %2386 = vmatprep.mubr.f32.mxu0 %v1753
      %2387 = vmatmul.mubr.f32.gmra.mrb[0].mxu0 %v1752
      %v2388 = vpop.f32.mrb[0].mxu0
      %v2389 = vadd.f32 %v2204, %v2388
      %v2390 = vpop.f32.mrb[0].mxu0
      %2391 = vmatprep.mubr.f32.mxu0 %v1756
      %2392 = vmatmul.mubr.f32.gmra.mrb[0].mxu0 %v1755
      %v2393 = vpop.f32.mrb[0].mxu0
      %v2394 = vadd.f32 %v2209, %v2393
      %v2395 = vpop.f32.mrb[0].mxu0
      %2396 = vmatprep.mubr.f32.mxu0 %v1759
      %2397 = vmatmul.mubr.f32.gmra.mrb[0].mxu0 %v1758
      %v2398 = vpop.f32.mrb[0].mxu0
      %v2399 = vadd.f32 %v2214, %v2398
      %v2400 = vpop.f32.mrb[0].mxu0
      %2401 = vmatprep.mubr.f32.mxu0 %v1762
      %2402 = vmatmul.mubr.f32.gmra.mrb[0].mxu0 %v1761
      %v2403 = vpop.f32.mrb[0].mxu0
      %v2404 = vadd.f32 %v2219, %v2403
      %v2405 = vpop.f32.mrb[0].mxu0
      %2406 = vmatprep.mubr.f32.mxu0 %v1765
      %2407 = vmatmul.mubr.f32.gmra.mrb[0].mxu0 %v1764
      %v2408 = vpop.f32.mrb[0].mxu0
      %v2409 = vadd.f32 %v2224, %v2408
      %v2410 = vpop.f32.mrb[0].mxu0
      %2411 = vmatprep.mubr.f32.mxu0 %v1768
      %2412 = vmatmul.mubr.f32.gmra.mrb[0].mxu0 %v1767
      %v2413 = vpop.f32.mrb[0].mxu0
      %v2414 = vadd.f32 %v2229, %v2413
      %v2415 = vpop.f32.mrb[0].mxu0
      %2416 = vmatprep.mubr.f32.mxu0 %v1771
      %2417 = vmatmul.mubr.f32.gmra.mrb[0].mxu0 %v1770
      %v2418 = vpop.f32.mrb[0].mxu0
      %v2419 = vadd.f32 %v2234, %v2418
      %v2420 = vpop.f32.mrb[0].mxu0
      %2421 = vmatprep.mubr.f32.mxu0 %v1774
      %2422 = vmatmul.mubr.f32.gmra.mrb[0].mxu0 %v1773
      %v2423 = vpop.f32.mrb[0].mxu0
      %v2424 = vadd.f32 %v2239, %v2423
      %v2425 = vpop.f32.mrb[0].mxu0
      %2426 = vmatprep.mubr.f32.mxu0 %v1777
      %2427 = vmatmul.mubr.f32.gmra.mrb[0].mxu0 %v1776
      %v2428 = vpop.f32.mrb[0].mxu0
      %v2429 = vadd.f32 %v2244, %v2428
      %v2430 = vpop.f32.mrb[0].mxu0
      %2431 = vmatprep.mubr.f32.mxu0 %v1780
      %2432 = vmatmul.mubr.f32.gmra.mrb[0].mxu0 %v1779
      %v2433 = vpop.f32.mrb[0].mxu0
      %v2434 = vadd.f32 %v2249, %v2433
      %v2435 = vpop.f32.mrb[0].mxu0
      %2436 = vmatprep.mubr.f32.mxu0 %v1783
      %2437 = vmatmul.mubr.f32.gmra.mrb[0].mxu0 %v1782
      %v2438 = vpop.f32.mrb[0].mxu0
      %v2439 = vadd.f32 %v2254, %v2438
      %v2440 = vpop.f32.mrb[0].mxu0
      %2441 = vmatprep.mubr.f32.mxu0 %v1786
      %2442 = vmatmul.mubr.f32.gmra.mrb[0].mxu0 %v1785
      %v2443 = vpop.f32.mrb[0].mxu0
      %v2444 = vadd.f32 %v2259, %v2443
      %v2445 = vpop.f32.mrb[0].mxu0
      %2446 = vmatprep.mubr.f32.mxu0 %v1789
      %2447 = vmatmul.mubr.f32.gmra.mrb[0].mxu0 %v1788
      %v2448 = vpop.f32.mrb[0].mxu0
      %v2449 = vadd.f32 %v2264, %v2448
      %v2450 = vpop.f32.mrb[0].mxu0
      %2451 = vdwg.mxu0
      %2452 = vmatprep.subr.mxu0 0.0
      %2453 = vmatpush1.msra.mxu0 %v1823
      %2454 = vmatprep.subr.mxu0 0.0
      %2455 = vmatpush1.msra.mxu0 %v1824
      %2456 = vmatprep.subr.mxu0 0.0
      %2457 = vmatpush1.msra.mxu0 %v1825
      %2458 = vmatprep.subr.mxu0 0.0
      %2459 = vmatpush1.msra.mxu0 %v1826
      %2460 = vmatprep.subr.mxu0 0.0
      %2461 = vmatpush1.msra.mxu0 %v1827
      %2462 = vmatprep.subr.mxu0 0.0
      %2463 = vmatpush1.msra.mxu0 %v1828
      %2464 = vmatprep.subr.mxu0 0.0
      %2465 = vmatpush1.msra.mxu0 %v1829
      %2466 = vmatprep.subr.mxu0 0.0
      %2467 = vmatpush1.msra.mxu0 %v1830
      %2468 = vmatprep.subr.mxu0 0.0
      %2469 = vmatpush1.msra.mxu0 %v1831
      %2470 = vmatprep.subr.mxu0 0.0
      %2471 = vmatpush1.msra.mxu0 %v1832
      %2472 = vmatprep.subr.mxu0 0.0
      %2473 = vmatpush1.msra.mxu0 %v1833
      %2474 = vmatprep.subr.mxu0 0.0
      %2475 = vmatpush1.msra.mxu0 %v1834
      %2476 = vmatprep.subr.mxu0 0.0
      %2477 = vmatpush1.msra.mxu0 %v1835
      %2478 = vmatprep.subr.mxu0 0.0
      %2479 = vmatpush1.msra.mxu0 %v1836
      %2480 = vmatprep.subr.mxu0 0.0
      %2481 = vmatpush1.msra.mxu0 %v1837
      %2482 = vmatprep.subr.mxu0 0.0
      %2483 = vmatpush1.msra.mxu0 %v1838
      %2484 = vmatprep.subr.mxu0 0.0
      %2485 = vmatpush1.msra.mxu0 0.0
      %2486 = vmatprep.subr.mxu0 0.0
      %2487 = vmatpush1.msra.mxu0 0.0
      %2488 = vmatprep.subr.mxu0 0.0
      %2489 = vmatpush1.msra.mxu0 0.0
      %2490 = vmatprep.subr.mxu0 0.0
      %2491 = vmatpush1.msra.mxu0 0.0
      %2492 = vmatprep.subr.mxu0 0.0
      %2493 = vmatpush1.msra.mxu0 0.0
      %2494 = vmatprep.subr.mxu0 0.0
      %2495 = vmatpush1.msra.mxu0 0.0
      %2496 = vmatprep.subr.mxu0 0.0
      %2497 = vmatpush1.msra.mxu0 0.0
      %2498 = vmatprep.subr.mxu0 0.0
      %2499 = vmatpush1.msra.mxu0 0.0
      %2500 = vmatprep.subr.mxu0 0.0
      %2501 = vmatpush1.msra.mxu0 0.0
      %2502 = vmatprep.subr.mxu0 0.0
      %2503 = vmatpush1.msra.mxu0 0.0
      %2504 = vmatprep.subr.mxu0 0.0
      %2505 = vmatpush1.msra.mxu0 0.0
      %2506 = vmatprep.subr.mxu0 0.0
      %2507 = vmatpush1.msra.mxu0 0.0
      %2508 = vmatprep.subr.mxu0 0.0
      %2509 = vmatpush1.msra.mxu0 0.0
      %2510 = vmatprep.subr.mxu0 0.0
      %2511 = vmatpush1.msra.mxu0 0.0
      %2512 = vmatprep.subr.mxu0 0.0
      %2513 = vmatpush1.msra.mxu0 0.0
      %2514 = vmatprep.subr.mxu0 0.0
      %2515 = vmatpush1.msra.mxu0 0.0
      %2516 = vmatprep.mubr.f32.mxu0 0.0
      %2517 = vmatmul.mubr.f32.gmra.mrb[0].mxu0 %v1721
      %v2518 = vpop.f32.mrb[0].mxu0
      %v2519 = vadd.f32 %v2334, %v2518
      %v2520 = vpop.f32.mrb[0].mxu0
      %2521 = vmatprep.mubr.f32.mxu0 0.0
      %2522 = vmatmul.mubr.f32.gmra.mrb[0].mxu0 %v1724
      %v2523 = vpop.f32.mrb[0].mxu0
      %v2524 = vadd.f32 %v2339, %v2523
      %v2525 = vpop.f32.mrb[0].mxu0
      %2526 = vmatprep.mubr.f32.mxu0 0.0
      %2527 = vmatmul.mubr.f32.gmra.mrb[0].mxu0 %v1727
      %v2528 = vpop.f32.mrb[0].mxu0
      %v2529 = vadd.f32 %v2344, %v2528
      %v2530 = vpop.f32.mrb[0].mxu0
      %2531 = vmatprep.mubr.f32.mxu0 0.0
      %2532 = vmatmul.mubr.f32.gmra.mrb[0].mxu0 %v1730
      %v2533 = vpop.f32.mrb[0].mxu0
      %v2534 = vadd.f32 %v2349, %v2533
      %v2535 = vpop.f32.mrb[0].mxu0
      %2536 = vmatprep.mubr.f32.mxu0 0.0
      %2537 = vmatmul.mubr.f32.gmra.mrb[0].mxu0 %v1733
      %v2538 = vpop.f32.mrb[0].mxu0
      %v2539 = vadd.f32 %v2354, %v2538
      %v2540 = vpop.f32.mrb[0].mxu0
      %2541 = vmatprep.mubr.f32.mxu0 0.0
      %2542 = vmatmul.mubr.f32.gmra.mrb[0].mxu0 %v1736
      %v2543 = vpop.f32.mrb[0].mxu0
      %v2544 = vadd.f32 %v2359, %v2543
      %v2545 = vpop.f32.mrb[0].mxu0
      %2546 = vmatprep.mubr.f32.mxu0 0.0
      %2547 = vmatmul.mubr.f32.gmra.mrb[0].mxu0 %v1739
      %v2548 = vpop.f32.mrb[0].mxu0
      %v2549 = vadd.f32 %v2364, %v2548
      %v2550 = vpop.f32.mrb[0].mxu0
      %2551 = vmatprep.mubr.f32.mxu0 0.0
      %2552 = vmatmul.mubr.f32.gmra.mrb[0].mxu0 %v1742
      %v2553 = vpop.f32.mrb[0].mxu0
      %v2554 = vadd.f32 %v2369, %v2553
      %v2555 = vpop.f32.mrb[0].mxu0
      %2556 = vmatprep.mubr.f32.mxu0 0.0
      %2557 = vmatmul.mubr.f32.gmra.mrb[0].mxu0 %v1745
      %v2558 = vpop.f32.mrb[0].mxu0
      %v2559 = vadd.f32 %v2374, %v2558
      %v2560 = vpop.f32.mrb[0].mxu0
      %2561 = vmatprep.mubr.f32.mxu0 0.0
      %2562 = vmatmul.mubr.f32.gmra.mrb[0].mxu0 %v1748
      %v2563 = vpop.f32.mrb[0].mxu0
      %v2564 = vadd.f32 %v2379, %v2563
      %v2565 = vpop.f32.mrb[0].mxu0
      %2566 = vmatprep.mubr.f32.mxu0 0.0
      %2567 = vmatmul.mubr.f32.gmra.mrb[0].mxu0 %v1751
      %v2568 = vpop.f32.mrb[0].mxu0
      %v2569 = vadd.f32 %v2384, %v2568
      %v2570 = vpop.f32.mrb[0].mxu0
      %2571 = vmatprep.mubr.f32.mxu0 0.0
      %2572 = vmatmul.mubr.f32.gmra.mrb[0].mxu0 %v1754
      %v2573 = vpop.f32.mrb[0].mxu0
      %v2574 = vadd.f32 %v2389, %v2573
      %v2575 = vpop.f32.mrb[0].mxu0
      %2576 = vmatprep.mubr.f32.mxu0 0.0
      %2577 = vmatmul.mubr.f32.gmra.mrb[0].mxu0 %v1757
      %v2578 = vpop.f32.mrb[0].mxu0
      %v2579 = vadd.f32 %v2394, %v2578
      %v2580 = vpop.f32.mrb[0].mxu0
      %2581 = vmatprep.mubr.f32.mxu0 0.0
      %2582 = vmatmul.mubr.f32.gmra.mrb[0].mxu0 %v1760
      %v2583 = vpop.f32.mrb[0].mxu0
      %v2584 = vadd.f32 %v2399, %v2583
      %v2585 = vpop.f32.mrb[0].mxu0
      %2586 = vmatprep.mubr.f32.mxu0 0.0
      %2587 = vmatmul.mubr.f32.gmra.mrb[0].mxu0 %v1763
      %v2588 = vpop.f32.mrb[0].mxu0
      %v2589 = vadd.f32 %v2404, %v2588
      %v2590 = vpop.f32.mrb[0].mxu0
      %2591 = vmatprep.mubr.f32.mxu0 0.0
      %2592 = vmatmul.mubr.f32.gmra.mrb[0].mxu0 %v1766
      %v2593 = vpop.f32.mrb[0].mxu0
      %v2594 = vadd.f32 %v2409, %v2593
      %v2595 = vpop.f32.mrb[0].mxu0
      %2596 = vmatprep.mubr.f32.mxu0 0.0
      %2597 = vmatmul.mubr.f32.gmra.mrb[0].mxu0 %v1769
      %v2598 = vpop.f32.mrb[0].mxu0
      %v2599 = vadd.f32 %v2414, %v2598
      %v2600 = vpop.f32.mrb[0].mxu0
      %2601 = vmatprep.mubr.f32.mxu0 0.0
      %2602 = vmatmul.mubr.f32.gmra.mrb[0].mxu0 %v1772
      %v2603 = vpop.f32.mrb[0].mxu0
      %v2604 = vadd.f32 %v2419, %v2603
      %v2605 = vpop.f32.mrb[0].mxu0
      %2606 = vmatprep.mubr.f32.mxu0 0.0
      %2607 = vmatmul.mubr.f32.gmra.mrb[0].mxu0 %v1775
      %v2608 = vpop.f32.mrb[0].mxu0
      %v2609 = vadd.f32 %v2424, %v2608
      %v2610 = vpop.f32.mrb[0].mxu0
      %2611 = vmatprep.mubr.f32.mxu0 0.0
      %2612 = vmatmul.mubr.f32.gmra.mrb[0].mxu0 %v1778
      %v2613 = vpop.f32.mrb[0].mxu0
      %v2614 = vadd.f32 %v2429, %v2613
      %v2615 = vpop.f32.mrb[0].mxu0
      %2616 = vmatprep.mubr.f32.mxu0 0.0
      %2617 = vmatmul.mubr.f32.gmra.mrb[0].mxu0 %v1781
      %v2618 = vpop.f32.mrb[0].mxu0
      %v2619 = vadd.f32 %v2434, %v2618
      %v2620 = vpop.f32.mrb[0].mxu0
      %2621 = vmatprep.mubr.f32.mxu0 0.0
      %2622 = vmatmul.mubr.f32.gmra.mrb[0].mxu0 %v1784
      %v2623 = vpop.f32.mrb[0].mxu0
      %v2624 = vadd.f32 %v2439, %v2623
      %v2625 = vpop.f32.mrb[0].mxu0
      %2626 = vmatprep.mubr.f32.mxu0 0.0
      %2627 = vmatmul.mubr.f32.gmra.mrb[0].mxu0 %v1787
      %v2628 = vpop.f32.mrb[0].mxu0
      %v2629 = vadd.f32 %v2444, %v2628
      %v2630 = vpop.f32.mrb[0].mxu0
      %2631 = vmatprep.mubr.f32.mxu0 0.0
      %2632 = vmatmul.mubr.f32.gmra.mrb[0].mxu0 %v1790
      %v2633 = vpop.f32.mrb[0].mxu0
      %v2634 = vadd.f32 %v2449, %v2633
      %v2635 = vpop.f32.mrb[0].mxu0
      %2636 = vdwg.mxu0
      %v2637 = vld [vmem:[#allocation2 + $0x60] sm:$0xff]
      %v2638 = vld [vmem:[#allocation2 + $0x68] sm:$0xff]
      %v2639 = vld [vmem:[#allocation2 + $0x70] sm:$0xff]
      %v2640 = vld [vmem:[#allocation2 + $0x78] sm:$0xff]
      %v2641 = vld [vmem:[#allocation2 + $0x80] sm:$0xff]
      %v2642 = vld [vmem:[#allocation2 + $0x88] sm:$0xff]
      %v2643 = vld [vmem:[#allocation2 + $0x90] sm:$0xff]
      %v2644 = vld [vmem:[#allocation2 + $0x98] sm:$0xff]
      %v2645 = vld [vmem:[#allocation2 + $0xa0] sm:$0xff]
      %v2646 = vld [vmem:[#allocation2 + $0xa8] sm:$0xff]
      %v2647 = vld [vmem:[#allocation2 + $0xb0] sm:$0xff]
      %v2648 = vld [vmem:[#allocation2 + $0xb8] sm:$0xff]
      %v2649 = vld [vmem:[#allocation2 + $0xc0] sm:$0xff]
      %v2650 = vld [vmem:[#allocation2 + $0xc8] sm:$0xff]
      %v2651 = vld [vmem:[#allocation2 + $0xd0] sm:$0xff]
      %v2652 = vld [vmem:[#allocation2 + $0xd8] sm:$0xff]
      %v2653 = vld [vmem:[#allocation2 + $0xe0] sm:$0xff]
      %v2654 = vld [vmem:[#allocation2 + $0xe8] sm:$0xff]
      %v2655 = vld [vmem:[#allocation2 + $0xf0] sm:$0xff]
      %v2656 = vld [vmem:[#allocation2 + $0xf8] sm:$0xff]
      %v2657 = vld [vmem:[#allocation2 + $0x100] sm:$0xff]
      %v2658 = vld [vmem:[#allocation2 + $0x108] sm:$0xff]
      %v2659 = vld [vmem:[#allocation2 + $0x110] sm:$0xff]
      %v2660 = vld [vmem:[#allocation2 + $0x118] sm:$0xff]
      %v2661 = vld [vmem:[#allocation2 + $0x120] sm:$0xff]
      %v2662 = vld [vmem:[#allocation2 + $0x128] sm:$0xff]
      %v2663 = vld [vmem:[#allocation2 + $0x130] sm:$0xff]
      %v2664 = vld [vmem:[#allocation2 + $0x138] sm:$0xff]
      %v2665 = vld [vmem:[#allocation2 + $0x140] sm:$0xff]
      %v2666 = vld [vmem:[#allocation2 + $0x148] sm:$0xff]
      %v2667 = vld [vmem:[#allocation2 + $0x150] sm:$0xff]
      %v2668 = vld [vmem:[#allocation2 + $0x158] sm:$0xff]
      %v2669 = vld [vmem:[#allocation2 + $0x160] sm:$0xff]
      %v2670 = vld [vmem:[#allocation2 + $0x168] sm:$0xff]
      %v2671 = vld [vmem:[#allocation2 + $0x170] sm:$0xff]
      %v2672 = vld [vmem:[#allocation2 + $0x178] sm:$0xff]
      %v2673 = vld [vmem:[#allocation2 + $0x180] sm:$0xff]
      %v2674 = vld [vmem:[#allocation2 + $0x188] sm:$0xff]
      %v2675 = vld [vmem:[#allocation2 + $0x190] sm:$0xff]
      %v2676 = vld [vmem:[#allocation2 + $0x198] sm:$0xff]
      %v2677 = vld [vmem:[#allocation2 + $0x1a0] sm:$0xff]
      %v2678 = vld [vmem:[#allocation2 + $0x1a8] sm:$0xff]
      %v2679 = vld [vmem:[#allocation2 + $0x1b0] sm:$0xff]
      %v2680 = vld [vmem:[#allocation2 + $0x1b8] sm:$0xff]
      %v2681 = vld [vmem:[#allocation2 + $0x1c0] sm:$0xff]
      %v2682 = vld [vmem:[#allocation2 + $0x1c8] sm:$0xff]
      %v2683 = vld [vmem:[#allocation2 + $0x1d0] sm:$0xff]
      %v2684 = vld [vmem:[#allocation2 + $0x1d8] sm:$0xff]
      %v2685 = vld [vmem:[#allocation2 + $0x1e0] sm:$0xff]
      %v2686 = vld [vmem:[#allocation2 + $0x1e8] sm:$0xff]
      %v2687 = vld [vmem:[#allocation2 + $0x1f0] sm:$0xff]
      %v2688 = vld [vmem:[#allocation2 + $0x1f8] sm:$0xff]
      %v2689 = vld [vmem:[#allocation2 + $0x200] sm:$0xff]
      %v2690 = vld [vmem:[#allocation2 + $0x208] sm:$0xff]
      %v2691 = vld [vmem:[#allocation2 + $0x210] sm:$0xff]
      %v2692 = vld [vmem:[#allocation2 + $0x218] sm:$0xff]
      %v2693 = vld [vmem:[#allocation2 + $0x220] sm:$0xff]
      %v2694 = vld [vmem:[#allocation2 + $0x228] sm:$0xff]
      %v2695 = vld [vmem:[#allocation2 + $0x230] sm:$0xff]
      %v2696 = vld [vmem:[#allocation2 + $0x238] sm:$0xff]
      %v2697 = vld [vmem:[#allocation2 + $0x240] sm:$0xff]
      %v2698 = vld [vmem:[#allocation2 + $0x248] sm:$0xff]
      %v2699 = vld [vmem:[#allocation2 + $0x250] sm:$0xff]
      %v2700 = vld [vmem:[#allocation2 + $0x258] sm:$0xff]
      %v2701 = vld [vmem:[#allocation2 + $0x260] sm:$0xff]
      %v2702 = vld [vmem:[#allocation2 + $0x268] sm:$0xff]
      %v2703 = vld [vmem:[#allocation2 + $0x270] sm:$0xff]
      %v2704 = vld [vmem:[#allocation2 + $0x278] sm:$0xff]
      %v2705 = vld [vmem:[#allocation2 + $0x280] sm:$0xff]
      %v2706 = vld [vmem:[#allocation2 + $0x288] sm:$0xf]
      %v2707 = vld [vmem:[#allocation2 + $0x290] sm:$0xf]
      %v2708 = vld [vmem:[#allocation2 + $0x298] sm:$0xf]
      %s2709 = scalar_lea.vmem %s2, 768
      %v2710 = vld [vmem:[%s2709] sm:$0xff]
      %v2711 = vld [vmem:[%s2709 + $0x8] sm:$0xff]
      %v2712 = vld [vmem:[%s2709 + $0x10] sm:$0xff]
      %v2713 = vld [vmem:[%s2709 + $0x18] sm:$0xff]
      %v2714 = vld [vmem:[%s2709 + $0x20] sm:$0xff]
      %v2715 = vld [vmem:[%s2709 + $0x28] sm:$0xff]
      %v2716 = vld [vmem:[%s2709 + $0x30] sm:$0xff]
      %v2717 = vld [vmem:[%s2709 + $0x38] sm:$0xff]
      %v2718 = vld [vmem:[%s2709 + $0x40] sm:$0xff]
      %v2719 = vld [vmem:[%s2709 + $0x48] sm:$0xff]
      %v2720 = vld [vmem:[%s2709 + $0x50] sm:$0xff]
      %v2721 = vld [vmem:[%s2709 + $0x58] sm:$0xff]
      %v2722 = vld [vmem:[%s2709 + $0x60] sm:$0xff]
      %v2723 = vld [vmem:[%s2709 + $0x68] sm:$0xff]
      %v2724 = vld [vmem:[%s2709 + $0x70] sm:$0xff]
      %v2725 = vld [vmem:[%s2709 + $0x78] sm:$0xff]
      %v2726 = vld [vmem:[%s2709 + $0x80] sm:$0xff]
      %v2727 = vld [vmem:[%s2709 + $0x88] sm:$0xff]
      %v2728 = vld [vmem:[%s2709 + $0x90] sm:$0xff]
      %v2729 = vld [vmem:[%s2709 + $0x98] sm:$0xff]
      %v2730 = vld [vmem:[%s2709 + $0xa0] sm:$0xff]
      %v2731 = vld [vmem:[%s2709 + $0xa8] sm:$0xff]
      %v2732 = vld [vmem:[%s2709 + $0xb0] sm:$0xff]
      %v2733 = vld [vmem:[%s2709 + $0xb8] sm:$0xff]
      %v2734 = vld [vmem:[%s2709 + $0xc0] sm:$0xff]
      %v2735 = vld [vmem:[%s2709 + $0xc8] sm:$0xff]
      %v2736 = vld [vmem:[%s2709 + $0xd0] sm:$0xff]
      %v2737 = vld [vmem:[%s2709 + $0xd8] sm:$0xff]
      %v2738 = vld [vmem:[%s2709 + $0xe0] sm:$0xff]
      %v2739 = vld [vmem:[%s2709 + $0xe8] sm:$0xff]
      %v2740 = vld [vmem:[%s2709 + $0xf0] sm:$0xff]
      %v2741 = vld [vmem:[%s2709 + $0xf8] sm:$0xff]
      %v2742 = vld [vmem:[%s2709 + $0x100] sm:$0xff]
      %v2743 = vld [vmem:[%s2709 + $0x108] sm:$0xff]
      %v2744 = vld [vmem:[%s2709 + $0x110] sm:$0xff]
      %v2745 = vld [vmem:[%s2709 + $0x118] sm:$0xff]
      %v2746 = vld [vmem:[%s2709 + $0x120] sm:$0xff]
      %v2747 = vld [vmem:[%s2709 + $0x128] sm:$0xff]
      %v2748 = vld [vmem:[%s2709 + $0x130] sm:$0xff]
      %v2749 = vld [vmem:[%s2709 + $0x138] sm:$0xff]
      %v2750 = vld [vmem:[%s2709 + $0x140] sm:$0xff]
      %v2751 = vld [vmem:[%s2709 + $0x148] sm:$0xff]
      %v2752 = vld [vmem:[%s2709 + $0x150] sm:$0xff]
      %v2753 = vld [vmem:[%s2709 + $0x158] sm:$0xff]
      %v2754 = vld [vmem:[%s2709 + $0x160] sm:$0xff]
      %v2755 = vld [vmem:[%s2709 + $0x168] sm:$0xff]
      %v2756 = vld [vmem:[%s2709 + $0x170] sm:$0xff]
      %v2757 = vld [vmem:[%s2709 + $0x178] sm:$0xff]
      %2758 = vmatprep.subr.mxu0 0.0
      %2759 = vmatpush1.msra.mxu0 %v2710
      %2760 = vmatprep.subr.mxu0 0.0
      %2761 = vmatpush1.msra.mxu0 %v2711
      %2762 = vmatprep.subr.mxu0 0.0
      %2763 = vmatpush1.msra.mxu0 %v2712
      %2764 = vmatprep.subr.mxu0 0.0
      %2765 = vmatpush1.msra.mxu0 %v2713
      %2766 = vmatprep.subr.mxu0 0.0
      %2767 = vmatpush1.msra.mxu0 %v2714
      %2768 = vmatprep.subr.mxu0 0.0
      %2769 = vmatpush1.msra.mxu0 %v2715
      %2770 = vmatprep.subr.mxu0 0.0
      %2771 = vmatpush1.msra.mxu0 %v2716
      %2772 = vmatprep.subr.mxu0 0.0
      %2773 = vmatpush1.msra.mxu0 %v2717
      %2774 = vmatprep.subr.mxu0 0.0
      %2775 = vmatpush1.msra.mxu0 %v2718
      %2776 = vmatprep.subr.mxu0 0.0
      %2777 = vmatpush1.msra.mxu0 %v2719
      %2778 = vmatprep.subr.mxu0 0.0
      %2779 = vmatpush1.msra.mxu0 %v2720
      %2780 = vmatprep.subr.mxu0 0.0
      %2781 = vmatpush1.msra.mxu0 %v2721
      %2782 = vmatprep.subr.mxu0 0.0
      %2783 = vmatpush1.msra.mxu0 %v2722
      %2784 = vmatprep.subr.mxu0 0.0
      %2785 = vmatpush1.msra.mxu0 %v2723
      %2786 = vmatprep.subr.mxu0 0.0
      %2787 = vmatpush1.msra.mxu0 %v2724
      %2788 = vmatprep.subr.mxu0 0.0
      %2789 = vmatpush1.msra.mxu0 %v2725
      %2790 = vmatprep.subr.mxu0 0.0
      %2791 = vmatpush1.msra.mxu0 %v2726
      %2792 = vmatprep.subr.mxu0 0.0
      %2793 = vmatpush1.msra.mxu0 %v2727
      %2794 = vmatprep.subr.mxu0 0.0
      %2795 = vmatpush1.msra.mxu0 %v2728
      %2796 = vmatprep.subr.mxu0 0.0
      %2797 = vmatpush1.msra.mxu0 %v2729
      %2798 = vmatprep.subr.mxu0 0.0
      %2799 = vmatpush1.msra.mxu0 %v2730
      %2800 = vmatprep.subr.mxu0 0.0
      %2801 = vmatpush1.msra.mxu0 %v2731
      %2802 = vmatprep.subr.mxu0 0.0
      %2803 = vmatpush1.msra.mxu0 %v2732
      %2804 = vmatprep.subr.mxu0 0.0
      %2805 = vmatpush1.msra.mxu0 %v2733
      %2806 = vmatprep.subr.mxu0 0.0
      %2807 = vmatpush1.msra.mxu0 %v2734
      %2808 = vmatprep.subr.mxu0 0.0
      %2809 = vmatpush1.msra.mxu0 %v2735
      %2810 = vmatprep.subr.mxu0 0.0
      %2811 = vmatpush1.msra.mxu0 %v2736
      %2812 = vmatprep.subr.mxu0 0.0
      %2813 = vmatpush1.msra.mxu0 %v2737
      %2814 = vmatprep.subr.mxu0 0.0
      %2815 = vmatpush1.msra.mxu0 %v2738
      %2816 = vmatprep.subr.mxu0 0.0
      %2817 = vmatpush1.msra.mxu0 %v2739
      %2818 = vmatprep.subr.mxu0 0.0
      %2819 = vmatpush1.msra.mxu0 %v2740
      %2820 = vmatprep.subr.mxu0 0.0
      %2821 = vmatpush1.msra.mxu0 %v2741
      %2822 = vmatprep.mubr.f32.mxu0 %v2638
      %2823 = vmatmul.mubr.f32.gmra.mrb[0].mxu0 %v2637
      %v2824 = vpop.f32.mrb[0].mxu0
      %v2825 = vadd.f32 0.0, %v2824
      %v2826 = vpop.f32.mrb[0].mxu0
      %2827 = vmatprep.mubr.f32.mxu0 %v2641
      %2828 = vmatmul.mubr.f32.gmra.mrb[0].mxu0 %v2640
      %v2829 = vpop.f32.mrb[0].mxu0
      %v2830 = vadd.f32 0.0, %v2829
      %v2831 = vpop.f32.mrb[0].mxu0
      %2832 = vmatprep.mubr.f32.mxu0 %v2644
      %2833 = vmatmul.mubr.f32.gmra.mrb[0].mxu0 %v2643
      %v2834 = vpop.f32.mrb[0].mxu0
      %v2835 = vadd.f32 0.0, %v2834
      %v2836 = vpop.f32.mrb[0].mxu0
      %2837 = vmatprep.mubr.f32.mxu0 %v2647
      %2838 = vmatmul.mubr.f32.gmra.mrb[0].mxu0 %v2646
      %v2839 = vpop.f32.mrb[0].mxu0
      %v2840 = vadd.f32 0.0, %v2839
      %v2841 = vpop.f32.mrb[0].mxu0
      %2842 = vmatprep.mubr.f32.mxu0 %v2650
      %2843 = vmatmul.mubr.f32.gmra.mrb[0].mxu0 %v2649
      %v2844 = vpop.f32.mrb[0].mxu0
      %v2845 = vadd.f32 0.0, %v2844
      %v2846 = vpop.f32.mrb[0].mxu0
      %2847 = vmatprep.mubr.f32.mxu0 %v2653
      %2848 = vmatmul.mubr.f32.gmra.mrb[0].mxu0 %v2652
      %v2849 = vpop.f32.mrb[0].mxu0
      %v2850 = vadd.f32 0.0, %v2849
      %v2851 = vpop.f32.mrb[0].mxu0
      %2852 = vmatprep.mubr.f32.mxu0 %v2656
      %2853 = vmatmul.mubr.f32.gmra.mrb[0].mxu0 %v2655
      %v2854 = vpop.f32.mrb[0].mxu0
      %v2855 = vadd.f32 0.0, %v2854
      %v2856 = vpop.f32.mrb[0].mxu0
      %2857 = vmatprep.mubr.f32.mxu0 %v2659
      %2858 = vmatmul.mubr.f32.gmra.mrb[0].mxu0 %v2658
      %v2859 = vpop.f32.mrb[0].mxu0
      %v2860 = vadd.f32 0.0, %v2859
      %v2861 = vpop.f32.mrb[0].mxu0
      %2862 = vmatprep.mubr.f32.mxu0 %v2662
      %2863 = vmatmul.mubr.f32.gmra.mrb[0].mxu0 %v2661
      %v2864 = vpop.f32.mrb[0].mxu0
      %v2865 = vadd.f32 0.0, %v2864
      %v2866 = vpop.f32.mrb[0].mxu0
      %2867 = vmatprep.mubr.f32.mxu0 %v2665
      %2868 = vmatmul.mubr.f32.gmra.mrb[0].mxu0 %v2664
      %v2869 = vpop.f32.mrb[0].mxu0
      %v2870 = vadd.f32 0.0, %v2869
      %v2871 = vpop.f32.mrb[0].mxu0
      %2872 = vmatprep.mubr.f32.mxu0 %v2668
      %2873 = vmatmul.mubr.f32.gmra.mrb[0].mxu0 %v2667
      %v2874 = vpop.f32.mrb[0].mxu0
      %v2875 = vadd.f32 0.0, %v2874
      %v2876 = vpop.f32.mrb[0].mxu0
      %2877 = vmatprep.mubr.f32.mxu0 %v2671
      %2878 = vmatmul.mubr.f32.gmra.mrb[0].mxu0 %v2670
      %v2879 = vpop.f32.mrb[0].mxu0
      %v2880 = vadd.f32 0.0, %v2879
      %v2881 = vpop.f32.mrb[0].mxu0
      %2882 = vmatprep.mubr.f32.mxu0 %v2674
      %2883 = vmatmul.mubr.f32.gmra.mrb[0].mxu0 %v2673
      %v2884 = vpop.f32.mrb[0].mxu0
      %v2885 = vadd.f32 0.0, %v2884
      %v2886 = vpop.f32.mrb[0].mxu0
      %2887 = vmatprep.mubr.f32.mxu0 %v2677
      %2888 = vmatmul.mubr.f32.gmra.mrb[0].mxu0 %v2676
      %v2889 = vpop.f32.mrb[0].mxu0
      %v2890 = vadd.f32 0.0, %v2889
      %v2891 = vpop.f32.mrb[0].mxu0
      %2892 = vmatprep.mubr.f32.mxu0 %v2680
      %2893 = vmatmul.mubr.f32.gmra.mrb[0].mxu0 %v2679
      %v2894 = vpop.f32.mrb[0].mxu0
      %v2895 = vadd.f32 0.0, %v2894
      %v2896 = vpop.f32.mrb[0].mxu0
      %2897 = vmatprep.mubr.f32.mxu0 %v2683
      %2898 = vmatmul.mubr.f32.gmra.mrb[0].mxu0 %v2682
      %v2899 = vpop.f32.mrb[0].mxu0
      %v2900 = vadd.f32 0.0, %v2899
      %v2901 = vpop.f32.mrb[0].mxu0
      %2902 = vmatprep.mubr.f32.mxu0 %v2686
      %2903 = vmatmul.mubr.f32.gmra.mrb[0].mxu0 %v2685
      %v2904 = vpop.f32.mrb[0].mxu0
      %v2905 = vadd.f32 0.0, %v2904
      %v2906 = vpop.f32.mrb[0].mxu0
      %2907 = vmatprep.mubr.f32.mxu0 %v2689
      %2908 = vmatmul.mubr.f32.gmra.mrb[0].mxu0 %v2688
      %v2909 = vpop.f32.mrb[0].mxu0
      %v2910 = vadd.f32 0.0, %v2909
      %v2911 = vpop.f32.mrb[0].mxu0
      %2912 = vmatprep.mubr.f32.mxu0 %v2692
      %2913 = vmatmul.mubr.f32.gmra.mrb[0].mxu0 %v2691
      %v2914 = vpop.f32.mrb[0].mxu0
      %v2915 = vadd.f32 0.0, %v2914
      %v2916 = vpop.f32.mrb[0].mxu0
      %2917 = vmatprep.mubr.f32.mxu0 %v2695
      %2918 = vmatmul.mubr.f32.gmra.mrb[0].mxu0 %v2694
      %v2919 = vpop.f32.mrb[0].mxu0
      %v2920 = vadd.f32 0.0, %v2919
      %v2921 = vpop.f32.mrb[0].mxu0
      %2922 = vmatprep.mubr.f32.mxu0 %v2698
      %2923 = vmatmul.mubr.f32.gmra.mrb[0].mxu0 %v2697
      %v2924 = vpop.f32.mrb[0].mxu0
      %v2925 = vadd.f32 0.0, %v2924
      %v2926 = vpop.f32.mrb[0].mxu0
      %2927 = vmatprep.mubr.f32.mxu0 %v2701
      %2928 = vmatmul.mubr.f32.gmra.mrb[0].mxu0 %v2700
      %v2929 = vpop.f32.mrb[0].mxu0
      %v2930 = vadd.f32 0.0, %v2929
      %v2931 = vpop.f32.mrb[0].mxu0
      %2932 = vmatprep.mubr.f32.mxu0 %v2704
      %2933 = vmatmul.mubr.f32.gmra.mrb[0].mxu0 %v2703
      %v2934 = vpop.f32.mrb[0].mxu0
      %v2935 = vadd.f32 0.0, %v2934
      %v2936 = vpop.f32.mrb[0].mxu0
      %2937 = vmatprep.mubr.f32.mxu0 %v2707
      %2938 = vmatmul.mubr.f32.gmra.mrb[0].mxu0 %v2706
      %v2939 = vpop.f32.mrb[0].mxu0
      %v2940 = vadd.f32 0.0, %v2939
      %v2941 = vpop.f32.mrb[0].mxu0
      %2942 = vdwg.mxu0
      %2943 = vmatprep.subr.mxu0 0.0
      %2944 = vmatpush1.msra.mxu0 %v2742
      %2945 = vmatprep.subr.mxu0 0.0
      %2946 = vmatpush1.msra.mxu0 %v2743
      %2947 = vmatprep.subr.mxu0 0.0
      %2948 = vmatpush1.msra.mxu0 %v2744
      %2949 = vmatprep.subr.mxu0 0.0
      %2950 = vmatpush1.msra.mxu0 %v2745
      %2951 = vmatprep.subr.mxu0 0.0
      %2952 = vmatpush1.msra.mxu0 %v2746
      %2953 = vmatprep.subr.mxu0 0.0
      %2954 = vmatpush1.msra.mxu0 %v2747
      %2955 = vmatprep.subr.mxu0 0.0
      %2956 = vmatpush1.msra.mxu0 %v2748
      %2957 = vmatprep.subr.mxu0 0.0
      %2958 = vmatpush1.msra.mxu0 %v2749
      %2959 = vmatprep.subr.mxu0 0.0
      %2960 = vmatpush1.msra.mxu0 %v2750
      %2961 = vmatprep.subr.mxu0 0.0
      %2962 = vmatpush1.msra.mxu0 %v2751
      %2963 = vmatprep.subr.mxu0 0.0
      %2964 = vmatpush1.msra.mxu0 %v2752
      %2965 = vmatprep.subr.mxu0 0.0
      %2966 = vmatpush1.msra.mxu0 %v2753
      %2967 = vmatprep.subr.mxu0 0.0
      %2968 = vmatpush1.msra.mxu0 %v2754
      %2969 = vmatprep.subr.mxu0 0.0
      %2970 = vmatpush1.msra.mxu0 %v2755
      %2971 = vmatprep.subr.mxu0 0.0
      %2972 = vmatpush1.msra.mxu0 %v2756
      %2973 = vmatprep.subr.mxu0 0.0
      %2974 = vmatpush1.msra.mxu0 %v2757
      %2975 = vmatprep.subr.mxu0 0.0
      %2976 = vmatpush1.msra.mxu0 0.0
      %2977 = vmatprep.subr.mxu0 0.0
      %2978 = vmatpush1.msra.mxu0 0.0
      %2979 = vmatprep.subr.mxu0 0.0
      %2980 = vmatpush1.msra.mxu0 0.0
      %2981 = vmatprep.subr.mxu0 0.0
      %2982 = vmatpush1.msra.mxu0 0.0
      %2983 = vmatprep.subr.mxu0 0.0
      %2984 = vmatpush1.msra.mxu0 0.0
      %2985 = vmatprep.subr.mxu0 0.0
      %2986 = vmatpush1.msra.mxu0 0.0
      %2987 = vmatprep.subr.mxu0 0.0
      %2988 = vmatpush1.msra.mxu0 0.0
      %2989 = vmatprep.subr.mxu0 0.0
      %2990 = vmatpush1.msra.mxu0 0.0
      %2991 = vmatprep.subr.mxu0 0.0
      %2992 = vmatpush1.msra.mxu0 0.0
      %2993 = vmatprep.subr.mxu0 0.0
      %2994 = vmatpush1.msra.mxu0 0.0
      %2995 = vmatprep.subr.mxu0 0.0
      %2996 = vmatpush1.msra.mxu0 0.0
      %2997 = vmatprep.subr.mxu0 0.0
      %2998 = vmatpush1.msra.mxu0 0.0
      %2999 = vmatprep.subr.mxu0 0.0
      %3000 = vmatpush1.msra.mxu0 0.0
      %3001 = vmatprep.subr.mxu0 0.0
      %3002 = vmatpush1.msra.mxu0 0.0
      %3003 = vmatprep.subr.mxu0 0.0
      %3004 = vmatpush1.msra.mxu0 0.0
      %3005 = vmatprep.subr.mxu0 0.0
      %3006 = vmatpush1.msra.mxu0 0.0
      %3007 = vmatprep.mubr.f32.mxu0 0.0
      %3008 = vmatmul.mubr.f32.gmra.mrb[0].mxu0 %v2639
      %v3009 = vpop.f32.mrb[0].mxu0
      %v3010 = vadd.f32 %v2825, %v3009
      %v3011 = vpop.f32.mrb[0].mxu0
      %3012 = vmatprep.mubr.f32.mxu0 0.0
      %3013 = vmatmul.mubr.f32.gmra.mrb[0].mxu0 %v2642
      %v3014 = vpop.f32.mrb[0].mxu0
      %v3015 = vadd.f32 %v2830, %v3014
      %v3016 = vpop.f32.mrb[0].mxu0
      %3017 = vmatprep.mubr.f32.mxu0 0.0
      %3018 = vmatmul.mubr.f32.gmra.mrb[0].mxu0 %v2645
      %v3019 = vpop.f32.mrb[0].mxu0
      %v3020 = vadd.f32 %v2835, %v3019
      %v3021 = vpop.f32.mrb[0].mxu0
      %3022 = vmatprep.mubr.f32.mxu0 0.0
      %3023 = vmatmul.mubr.f32.gmra.mrb[0].mxu0 %v2648
      %v3024 = vpop.f32.mrb[0].mxu0
      %v3025 = vadd.f32 %v2840, %v3024
      %v3026 = vpop.f32.mrb[0].mxu0
      %3027 = vmatprep.mubr.f32.mxu0 0.0
      %3028 = vmatmul.mubr.f32.gmra.mrb[0].mxu0 %v2651
      %v3029 = vpop.f32.mrb[0].mxu0
      %v3030 = vadd.f32 %v2845, %v3029
      %v3031 = vpop.f32.mrb[0].mxu0
      %3032 = vmatprep.mubr.f32.mxu0 0.0
      %3033 = vmatmul.mubr.f32.gmra.mrb[0].mxu0 %v2654
      %v3034 = vpop.f32.mrb[0].mxu0
      %v3035 = vadd.f32 %v2850, %v3034
      %v3036 = vpop.f32.mrb[0].mxu0
      %3037 = vmatprep.mubr.f32.mxu0 0.0
      %3038 = vmatmul.mubr.f32.gmra.mrb[0].mxu0 %v2657
      %v3039 = vpop.f32.mrb[0].mxu0
      %v3040 = vadd.f32 %v2855, %v3039
      %v3041 = vpop.f32.mrb[0].mxu0
      %3042 = vmatprep.mubr.f32.mxu0 0.0
      %3043 = vmatmul.mubr.f32.gmra.mrb[0].mxu0 %v2660
      %v3044 = vpop.f32.mrb[0].mxu0
      %v3045 = vadd.f32 %v2860, %v3044
      %v3046 = vpop.f32.mrb[0].mxu0
      %3047 = vmatprep.mubr.f32.mxu0 0.0
      %3048 = vmatmul.mubr.f32.gmra.mrb[0].mxu0 %v2663
      %v3049 = vpop.f32.mrb[0].mxu0
      %v3050 = vadd.f32 %v2865, %v3049
      %v3051 = vpop.f32.mrb[0].mxu0
      %3052 = vmatprep.mubr.f32.mxu0 0.0
      %3053 = vmatmul.mubr.f32.gmra.mrb[0].mxu0 %v2666
      %v3054 = vpop.f32.mrb[0].mxu0
      %v3055 = vadd.f32 %v2870, %v3054
      %v3056 = vpop.f32.mrb[0].mxu0
      %3057 = vmatprep.mubr.f32.mxu0 0.0
      %3058 = vmatmul.mubr.f32.gmra.mrb[0].mxu0 %v2669
      %v3059 = vpop.f32.mrb[0].mxu0
      %v3060 = vadd.f32 %v2875, %v3059
      %v3061 = vpop.f32.mrb[0].mxu0
      %3062 = vmatprep.mubr.f32.mxu0 0.0
      %3063 = vmatmul.mubr.f32.gmra.mrb[0].mxu0 %v2672
      %v3064 = vpop.f32.mrb[0].mxu0
      %v3065 = vadd.f32 %v2880, %v3064
      %v3066 = vpop.f32.mrb[0].mxu0
      %3067 = vmatprep.mubr.f32.mxu0 0.0
      %3068 = vmatmul.mubr.f32.gmra.mrb[0].mxu0 %v2675
      %v3069 = vpop.f32.mrb[0].mxu0
      %v3070 = vadd.f32 %v2885, %v3069
      %v3071 = vpop.f32.mrb[0].mxu0
      %3072 = vmatprep.mubr.f32.mxu0 0.0
      %3073 = vmatmul.mubr.f32.gmra.mrb[0].mxu0 %v2678
      %v3074 = vpop.f32.mrb[0].mxu0
      %v3075 = vadd.f32 %v2890, %v3074
      %v3076 = vpop.f32.mrb[0].mxu0
      %3077 = vmatprep.mubr.f32.mxu0 0.0
      %3078 = vmatmul.mubr.f32.gmra.mrb[0].mxu0 %v2681
      %v3079 = vpop.f32.mrb[0].mxu0
      %v3080 = vadd.f32 %v2895, %v3079
      %v3081 = vpop.f32.mrb[0].mxu0
      %3082 = vmatprep.mubr.f32.mxu0 0.0
      %3083 = vmatmul.mubr.f32.gmra.mrb[0].mxu0 %v2684
      %v3084 = vpop.f32.mrb[0].mxu0
      %v3085 = vadd.f32 %v2900, %v3084
      %v3086 = vpop.f32.mrb[0].mxu0
      %3087 = vmatprep.mubr.f32.mxu0 0.0
      %3088 = vmatmul.mubr.f32.gmra.mrb[0].mxu0 %v2687
      %v3089 = vpop.f32.mrb[0].mxu0
      %v3090 = vadd.f32 %v2905, %v3089
      %v3091 = vpop.f32.mrb[0].mxu0
      %3092 = vmatprep.mubr.f32.mxu0 0.0
      %3093 = vmatmul.mubr.f32.gmra.mrb[0].mxu0 %v2690
      %v3094 = vpop.f32.mrb[0].mxu0
      %v3095 = vadd.f32 %v2910, %v3094
      %v3096 = vpop.f32.mrb[0].mxu0
      %3097 = vmatprep.mubr.f32.mxu0 0.0
      %3098 = vmatmul.mubr.f32.gmra.mrb[0].mxu0 %v2693
      %v3099 = vpop.f32.mrb[0].mxu0
      %v3100 = vadd.f32 %v2915, %v3099
      %v3101 = vpop.f32.mrb[0].mxu0
      %3102 = vmatprep.mubr.f32.mxu0 0.0
      %3103 = vmatmul.mubr.f32.gmra.mrb[0].mxu0 %v2696
      %v3104 = vpop.f32.mrb[0].mxu0
      %v3105 = vadd.f32 %v2920, %v3104
      %v3106 = vpop.f32.mrb[0].mxu0
      %3107 = vmatprep.mubr.f32.mxu0 0.0
      %3108 = vmatmul.mubr.f32.gmra.mrb[0].mxu0 %v2699
      %v3109 = vpop.f32.mrb[0].mxu0
      %v3110 = vadd.f32 %v2925, %v3109
      %v3111 = vpop.f32.mrb[0].mxu0
      %3112 = vmatprep.mubr.f32.mxu0 0.0
      %3113 = vmatmul.mubr.f32.gmra.mrb[0].mxu0 %v2702
      %v3114 = vpop.f32.mrb[0].mxu0
      %v3115 = vadd.f32 %v2930, %v3114
      %v3116 = vpop.f32.mrb[0].mxu0
      %3117 = vmatprep.mubr.f32.mxu0 0.0
      %3118 = vmatmul.mubr.f32.gmra.mrb[0].mxu0 %v2705
      %v3119 = vpop.f32.mrb[0].mxu0
      %v3120 = vadd.f32 %v2935, %v3119
      %v3121 = vpop.f32.mrb[0].mxu0
      %3122 = vmatprep.mubr.f32.mxu0 0.0
      %3123 = vmatmul.mubr.f32.gmra.mrb[0].mxu0 %v2708
      %v3124 = vpop.f32.mrb[0].mxu0
      %v3125 = vadd.f32 %v2940, %v3124
      %v3126 = vpop.f32.mrb[0].mxu0
      %3127 = vdwg.mxu0
      %v3128 = vadd.f32 %v2519, %v3010
      %v3129 = vadd.f32 %v2524, %v3015
      %v3130 = vadd.f32 %v2529, %v3020
      %v3131 = vadd.f32 %v2534, %v3025
      %v3132 = vadd.f32 %v2539, %v3030
      %v3133 = vadd.f32 %v2544, %v3035
      %v3134 = vadd.f32 %v2549, %v3040
      %v3135 = vadd.f32 %v2554, %v3045
      %v3136 = vadd.f32 %v2559, %v3050
      %v3137 = vadd.f32 %v2564, %v3055
      %v3138 = vadd.f32 %v2569, %v3060
      %v3139 = vadd.f32 %v2574, %v3065
      %v3140 = vadd.f32 %v2579, %v3070
      %v3141 = vadd.f32 %v2584, %v3075
      %v3142 = vadd.f32 %v2589, %v3080
      %v3143 = vadd.f32 %v2594, %v3085
      %v3144 = vadd.f32 %v2599, %v3090
      %v3145 = vadd.f32 %v2604, %v3095
      %v3146 = vadd.f32 %v2609, %v3100
      %v3147 = vadd.f32 %v2614, %v3105
      %v3148 = vadd.f32 %v2619, %v3110
      %v3149 = vadd.f32 %v2624, %v3115
      %v3150 = vadd.f32 %v2629, %v3120
      %v3151 = vadd.f32 %v2634, %v3125
      %v3152 = vld [vmem:[%s4] sm:$0x1]
      %v3154 = vlaneseq
      %v3155 = vshrl.u32 %v3154, 7
      %v3156 = vsub.s32 0, %v3155
      %v3157 = vrot.slane %v3152, %v3156
      %v3159 = vadd.f32 %v3128, %v3157
      %v3160 = vadd.f32 %v3129, %v3157
      %v3161 = vadd.f32 %v3130, %v3157
      %v3162 = vadd.f32 %v3131, %v3157
      %v3163 = vadd.f32 %v3132, %v3157
      %v3164 = vadd.f32 %v3133, %v3157
      %v3165 = vadd.f32 %v3134, %v3157
      %v3166 = vadd.f32 %v3135, %v3157
      %v3167 = vadd.f32 %v3136, %v3157
      %v3168 = vadd.f32 %v3137, %v3157
      %v3169 = vadd.f32 %v3138, %v3157
      %v3170 = vadd.f32 %v3139, %v3157
      %v3171 = vadd.f32 %v3140, %v3157
      %v3172 = vadd.f32 %v3141, %v3157
      %v3173 = vadd.f32 %v3142, %v3157
      %v3174 = vadd.f32 %v3143, %v3157
      %v3175 = vadd.f32 %v3144, %v3157
      %v3176 = vadd.f32 %v3145, %v3157
      %v3177 = vadd.f32 %v3146, %v3157
      %v3178 = vadd.f32 %v3147, %v3157
      %v3179 = vadd.f32 %v3148, %v3157
      %v3180 = vadd.f32 %v3149, %v3157
      %v3181 = vadd.f32 %v3150, %v3157
      %v3182 = vadd.f32 %v3151, %v3157
      %v3183 = vmax.f32 %v3159, 0.0
      %v3184 = vmax.f32 %v3160, 0.0
      %v3185 = vmax.f32 %v3161, 0.0
      %v3186 = vmax.f32 %v3162, 0.0
      %v3187 = vmax.f32 %v3163, 0.0
      %v3188 = vmax.f32 %v3164, 0.0
      %v3189 = vmax.f32 %v3165, 0.0
      %v3190 = vmax.f32 %v3166, 0.0
      %v3191 = vmax.f32 %v3167, 0.0
      %v3192 = vmax.f32 %v3168, 0.0
      %v3193 = vmax.f32 %v3169, 0.0
      %v3194 = vmax.f32 %v3170, 0.0
      %v3195 = vmax.f32 %v3171, 0.0
      %v3196 = vmax.f32 %v3172, 0.0
      %v3197 = vmax.f32 %v3173, 0.0
      %v3198 = vmax.f32 %v3174, 0.0
      %v3199 = vmax.f32 %v3175, 0.0
      %v3200 = vmax.f32 %v3176, 0.0
      %v3201 = vmax.f32 %v3177, 0.0
      %v3202 = vmax.f32 %v3178, 0.0
      %v3203 = vmax.f32 %v3179, 0.0
      %v3204 = vmax.f32 %v3180, 0.0
      %v3205 = vmax.f32 %v3181, 0.0
      %v3206 = vmax.f32 %v3182, 0.0
      %3207 = vst [vmem:[#allocation3] sm:$0xff] %v3183
      %3208 = vst [vmem:[#allocation3 + $0x8] sm:$0xff] %v3184
      %3209 = vst [vmem:[#allocation3 + $0x10] sm:$0xff] %v3185
      %3210 = vst [vmem:[#allocation3 + $0x18] sm:$0xff] %v3186
      %3211 = vst [vmem:[#allocation3 + $0x20] sm:$0xff] %v3187
      %3212 = vst [vmem:[#allocation3 + $0x28] sm:$0xff] %v3188
      %3213 = vst [vmem:[#allocation3 + $0x30] sm:$0xff] %v3189
      %3214 = vst [vmem:[#allocation3 + $0x38] sm:$0xff] %v3190
      %3215 = vst [vmem:[#allocation3 + $0x40] sm:$0xff] %v3191
      %3216 = vst [vmem:[#allocation3 + $0x48] sm:$0xff] %v3192
      %3217 = vst [vmem:[#allocation3 + $0x50] sm:$0xff] %v3193
      %3218 = vst [vmem:[#allocation3 + $0x58] sm:$0xff] %v3194
      %3219 = vst [vmem:[#allocation3 + $0x60] sm:$0xff] %v3195
      %3220 = vst [vmem:[#allocation3 + $0x68] sm:$0xff] %v3196
      %3221 = vst [vmem:[#allocation3 + $0x70] sm:$0xff] %v3197
      %3222 = vst [vmem:[#allocation3 + $0x78] sm:$0xff] %v3198
      %3223 = vst [vmem:[#allocation3 + $0x80] sm:$0xff] %v3199
      %3224 = vst [vmem:[#allocation3 + $0x88] sm:$0xff] %v3200
      %3225 = vst [vmem:[#allocation3 + $0x90] sm:$0xff] %v3201
      %3226 = vst [vmem:[#allocation3 + $0x98] sm:$0xff] %v3202
      %3227 = vst [vmem:[#allocation3 + $0xa0] sm:$0xff] %v3203
      %3228 = vst [vmem:[#allocation3 + $0xa8] sm:$0xff] %v3204
      %3229 = vst [vmem:[#allocation3 + $0xb0] sm:$0xff] %v3205
      %3230 = vst [vmem:[#allocation3 + $0xb8] sm:$0xf] %v3206
      %v3231 = vld [vmem:[#allocation3] sm:$0xff]
      %v3232 = vld [vmem:[#allocation3 + $0x8] sm:$0xff]
      %v3233 = vld [vmem:[#allocation3 + $0x10] sm:$0xff]
      %v3234 = vld [vmem:[#allocation3 + $0x18] sm:$0xff]
      %v3235 = vld [vmem:[#allocation3 + $0x20] sm:$0xff]
      %v3236 = vld [vmem:[#allocation3 + $0x28] sm:$0xff]
      %v3237 = vld [vmem:[#allocation3 + $0x30] sm:$0xff]
      %v3238 = vld [vmem:[#allocation3 + $0x38] sm:$0xff]
      %v3239 = vld [vmem:[#allocation3 + $0x40] sm:$0xff]
      %v3240 = vld [vmem:[#allocation3 + $0x48] sm:$0xff]
      %v3241 = vld [vmem:[#allocation3 + $0x50] sm:$0xff]
      %v3242 = vld [vmem:[#allocation3 + $0x58] sm:$0xff]
      %v3243 = vld [vmem:[#allocation3 + $0x60] sm:$0xff]
      %v3244 = vld [vmem:[#allocation3 + $0x68] sm:$0xff]
      %v3245 = vld [vmem:[#allocation3 + $0x70] sm:$0xff]
      %v3246 = vld [vmem:[#allocation3 + $0x78] sm:$0xff]
      %v3247 = vld [vmem:[#allocation3 + $0x80] sm:$0xff]
      %v3248 = vld [vmem:[#allocation3 + $0x88] sm:$0xff]
      %v3249 = vld [vmem:[#allocation3 + $0x90] sm:$0xff]
      %v3250 = vld [vmem:[#allocation3 + $0x98] sm:$0xff]
      %v3251 = vld [vmem:[#allocation3 + $0xa0] sm:$0xff]
      %v3252 = vld [vmem:[#allocation3 + $0xa8] sm:$0xff]
      %v3253 = vld [vmem:[#allocation3 + $0xb0] sm:$0xff]
      %v3254 = vld [vmem:[#allocation3 + $0xb8] sm:$0xf]
      %v3255 = vld [vmem:[%s5] sm:$0xff]
      %v3256 = vld [vmem:[%s5 + $0x8] sm:$0xff]
      %v3257 = vld [vmem:[%s5 + $0x10] sm:$0xff]
      %v3258 = vld [vmem:[%s5 + $0x18] sm:$0xff]
      %v3259 = vld [vmem:[%s5 + $0x20] sm:$0xff]
      %v3260 = vld [vmem:[%s5 + $0x28] sm:$0xff]
      %v3261 = vld [vmem:[%s5 + $0x30] sm:$0xff]
      %v3262 = vld [vmem:[%s5 + $0x38] sm:$0xff]
      %v3263 = vld [vmem:[%s5 + $0x40] sm:$0xff]
      %v3264 = vld [vmem:[%s5 + $0x48] sm:$0xff]
      %v3265 = vld [vmem:[%s5 + $0x50] sm:$0xff]
      %v3266 = vld [vmem:[%s5 + $0x58] sm:$0xff]
      %v3267 = vld [vmem:[%s5 + $0x60] sm:$0xff]
      %v3268 = vld [vmem:[%s5 + $0x68] sm:$0xff]
      %v3269 = vld [vmem:[%s5 + $0x70] sm:$0xff]
      %v3270 = vld [vmem:[%s5 + $0x78] sm:$0xff]
      %3271 = vmatprep.subr.mxu0 0.0
      %3272 = vmatpush1.msra.mxu0 %v3255
      %3273 = vmatprep.subr.mxu0 0.0
      %3274 = vmatpush1.msra.mxu0 %v3256
      %3275 = vmatprep.subr.mxu0 0.0
      %3276 = vmatpush1.msra.mxu0 %v3257
      %3277 = vmatprep.subr.mxu0 0.0
      %3278 = vmatpush1.msra.mxu0 %v3258
      %3279 = vmatprep.subr.mxu0 0.0
      %3280 = vmatpush1.msra.mxu0 %v3259
      %3281 = vmatprep.subr.mxu0 0.0
      %3282 = vmatpush1.msra.mxu0 %v3260
      %3283 = vmatprep.subr.mxu0 0.0
      %3284 = vmatpush1.msra.mxu0 %v3261
      %3285 = vmatprep.subr.mxu0 0.0
      %3286 = vmatpush1.msra.mxu0 %v3262
      %3287 = vmatprep.subr.mxu0 0.0
      %3288 = vmatpush1.msra.mxu0 %v3263
      %3289 = vmatprep.subr.mxu0 0.0
      %3290 = vmatpush1.msra.mxu0 %v3264
      %3291 = vmatprep.subr.mxu0 0.0
      %3292 = vmatpush1.msra.mxu0 %v3265
      %3293 = vmatprep.subr.mxu0 0.0
      %3294 = vmatpush1.msra.mxu0 %v3266
      %3295 = vmatprep.subr.mxu0 0.0
      %3296 = vmatpush1.msra.mxu0 %v3267
      %3297 = vmatprep.subr.mxu0 0.0
      %3298 = vmatpush1.msra.mxu0 %v3268
      %3299 = vmatprep.subr.mxu0 0.0
      %3300 = vmatpush1.msra.mxu0 %v3269
      %3301 = vmatprep.subr.mxu0 0.0
      %3302 = vmatpush1.msra.mxu0 %v3270
      %3303 = vmatprep.subr.mxu0 0.0
      %3304 = vmatpush1.msra.mxu0 0.0
      %3305 = vmatprep.subr.mxu0 0.0
      %3306 = vmatpush1.msra.mxu0 0.0
      %3307 = vmatprep.subr.mxu0 0.0
      %3308 = vmatpush1.msra.mxu0 0.0
      %3309 = vmatprep.subr.mxu0 0.0
      %3310 = vmatpush1.msra.mxu0 0.0
      %3311 = vmatprep.subr.mxu0 0.0
      %3312 = vmatpush1.msra.mxu0 0.0
      %3313 = vmatprep.subr.mxu0 0.0
      %3314 = vmatpush1.msra.mxu0 0.0
      %3315 = vmatprep.subr.mxu0 0.0
      %3316 = vmatpush1.msra.mxu0 0.0
      %3317 = vmatprep.subr.mxu0 0.0
      %3318 = vmatpush1.msra.mxu0 0.0
      %3319 = vmatprep.subr.mxu0 0.0
      %3320 = vmatpush1.msra.mxu0 0.0
      %3321 = vmatprep.subr.mxu0 0.0
      %3322 = vmatpush1.msra.mxu0 0.0
      %3323 = vmatprep.subr.mxu0 0.0
      %3324 = vmatpush1.msra.mxu0 0.0
      %3325 = vmatprep.subr.mxu0 0.0
      %3326 = vmatpush1.msra.mxu0 0.0
      %3327 = vmatprep.subr.mxu0 0.0
      %3328 = vmatpush1.msra.mxu0 0.0
      %3329 = vmatprep.subr.mxu0 0.0
      %3330 = vmatpush1.msra.mxu0 0.0
      %3331 = vmatprep.subr.mxu0 0.0
      %3332 = vmatpush1.msra.mxu0 0.0
      %3333 = vmatprep.subr.mxu0 0.0
      %3334 = vmatpush1.msra.mxu0 0.0
      %3335 = vmatprep.mubr.f32.mxu0 0.0
      %3336 = vmatmul.mubr.f32.gmra.mrb[0].mxu0 %v3231
      %v3337 = vpop.f32.mrb[0].mxu0
      %v3338 = vadd.f32 0.0, %v3337
      %v3339 = vpop.f32.mrb[0].mxu0
      %3340 = vmatprep.mubr.f32.mxu0 0.0
      %3341 = vmatmul.mubr.f32.gmra.mrb[0].mxu0 %v3232
      %v3342 = vpop.f32.mrb[0].mxu0
      %v3343 = vadd.f32 0.0, %v3342
      %v3344 = vpop.f32.mrb[0].mxu0
      %3345 = vmatprep.mubr.f32.mxu0 0.0
      %3346 = vmatmul.mubr.f32.gmra.mrb[0].mxu0 %v3233
      %v3347 = vpop.f32.mrb[0].mxu0
      %v3348 = vadd.f32 0.0, %v3347
      %v3349 = vpop.f32.mrb[0].mxu0
      %3350 = vmatprep.mubr.f32.mxu0 0.0
      %3351 = vmatmul.mubr.f32.gmra.mrb[0].mxu0 %v3234
      %v3352 = vpop.f32.mrb[0].mxu0
      %v3353 = vadd.f32 0.0, %v3352
      %v3354 = vpop.f32.mrb[0].mxu0
      %3355 = vmatprep.mubr.f32.mxu0 0.0
      %3356 = vmatmul.mubr.f32.gmra.mrb[0].mxu0 %v3235
      %v3357 = vpop.f32.mrb[0].mxu0
      %v3358 = vadd.f32 0.0, %v3357
      %v3359 = vpop.f32.mrb[0].mxu0
      %3360 = vmatprep.mubr.f32.mxu0 0.0
      %3361 = vmatmul.mubr.f32.gmra.mrb[0].mxu0 %v3236
      %v3362 = vpop.f32.mrb[0].mxu0
      %v3363 = vadd.f32 0.0, %v3362
      %v3364 = vpop.f32.mrb[0].mxu0
      %3365 = vmatprep.mubr.f32.mxu0 0.0
      %3366 = vmatmul.mubr.f32.gmra.mrb[0].mxu0 %v3237
      %v3367 = vpop.f32.mrb[0].mxu0
      %v3368 = vadd.f32 0.0, %v3367
      %v3369 = vpop.f32.mrb[0].mxu0
      %3370 = vmatprep.mubr.f32.mxu0 0.0
      %3371 = vmatmul.mubr.f32.gmra.mrb[0].mxu0 %v3238
      %v3372 = vpop.f32.mrb[0].mxu0
      %v3373 = vadd.f32 0.0, %v3372
      %v3374 = vpop.f32.mrb[0].mxu0
      %3375 = vmatprep.mubr.f32.mxu0 0.0
      %3376 = vmatmul.mubr.f32.gmra.mrb[0].mxu0 %v3239
      %v3377 = vpop.f32.mrb[0].mxu0
      %v3378 = vadd.f32 0.0, %v3377
      %v3379 = vpop.f32.mrb[0].mxu0
      %3380 = vmatprep.mubr.f32.mxu0 0.0
      %3381 = vmatmul.mubr.f32.gmra.mrb[0].mxu0 %v3240
      %v3382 = vpop.f32.mrb[0].mxu0
      %v3383 = vadd.f32 0.0, %v3382
      %v3384 = vpop.f32.mrb[0].mxu0
      %3385 = vmatprep.mubr.f32.mxu0 0.0
      %3386 = vmatmul.mubr.f32.gmra.mrb[0].mxu0 %v3241
      %v3387 = vpop.f32.mrb[0].mxu0
      %v3388 = vadd.f32 0.0, %v3387
      %v3389 = vpop.f32.mrb[0].mxu0
      %3390 = vmatprep.mubr.f32.mxu0 0.0
      %3391 = vmatmul.mubr.f32.gmra.mrb[0].mxu0 %v3242
      %v3392 = vpop.f32.mrb[0].mxu0
      %v3393 = vadd.f32 0.0, %v3392
      %v3394 = vpop.f32.mrb[0].mxu0
      %3395 = vmatprep.mubr.f32.mxu0 0.0
      %3396 = vmatmul.mubr.f32.gmra.mrb[0].mxu0 %v3243
      %v3397 = vpop.f32.mrb[0].mxu0
      %v3398 = vadd.f32 0.0, %v3397
      %v3399 = vpop.f32.mrb[0].mxu0
      %3400 = vmatprep.mubr.f32.mxu0 0.0
      %3401 = vmatmul.mubr.f32.gmra.mrb[0].mxu0 %v3244
      %v3402 = vpop.f32.mrb[0].mxu0
      %v3403 = vadd.f32 0.0, %v3402
      %v3404 = vpop.f32.mrb[0].mxu0
      %3405 = vmatprep.mubr.f32.mxu0 0.0
      %3406 = vmatmul.mubr.f32.gmra.mrb[0].mxu0 %v3245
      %v3407 = vpop.f32.mrb[0].mxu0
      %v3408 = vadd.f32 0.0, %v3407
      %v3409 = vpop.f32.mrb[0].mxu0
      %3410 = vmatprep.mubr.f32.mxu0 0.0
      %3411 = vmatmul.mubr.f32.gmra.mrb[0].mxu0 %v3246
      %v3412 = vpop.f32.mrb[0].mxu0
      %v3413 = vadd.f32 0.0, %v3412
      %v3414 = vpop.f32.mrb[0].mxu0
      %3415 = vmatprep.mubr.f32.mxu0 0.0
      %3416 = vmatmul.mubr.f32.gmra.mrb[0].mxu0 %v3247
      %v3417 = vpop.f32.mrb[0].mxu0
      %v3418 = vadd.f32 0.0, %v3417
      %v3419 = vpop.f32.mrb[0].mxu0
      %3420 = vmatprep.mubr.f32.mxu0 0.0
      %3421 = vmatmul.mubr.f32.gmra.mrb[0].mxu0 %v3248
      %v3422 = vpop.f32.mrb[0].mxu0
      %v3423 = vadd.f32 0.0, %v3422
      %v3424 = vpop.f32.mrb[0].mxu0
      %3425 = vmatprep.mubr.f32.mxu0 0.0
      %3426 = vmatmul.mubr.f32.gmra.mrb[0].mxu0 %v3249
      %v3427 = vpop.f32.mrb[0].mxu0
      %v3428 = vadd.f32 0.0, %v3427
      %v3429 = vpop.f32.mrb[0].mxu0
      %3430 = vmatprep.mubr.f32.mxu0 0.0
      %3431 = vmatmul.mubr.f32.gmra.mrb[0].mxu0 %v3250
      %v3432 = vpop.f32.mrb[0].mxu0
      %v3433 = vadd.f32 0.0, %v3432
      %v3434 = vpop.f32.mrb[0].mxu0
      %3435 = vmatprep.mubr.f32.mxu0 0.0
      %3436 = vmatmul.mubr.f32.gmra.mrb[0].mxu0 %v3251
      %v3437 = vpop.f32.mrb[0].mxu0
      %v3438 = vadd.f32 0.0, %v3437
      %v3439 = vpop.f32.mrb[0].mxu0
      %3440 = vmatprep.mubr.f32.mxu0 0.0
      %3441 = vmatmul.mubr.f32.gmra.mrb[0].mxu0 %v3252
      %v3442 = vpop.f32.mrb[0].mxu0
      %v3443 = vadd.f32 0.0, %v3442
      %v3444 = vpop.f32.mrb[0].mxu0
      %3445 = vmatprep.mubr.f32.mxu0 0.0
      %3446 = vmatmul.mubr.f32.gmra.mrb[0].mxu0 %v3253
      %v3447 = vpop.f32.mrb[0].mxu0
      %v3448 = vadd.f32 0.0, %v3447
      %v3449 = vpop.f32.mrb[0].mxu0
      %3450 = vmatprep.mubr.f32.mxu0 0.0
      %3451 = vmatmul.mubr.f32.gmra.mrb[0].mxu0 %v3254
      %v3452 = vpop.f32.mrb[0].mxu0
      %v3453 = vadd.f32 0.0, %v3452
      %v3454 = vpop.f32.mrb[0].mxu0
      %3455 = vdwg.mxu0
      %s3456 = scalar_lea.vmem %s5, 128
      %v3457 = vld [vmem:[%s3456] sm:$0xff]
      %v3458 = vld [vmem:[%s3456 + $0x8] sm:$0xff]
      %v3459 = vld [vmem:[%s3456 + $0x10] sm:$0xff]
      %v3460 = vld [vmem:[%s3456 + $0x18] sm:$0xff]
      %v3461 = vld [vmem:[%s3456 + $0x20] sm:$0xff]
      %v3462 = vld [vmem:[%s3456 + $0x28] sm:$0xff]
      %v3463 = vld [vmem:[%s3456 + $0x30] sm:$0xff]
      %v3464 = vld [vmem:[%s3456 + $0x38] sm:$0xff]
      %v3465 = vld [vmem:[%s3456 + $0x40] sm:$0xff]
      %v3466 = vld [vmem:[%s3456 + $0x48] sm:$0xff]
      %v3467 = vld [vmem:[%s3456 + $0x50] sm:$0xff]
      %v3468 = vld [vmem:[%s3456 + $0x58] sm:$0xff]
      %v3469 = vld [vmem:[%s3456 + $0x60] sm:$0xff]
      %v3470 = vld [vmem:[%s3456 + $0x68] sm:$0xff]
      %v3471 = vld [vmem:[%s3456 + $0x70] sm:$0xff]
      %v3472 = vld [vmem:[%s3456 + $0x78] sm:$0xff]
      %3473 = vmatprep.subr.mxu0 0.0
      %3474 = vmatpush1.msra.mxu0 %v3457
      %3475 = vmatprep.subr.mxu0 0.0
      %3476 = vmatpush1.msra.mxu0 %v3458
      %3477 = vmatprep.subr.mxu0 0.0
      %3478 = vmatpush1.msra.mxu0 %v3459
      %3479 = vmatprep.subr.mxu0 0.0
      %3480 = vmatpush1.msra.mxu0 %v3460
      %3481 = vmatprep.subr.mxu0 0.0
      %3482 = vmatpush1.msra.mxu0 %v3461
      %3483 = vmatprep.subr.mxu0 0.0
      %3484 = vmatpush1.msra.mxu0 %v3462
      %3485 = vmatprep.subr.mxu0 0.0
      %3486 = vmatpush1.msra.mxu0 %v3463
      %3487 = vmatprep.subr.mxu0 0.0
      %3488 = vmatpush1.msra.mxu0 %v3464
      %3489 = vmatprep.subr.mxu0 0.0
      %3490 = vmatpush1.msra.mxu0 %v3465
      %3491 = vmatprep.subr.mxu0 0.0
      %3492 = vmatpush1.msra.mxu0 %v3466
      %3493 = vmatprep.subr.mxu0 0.0
      %3494 = vmatpush1.msra.mxu0 %v3467
      %3495 = vmatprep.subr.mxu0 0.0
      %3496 = vmatpush1.msra.mxu0 %v3468
      %3497 = vmatprep.subr.mxu0 0.0
      %3498 = vmatpush1.msra.mxu0 %v3469
      %3499 = vmatprep.subr.mxu0 0.0
      %3500 = vmatpush1.msra.mxu0 %v3470
      %3501 = vmatprep.subr.mxu0 0.0
      %3502 = vmatpush1.msra.mxu0 %v3471
      %3503 = vmatprep.subr.mxu0 0.0
      %3504 = vmatpush1.msra.mxu0 %v3472
      %3505 = vmatprep.subr.mxu0 0.0
      %3506 = vmatpush1.msra.mxu0 0.0
      %3507 = vmatprep.subr.mxu0 0.0
      %3508 = vmatpush1.msra.mxu0 0.0
      %3509 = vmatprep.subr.mxu0 0.0
      %3510 = vmatpush1.msra.mxu0 0.0
      %3511 = vmatprep.subr.mxu0 0.0
      %3512 = vmatpush1.msra.mxu0 0.0
      %3513 = vmatprep.subr.mxu0 0.0
      %3514 = vmatpush1.msra.mxu0 0.0
      %3515 = vmatprep.subr.mxu0 0.0
      %3516 = vmatpush1.msra.mxu0 0.0
      %3517 = vmatprep.subr.mxu0 0.0
      %3518 = vmatpush1.msra.mxu0 0.0
      %3519 = vmatprep.subr.mxu0 0.0
      %3520 = vmatpush1.msra.mxu0 0.0
      %3521 = vmatprep.subr.mxu0 0.0
      %3522 = vmatpush1.msra.mxu0 0.0
      %3523 = vmatprep.subr.mxu0 0.0
      %3524 = vmatpush1.msra.mxu0 0.0
      %3525 = vmatprep.subr.mxu0 0.0
      %3526 = vmatpush1.msra.mxu0 0.0
      %3527 = vmatprep.subr.mxu0 0.0
      %3528 = vmatpush1.msra.mxu0 0.0
      %3529 = vmatprep.subr.mxu0 0.0
      %3530 = vmatpush1.msra.mxu0 0.0
      %3531 = vmatprep.subr.mxu0 0.0
      %3532 = vmatpush1.msra.mxu0 0.0
      %3533 = vmatprep.subr.mxu0 0.0
      %3534 = vmatpush1.msra.mxu0 0.0
      %3535 = vmatprep.subr.mxu0 0.0
      %3536 = vmatpush1.msra.mxu0 0.0
      %3537 = vmatprep.mubr.f32.mxu0 0.0
      %3538 = vmatmul.mubr.f32.gmra.mrb[0].mxu0 %v3231
      %v3539 = vpop.f32.mrb[0].mxu0
      %v3540 = vadd.f32 0.0, %v3539
      %v3541 = vpop.f32.mrb[0].mxu0
      %3542 = vmatprep.mubr.f32.mxu0 0.0
      %3543 = vmatmul.mubr.f32.gmra.mrb[0].mxu0 %v3232
      %v3544 = vpop.f32.mrb[0].mxu0
      %v3545 = vadd.f32 0.0, %v3544
      %v3546 = vpop.f32.mrb[0].mxu0
      %3547 = vmatprep.mubr.f32.mxu0 0.0
      %3548 = vmatmul.mubr.f32.gmra.mrb[0].mxu0 %v3233
      %v3549 = vpop.f32.mrb[0].mxu0
      %v3550 = vadd.f32 0.0, %v3549
      %v3551 = vpop.f32.mrb[0].mxu0
      %3552 = vmatprep.mubr.f32.mxu0 0.0
      %3553 = vmatmul.mubr.f32.gmra.mrb[0].mxu0 %v3234
      %v3554 = vpop.f32.mrb[0].mxu0
      %v3555 = vadd.f32 0.0, %v3554
      %v3556 = vpop.f32.mrb[0].mxu0
      %3557 = vmatprep.mubr.f32.mxu0 0.0
      %3558 = vmatmul.mubr.f32.gmra.mrb[0].mxu0 %v3235
      %v3559 = vpop.f32.mrb[0].mxu0
      %v3560 = vadd.f32 0.0, %v3559
      %v3561 = vpop.f32.mrb[0].mxu0
      %3562 = vmatprep.mubr.f32.mxu0 0.0
      %3563 = vmatmul.mubr.f32.gmra.mrb[0].mxu0 %v3236
      %v3564 = vpop.f32.mrb[0].mxu0
      %v3565 = vadd.f32 0.0, %v3564
      %v3566 = vpop.f32.mrb[0].mxu0
      %3567 = vmatprep.mubr.f32.mxu0 0.0
      %3568 = vmatmul.mubr.f32.gmra.mrb[0].mxu0 %v3237
      %v3569 = vpop.f32.mrb[0].mxu0
      %v3570 = vadd.f32 0.0, %v3569
      %v3571 = vpop.f32.mrb[0].mxu0
      %3572 = vmatprep.mubr.f32.mxu0 0.0
      %3573 = vmatmul.mubr.f32.gmra.mrb[0].mxu0 %v3238
      %v3574 = vpop.f32.mrb[0].mxu0
      %v3575 = vadd.f32 0.0, %v3574
      %v3576 = vpop.f32.mrb[0].mxu0
      %3577 = vmatprep.mubr.f32.mxu0 0.0
      %3578 = vmatmul.mubr.f32.gmra.mrb[0].mxu0 %v3239
      %v3579 = vpop.f32.mrb[0].mxu0
      %v3580 = vadd.f32 0.0, %v3579
      %v3581 = vpop.f32.mrb[0].mxu0
      %3582 = vmatprep.mubr.f32.mxu0 0.0
      %3583 = vmatmul.mubr.f32.gmra.mrb[0].mxu0 %v3240
      %v3584 = vpop.f32.mrb[0].mxu0
      %v3585 = vadd.f32 0.0, %v3584
      %v3586 = vpop.f32.mrb[0].mxu0
      %3587 = vmatprep.mubr.f32.mxu0 0.0
      %3588 = vmatmul.mubr.f32.gmra.mrb[0].mxu0 %v3241
      %v3589 = vpop.f32.mrb[0].mxu0
      %v3590 = vadd.f32 0.0, %v3589
      %v3591 = vpop.f32.mrb[0].mxu0
      %3592 = vmatprep.mubr.f32.mxu0 0.0
      %3593 = vmatmul.mubr.f32.gmra.mrb[0].mxu0 %v3242
      %v3594 = vpop.f32.mrb[0].mxu0
      %v3595 = vadd.f32 0.0, %v3594
      %v3596 = vpop.f32.mrb[0].mxu0
      %3597 = vmatprep.mubr.f32.mxu0 0.0
      %3598 = vmatmul.mubr.f32.gmra.mrb[0].mxu0 %v3243
      %v3599 = vpop.f32.mrb[0].mxu0
      %v3600 = vadd.f32 0.0, %v3599
      %v3601 = vpop.f32.mrb[0].mxu0
      %3602 = vmatprep.mubr.f32.mxu0 0.0
      %3603 = vmatmul.mubr.f32.gmra.mrb[0].mxu0 %v3244
      %v3604 = vpop.f32.mrb[0].mxu0
      %v3605 = vadd.f32 0.0, %v3604
      %v3606 = vpop.f32.mrb[0].mxu0
      %3607 = vmatprep.mubr.f32.mxu0 0.0
      %3608 = vmatmul.mubr.f32.gmra.mrb[0].mxu0 %v3245
      %v3609 = vpop.f32.mrb[0].mxu0
      %v3610 = vadd.f32 0.0, %v3609
      %v3611 = vpop.f32.mrb[0].mxu0
      %3612 = vmatprep.mubr.f32.mxu0 0.0
      %3613 = vmatmul.mubr.f32.gmra.mrb[0].mxu0 %v3246
      %v3614 = vpop.f32.mrb[0].mxu0
      %v3615 = vadd.f32 0.0, %v3614
      %v3616 = vpop.f32.mrb[0].mxu0
      %3617 = vmatprep.mubr.f32.mxu0 0.0
      %3618 = vmatmul.mubr.f32.gmra.mrb[0].mxu0 %v3247
      %v3619 = vpop.f32.mrb[0].mxu0
      %v3620 = vadd.f32 0.0, %v3619
      %v3621 = vpop.f32.mrb[0].mxu0
      %3622 = vmatprep.mubr.f32.mxu0 0.0
      %3623 = vmatmul.mubr.f32.gmra.mrb[0].mxu0 %v3248
      %v3624 = vpop.f32.mrb[0].mxu0
      %v3625 = vadd.f32 0.0, %v3624
      %v3626 = vpop.f32.mrb[0].mxu0
      %3627 = vmatprep.mubr.f32.mxu0 0.0
      %3628 = vmatmul.mubr.f32.gmra.mrb[0].mxu0 %v3249
      %v3629 = vpop.f32.mrb[0].mxu0
      %v3630 = vadd.f32 0.0, %v3629
      %v3631 = vpop.f32.mrb[0].mxu0
      %3632 = vmatprep.mubr.f32.mxu0 0.0
      %3633 = vmatmul.mubr.f32.gmra.mrb[0].mxu0 %v3250
      %v3634 = vpop.f32.mrb[0].mxu0
      %v3635 = vadd.f32 0.0, %v3634
      %v3636 = vpop.f32.mrb[0].mxu0
      %3637 = vmatprep.mubr.f32.mxu0 0.0
      %3638 = vmatmul.mubr.f32.gmra.mrb[0].mxu0 %v3251
      %v3639 = vpop.f32.mrb[0].mxu0
      %v3640 = vadd.f32 0.0, %v3639
      %v3641 = vpop.f32.mrb[0].mxu0
      %3642 = vmatprep.mubr.f32.mxu0 0.0
      %3643 = vmatmul.mubr.f32.gmra.mrb[0].mxu0 %v3252
      %v3644 = vpop.f32.mrb[0].mxu0
      %v3645 = vadd.f32 0.0, %v3644
      %v3646 = vpop.f32.mrb[0].mxu0
      %3647 = vmatprep.mubr.f32.mxu0 0.0
      %3648 = vmatmul.mubr.f32.gmra.mrb[0].mxu0 %v3253
      %v3649 = vpop.f32.mrb[0].mxu0
      %v3650 = vadd.f32 0.0, %v3649
      %v3651 = vpop.f32.mrb[0].mxu0
      %3652 = vmatprep.mubr.f32.mxu0 0.0
      %3653 = vmatmul.mubr.f32.gmra.mrb[0].mxu0 %v3254
      %v3654 = vpop.f32.mrb[0].mxu0
      %v3655 = vadd.f32 0.0, %v3654
      %v3656 = vpop.f32.mrb[0].mxu0
      %3657 = vdwg.mxu0
      %v3658 = vmax.f32 %v3338, %v3540
      %v3659 = vmax.f32 %v3343, %v3545
      %v3660 = vmax.f32 %v3348, %v3550
      %v3661 = vmax.f32 %v3353, %v3555
      %v3662 = vmax.f32 %v3358, %v3560
      %v3663 = vmax.f32 %v3363, %v3565
      %v3664 = vmax.f32 %v3368, %v3570
      %v3665 = vmax.f32 %v3373, %v3575
      %v3666 = vmax.f32 %v3378, %v3580
      %v3667 = vmax.f32 %v3383, %v3585
      %v3668 = vmax.f32 %v3388, %v3590
      %v3669 = vmax.f32 %v3393, %v3595
      %v3670 = vmax.f32 %v3398, %v3600
      %v3671 = vmax.f32 %v3403, %v3605
      %v3672 = vmax.f32 %v3408, %v3610
      %v3673 = vmax.f32 %v3413, %v3615
      %v3674 = vmax.f32 %v3418, %v3620
      %v3675 = vmax.f32 %v3423, %v3625
      %v3676 = vmax.f32 %v3428, %v3630
      %v3677 = vmax.f32 %v3433, %v3635
      %v3678 = vmax.f32 %v3438, %v3640
      %v3679 = vmax.f32 %v3443, %v3645
      %v3680 = vmax.f32 %v3448, %v3650
      %v3681 = vmax.f32 %v3453, %v3655
      %v3682 = vld [vmem:[%s6] sm:$0xff]
      %v3683 = vld [vmem:[%s6 + $0x8] sm:$0xff]
      %v3684 = vld [vmem:[%s6 + $0x10] sm:$0xff]
      %v3685 = vld [vmem:[%s6 + $0x18] sm:$0xff]
      %v3686 = vld [vmem:[%s6 + $0x20] sm:$0xff]
      %v3687 = vld [vmem:[%s6 + $0x28] sm:$0xff]
      %v3688 = vld [vmem:[%s6 + $0x30] sm:$0xff]
      %v3689 = vld [vmem:[%s6 + $0x38] sm:$0xff]
      %v3690 = vld [vmem:[%s6 + $0x40] sm:$0xf]
      %v3691 = vld [vmem:[%s6 + $0x48] sm:$0xf]
      %vm3692 = vcmask 490496
      %v3694 = vsel %vm3692, %v3683, 0
      %v3697 = vsel %vm3692, %v3685, 0
      %v3700 = vsel %vm3692, %v3687, 0
      %v3703 = vsel %vm3692, %v3689, 0
      %v3706 = vsel %vm3692, %v3691, 0
      %vm3708 = vcmask 1043456
      %v3710 = vsel %vm3708, %v3681, 0
      %3712 = vmatprep.subr.mxu0 0.0
      %3713 = vmatpush1.msra.mxu0 %v3658
      %3714 = vmatprep.subr.mxu0 0.0
      %3715 = vmatpush1.msra.mxu0 %v3659
      %3716 = vmatprep.subr.mxu0 0.0
      %3717 = vmatpush1.msra.mxu0 %v3660
      %3718 = vmatprep.subr.mxu0 0.0
      %3719 = vmatpush1.msra.mxu0 %v3661
      %3720 = vmatprep.subr.mxu0 0.0
      %3721 = vmatpush1.msra.mxu0 %v3662
      %3722 = vmatprep.subr.mxu0 0.0
      %3723 = vmatpush1.msra.mxu0 %v3663
      %3724 = vmatprep.subr.mxu0 0.0
      %3725 = vmatpush1.msra.mxu0 %v3664
      %3726 = vmatprep.subr.mxu0 0.0
      %3727 = vmatpush1.msra.mxu0 %v3665
      %3728 = vmatprep.subr.mxu0 0.0
      %3729 = vmatpush1.msra.mxu0 %v3666
      %3730 = vmatprep.subr.mxu0 0.0
      %3731 = vmatpush1.msra.mxu0 %v3667
      %3732 = vmatprep.subr.mxu0 0.0
      %3733 = vmatpush1.msra.mxu0 %v3668
      %3734 = vmatprep.subr.mxu0 0.0
      %3735 = vmatpush1.msra.mxu0 %v3669
      %3736 = vmatprep.subr.mxu0 0.0
      %3737 = vmatpush1.msra.mxu0 %v3670
      %3738 = vmatprep.subr.mxu0 0.0
      %3739 = vmatpush1.msra.mxu0 %v3671
      %3740 = vmatprep.subr.mxu0 0.0
      %3741 = vmatpush1.msra.mxu0 %v3672
      %3742 = vmatprep.subr.mxu0 0.0
      %3743 = vmatpush1.msra.mxu0 %v3673
      %3744 = vmatprep.subr.mxu0 0.0
      %3745 = vmatpush1.msra.mxu0 %v3674
      %3746 = vmatprep.subr.mxu0 0.0
      %3747 = vmatpush1.msra.mxu0 %v3675
      %3748 = vmatprep.subr.mxu0 0.0
      %3749 = vmatpush1.msra.mxu0 %v3676
      %3750 = vmatprep.subr.mxu0 0.0
      %3751 = vmatpush1.msra.mxu0 %v3677
      %3752 = vmatprep.subr.mxu0 0.0
      %3753 = vmatpush1.msra.mxu0 %v3678
      %3754 = vmatprep.subr.mxu0 0.0
      %3755 = vmatpush1.msra.mxu0 %v3679
      %3756 = vmatprep.subr.mxu0 0.0
      %3757 = vmatpush1.msra.mxu0 %v3680
      %3758 = vmatprep.subr.mxu0 0.0
      %3759 = vmatpush1.msra.mxu0 %v3710
      %3760 = vmatprep.subr.mxu0 0.0
      %3761 = vmatpush1.msra.mxu0 0.0
      %3762 = vmatprep.subr.mxu0 0.0
      %3763 = vmatpush1.msra.mxu0 0.0
      %3764 = vmatprep.subr.mxu0 0.0
      %3765 = vmatpush1.msra.mxu0 0.0
      %3766 = vmatprep.subr.mxu0 0.0
      %3767 = vmatpush1.msra.mxu0 0.0
      %3768 = vmatprep.subr.mxu0 0.0
      %3769 = vmatpush1.msra.mxu0 0.0
      %3770 = vmatprep.subr.mxu0 0.0
      %3771 = vmatpush1.msra.mxu0 0.0
      %3772 = vmatprep.subr.mxu0 0.0
      %3773 = vmatpush1.msra.mxu0 0.0
      %3774 = vmatprep.subr.mxu0 0.0
      %3775 = vmatpush1.msra.mxu0 0.0
      %3776 = vmatprep.mubr.f32.mxu0 %v3694
      %3777 = vmatmul.mubr.f32.gmra.mrb[0].mxu0 %v3682
      %v3778 = vpop.f32.mrb[0].mxu0
      %v3779 = vadd.f32 0.0, %v3778
      %v3780 = vpop.f32.mrb[0].mxu0
      %3781 = vmatprep.mubr.f32.mxu0 %v3697
      %3782 = vmatmul.mubr.f32.gmra.mrb[0].mxu0 %v3684
      %v3783 = vpop.f32.mrb[0].mxu0
      %v3784 = vadd.f32 0.0, %v3783
      %v3785 = vpop.f32.mrb[0].mxu0
      %3786 = vmatprep.mubr.f32.mxu0 %v3700
      %3787 = vmatmul.mubr.f32.gmra.mrb[0].mxu0 %v3686
      %v3788 = vpop.f32.mrb[0].mxu0
      %v3789 = vadd.f32 0.0, %v3788
      %v3790 = vpop.f32.mrb[0].mxu0
      %3791 = vmatprep.mubr.f32.mxu0 %v3703
      %3792 = vmatmul.mubr.f32.gmra.mrb[0].mxu0 %v3688
      %v3793 = vpop.f32.mrb[0].mxu0
      %v3794 = vadd.f32 0.0, %v3793
      %v3795 = vpop.f32.mrb[0].mxu0
      %3796 = vmatprep.mubr.f32.mxu0 %v3706
      %3797 = vmatmul.mubr.f32.gmra.mrb[0].mxu0 %v3690
      %v3798 = vpop.f32.mrb[0].mxu0
      %v3799 = vadd.f32 0.0, %v3798
      %v3800 = vpop.f32.mrb[0].mxu0
      %3801 = vdwg.mxu0
      %s3802 = scalar_lea.vmem %s6, 80
      %v3803 = vld [vmem:[%s3802] sm:$0xff]
      %v3804 = vld [vmem:[%s3802 + $0x8] sm:$0xff]
      %v3805 = vld [vmem:[%s3802 + $0x10] sm:$0xff]
      %v3806 = vld [vmem:[%s3802 + $0x18] sm:$0xff]
      %v3807 = vld [vmem:[%s3802 + $0x20] sm:$0xff]
      %v3808 = vld [vmem:[%s3802 + $0x28] sm:$0xff]
      %v3809 = vld [vmem:[%s3802 + $0x30] sm:$0xff]
      %v3810 = vld [vmem:[%s3802 + $0x38] sm:$0xff]
      %v3811 = vld [vmem:[%s3802 + $0x40] sm:$0xf]
      %v3812 = vld [vmem:[%s3802 + $0x48] sm:$0xf]
      %v3814 = vsel %vm3692, %v3804, 0
      %v3817 = vsel %vm3692, %v3806, 0
      %v3820 = vsel %vm3692, %v3808, 0
      %v3823 = vsel %vm3692, %v3810, 0
      %v3826 = vsel %vm3692, %v3812, 0
      %3828 = vmatprep.subr.mxu0 0.0
      %3829 = vmatpush1.msra.mxu0 %v3658
      %3830 = vmatprep.subr.mxu0 0.0
      %3831 = vmatpush1.msra.mxu0 %v3659
      %3832 = vmatprep.subr.mxu0 0.0
      %3833 = vmatpush1.msra.mxu0 %v3660
      %3834 = vmatprep.subr.mxu0 0.0
      %3835 = vmatpush1.msra.mxu0 %v3661
      %3836 = vmatprep.subr.mxu0 0.0
      %3837 = vmatpush1.msra.mxu0 %v3662
      %3838 = vmatprep.subr.mxu0 0.0
      %3839 = vmatpush1.msra.mxu0 %v3663
      %3840 = vmatprep.subr.mxu0 0.0
      %3841 = vmatpush1.msra.mxu0 %v3664
      %3842 = vmatprep.subr.mxu0 0.0
      %3843 = vmatpush1.msra.mxu0 %v3665
      %3844 = vmatprep.subr.mxu0 0.0
      %3845 = vmatpush1.msra.mxu0 %v3666
      %3846 = vmatprep.subr.mxu0 0.0
      %3847 = vmatpush1.msra.mxu0 %v3667
      %3848 = vmatprep.subr.mxu0 0.0
      %3849 = vmatpush1.msra.mxu0 %v3668
      %3850 = vmatprep.subr.mxu0 0.0
      %3851 = vmatpush1.msra.mxu0 %v3669
      %3852 = vmatprep.subr.mxu0 0.0
      %3853 = vmatpush1.msra.mxu0 %v3670
      %3854 = vmatprep.subr.mxu0 0.0
      %3855 = vmatpush1.msra.mxu0 %v3671
      %3856 = vmatprep.subr.mxu0 0.0
      %3857 = vmatpush1.msra.mxu0 %v3672
      %3858 = vmatprep.subr.mxu0 0.0
      %3859 = vmatpush1.msra.mxu0 %v3673
      %3860 = vmatprep.subr.mxu0 0.0
      %3861 = vmatpush1.msra.mxu0 %v3674
      %3862 = vmatprep.subr.mxu0 0.0
      %3863 = vmatpush1.msra.mxu0 %v3675
      %3864 = vmatprep.subr.mxu0 0.0
      %3865 = vmatpush1.msra.mxu0 %v3676
      %3866 = vmatprep.subr.mxu0 0.0
      %3867 = vmatpush1.msra.mxu0 %v3677
      %3868 = vmatprep.subr.mxu0 0.0
      %3869 = vmatpush1.msra.mxu0 %v3678
      %3870 = vmatprep.subr.mxu0 0.0
      %3871 = vmatpush1.msra.mxu0 %v3679
      %3872 = vmatprep.subr.mxu0 0.0
      %3873 = vmatpush1.msra.mxu0 %v3680
      %3874 = vmatprep.subr.mxu0 0.0
      %3875 = vmatpush1.msra.mxu0 %v3710
      %3876 = vmatprep.subr.mxu0 0.0
      %3877 = vmatpush1.msra.mxu0 0.0
      %3878 = vmatprep.subr.mxu0 0.0
      %3879 = vmatpush1.msra.mxu0 0.0
      %3880 = vmatprep.subr.mxu0 0.0
      %3881 = vmatpush1.msra.mxu0 0.0
      %3882 = vmatprep.subr.mxu0 0.0
      %3883 = vmatpush1.msra.mxu0 0.0
      %3884 = vmatprep.subr.mxu0 0.0
      %3885 = vmatpush1.msra.mxu0 0.0
      %3886 = vmatprep.subr.mxu0 0.0
      %3887 = vmatpush1.msra.mxu0 0.0
      %3888 = vmatprep.subr.mxu0 0.0
      %3889 = vmatpush1.msra.mxu0 0.0
      %3890 = vmatprep.subr.mxu0 0.0
      %3891 = vmatpush1.msra.mxu0 0.0
      %3892 = vmatprep.mubr.f32.mxu0 %v3814
      %3893 = vmatmul.mubr.f32.gmra.mrb[0].mxu0 %v3803
      %v3894 = vpop.f32.mrb[0].mxu0
      %v3895 = vadd.f32 0.0, %v3894
      %v3896 = vpop.f32.mrb[0].mxu0
      %3897 = vmatprep.mubr.f32.mxu0 %v3817
      %3898 = vmatmul.mubr.f32.gmra.mrb[0].mxu0 %v3805
      %v3899 = vpop.f32.mrb[0].mxu0
      %v3900 = vadd.f32 0.0, %v3899
      %v3901 = vpop.f32.mrb[0].mxu0
      %3902 = vmatprep.mubr.f32.mxu0 %v3820
      %3903 = vmatmul.mubr.f32.gmra.mrb[0].mxu0 %v3807
      %v3904 = vpop.f32.mrb[0].mxu0
      %v3905 = vadd.f32 0.0, %v3904
      %v3906 = vpop.f32.mrb[0].mxu0
      %3907 = vmatprep.mubr.f32.mxu0 %v3823
      %3908 = vmatmul.mubr.f32.gmra.mrb[0].mxu0 %v3809
      %v3909 = vpop.f32.mrb[0].mxu0
      %v3910 = vadd.f32 0.0, %v3909
      %v3911 = vpop.f32.mrb[0].mxu0
      %3912 = vmatprep.mubr.f32.mxu0 %v3826
      %3913 = vmatmul.mubr.f32.gmra.mrb[0].mxu0 %v3811
      %v3914 = vpop.f32.mrb[0].mxu0
      %v3915 = vadd.f32 0.0, %v3914
      %v3916 = vpop.f32.mrb[0].mxu0
      %3917 = vdwg.mxu0
      %v3918 = vmax.f32 %v3779, %v3895
      %v3919 = vmax.f32 %v3784, %v3900
      %v3920 = vmax.f32 %v3789, %v3905
      %v3921 = vmax.f32 %v3794, %v3910
      %v3922 = vmax.f32 %v3799, %v3915
      %s3923 = scalar_lea.vmem %s6, 160
      %v3924 = vld [vmem:[%s3923] sm:$0xff]
      %v3925 = vld [vmem:[%s3923 + $0x8] sm:$0xff]
      %v3926 = vld [vmem:[%s3923 + $0x10] sm:$0xff]
      %v3927 = vld [vmem:[%s3923 + $0x18] sm:$0xff]
      %v3928 = vld [vmem:[%s3923 + $0x20] sm:$0xff]
      %v3929 = vld [vmem:[%s3923 + $0x28] sm:$0xff]
      %v3930 = vld [vmem:[%s3923 + $0x30] sm:$0xff]
      %v3931 = vld [vmem:[%s3923 + $0x38] sm:$0xff]
      %v3932 = vld [vmem:[%s3923 + $0x40] sm:$0xf]
      %v3933 = vld [vmem:[%s3923 + $0x48] sm:$0xf]
      %v3935 = vsel %vm3692, %v3925, 0
      %v3938 = vsel %vm3692, %v3927, 0
      %v3941 = vsel %vm3692, %v3929, 0
      %v3944 = vsel %vm3692, %v3931, 0
      %v3947 = vsel %vm3692, %v3933, 0
      %3949 = vmatprep.subr.mxu0 0.0
      %3950 = vmatpush1.msra.mxu0 %v3658
      %3951 = vmatprep.subr.mxu0 0.0
      %3952 = vmatpush1.msra.mxu0 %v3659
      %3953 = vmatprep.subr.mxu0 0.0
      %3954 = vmatpush1.msra.mxu0 %v3660
      %3955 = vmatprep.subr.mxu0 0.0
      %3956 = vmatpush1.msra.mxu0 %v3661
      %3957 = vmatprep.subr.mxu0 0.0
      %3958 = vmatpush1.msra.mxu0 %v3662
      %3959 = vmatprep.subr.mxu0 0.0
      %3960 = vmatpush1.msra.mxu0 %v3663
      %3961 = vmatprep.subr.mxu0 0.0
      %3962 = vmatpush1.msra.mxu0 %v3664
      %3963 = vmatprep.subr.mxu0 0.0
      %3964 = vmatpush1.msra.mxu0 %v3665
      %3965 = vmatprep.subr.mxu0 0.0
      %3966 = vmatpush1.msra.mxu0 %v3666
      %3967 = vmatprep.subr.mxu0 0.0
      %3968 = vmatpush1.msra.mxu0 %v3667
      %3969 = vmatprep.subr.mxu0 0.0
      %3970 = vmatpush1.msra.mxu0 %v3668
      %3971 = vmatprep.subr.mxu0 0.0
      %3972 = vmatpush1.msra.mxu0 %v3669
      %3973 = vmatprep.subr.mxu0 0.0
      %3974 = vmatpush1.msra.mxu0 %v3670
      %3975 = vmatprep.subr.mxu0 0.0
      %3976 = vmatpush1.msra.mxu0 %v3671
      %3977 = vmatprep.subr.mxu0 0.0
      %3978 = vmatpush1.msra.mxu0 %v3672
      %3979 = vmatprep.subr.mxu0 0.0
      %3980 = vmatpush1.msra.mxu0 %v3673
      %3981 = vmatprep.subr.mxu0 0.0
      %3982 = vmatpush1.msra.mxu0 %v3674
      %3983 = vmatprep.subr.mxu0 0.0
      %3984 = vmatpush1.msra.mxu0 %v3675
      %3985 = vmatprep.subr.mxu0 0.0
      %3986 = vmatpush1.msra.mxu0 %v3676
      %3987 = vmatprep.subr.mxu0 0.0
      %3988 = vmatpush1.msra.mxu0 %v3677
      %3989 = vmatprep.subr.mxu0 0.0
      %3990 = vmatpush1.msra.mxu0 %v3678
      %3991 = vmatprep.subr.mxu0 0.0
      %3992 = vmatpush1.msra.mxu0 %v3679
      %3993 = vmatprep.subr.mxu0 0.0
      %3994 = vmatpush1.msra.mxu0 %v3680
      %3995 = vmatprep.subr.mxu0 0.0
      %3996 = vmatpush1.msra.mxu0 %v3710
      %3997 = vmatprep.subr.mxu0 0.0
      %3998 = vmatpush1.msra.mxu0 0.0
      %3999 = vmatprep.subr.mxu0 0.0
      %4000 = vmatpush1.msra.mxu0 0.0
      %4001 = vmatprep.subr.mxu0 0.0
      %4002 = vmatpush1.msra.mxu0 0.0
      %4003 = vmatprep.subr.mxu0 0.0
      %4004 = vmatpush1.msra.mxu0 0.0
      %4005 = vmatprep.subr.mxu0 0.0
      %4006 = vmatpush1.msra.mxu0 0.0
      %4007 = vmatprep.subr.mxu0 0.0
      %4008 = vmatpush1.msra.mxu0 0.0
      %4009 = vmatprep.subr.mxu0 0.0
      %4010 = vmatpush1.msra.mxu0 0.0
      %4011 = vmatprep.subr.mxu0 0.0
      %4012 = vmatpush1.msra.mxu0 0.0
      %4013 = vmatprep.mubr.f32.mxu0 %v3935
      %4014 = vmatmul.mubr.f32.gmra.mrb[0].mxu0 %v3924
      %v4015 = vpop.f32.mrb[0].mxu0
      %v4016 = vadd.f32 0.0, %v4015
      %v4017 = vpop.f32.mrb[0].mxu0
      %4018 = vmatprep.mubr.f32.mxu0 %v3938
      %4019 = vmatmul.mubr.f32.gmra.mrb[0].mxu0 %v3926
      %v4020 = vpop.f32.mrb[0].mxu0
      %v4021 = vadd.f32 0.0, %v4020
      %v4022 = vpop.f32.mrb[0].mxu0
      %4023 = vmatprep.mubr.f32.mxu0 %v3941
      %4024 = vmatmul.mubr.f32.gmra.mrb[0].mxu0 %v3928
      %v4025 = vpop.f32.mrb[0].mxu0
      %v4026 = vadd.f32 0.0, %v4025
      %v4027 = vpop.f32.mrb[0].mxu0
      %4028 = vmatprep.mubr.f32.mxu0 %v3944
      %4029 = vmatmul.mubr.f32.gmra.mrb[0].mxu0 %v3930
      %v4030 = vpop.f32.mrb[0].mxu0
      %v4031 = vadd.f32 0.0, %v4030
      %v4032 = vpop.f32.mrb[0].mxu0
      %4033 = vmatprep.mubr.f32.mxu0 %v3947
      %4034 = vmatmul.mubr.f32.gmra.mrb[0].mxu0 %v3932
      %v4035 = vpop.f32.mrb[0].mxu0
      %v4036 = vadd.f32 0.0, %v4035
      %v4037 = vpop.f32.mrb[0].mxu0
      %4038 = vdwg.mxu0
      %v4039 = vmax.f32 %v3918, %v4016
      %v4040 = vmax.f32 %v3919, %v4021
      %v4041 = vmax.f32 %v3920, %v4026
      %v4042 = vmax.f32 %v3921, %v4031
      %v4043 = vmax.f32 %v3922, %v4036
      %s4044 = scalar_lea.vmem %s6, 240
      %v4045 = vld [vmem:[%s4044] sm:$0xff]
      %v4046 = vld [vmem:[%s4044 + $0x8] sm:$0xff]
      %v4047 = vld [vmem:[%s4044 + $0x10] sm:$0xff]
      %v4048 = vld [vmem:[%s4044 + $0x18] sm:$0xff]
      %v4049 = vld [vmem:[%s4044 + $0x20] sm:$0xff]
      %v4050 = vld [vmem:[%s4044 + $0x28] sm:$0xff]
      %v4051 = vld [vmem:[%s4044 + $0x30] sm:$0xff]
      %v4052 = vld [vmem:[%s4044 + $0x38] sm:$0xff]
      %v4053 = vld [vmem:[%s4044 + $0x40] sm:$0xf]
      %v4054 = vld [vmem:[%s4044 + $0x48] sm:$0xf]
      %v4056 = vsel %vm3692, %v4046, 0
      %v4059 = vsel %vm3692, %v4048, 0
      %v4062 = vsel %vm3692, %v4050, 0
      %v4065 = vsel %vm3692, %v4052, 0
      %v4068 = vsel %vm3692, %v4054, 0
      %4070 = vmatprep.subr.mxu0 0.0
      %4071 = vmatpush1.msra.mxu0 %v3658
      %4072 = vmatprep.subr.mxu0 0.0
      %4073 = vmatpush1.msra.mxu0 %v3659
      %4074 = vmatprep.subr.mxu0 0.0
      %4075 = vmatpush1.msra.mxu0 %v3660
      %4076 = vmatprep.subr.mxu0 0.0
      %4077 = vmatpush1.msra.mxu0 %v3661
      %4078 = vmatprep.subr.mxu0 0.0
      %4079 = vmatpush1.msra.mxu0 %v3662
      %4080 = vmatprep.subr.mxu0 0.0
      %4081 = vmatpush1.msra.mxu0 %v3663
      %4082 = vmatprep.subr.mxu0 0.0
      %4083 = vmatpush1.msra.mxu0 %v3664
      %4084 = vmatprep.subr.mxu0 0.0
      %4085 = vmatpush1.msra.mxu0 %v3665
      %4086 = vmatprep.subr.mxu0 0.0
      %4087 = vmatpush1.msra.mxu0 %v3666
      %4088 = vmatprep.subr.mxu0 0.0
      %4089 = vmatpush1.msra.mxu0 %v3667
      %4090 = vmatprep.subr.mxu0 0.0
      %4091 = vmatpush1.msra.mxu0 %v3668
      %4092 = vmatprep.subr.mxu0 0.0
      %4093 = vmatpush1.msra.mxu0 %v3669
      %4094 = vmatprep.subr.mxu0 0.0
      %4095 = vmatpush1.msra.mxu0 %v3670
      %4096 = vmatprep.subr.mxu0 0.0
      %4097 = vmatpush1.msra.mxu0 %v3671
      %4098 = vmatprep.subr.mxu0 0.0
      %4099 = vmatpush1.msra.mxu0 %v3672
      %4100 = vmatprep.subr.mxu0 0.0
      %4101 = vmatpush1.msra.mxu0 %v3673
      %4102 = vmatprep.subr.mxu0 0.0
      %4103 = vmatpush1.msra.mxu0 %v3674
      %4104 = vmatprep.subr.mxu0 0.0
      %4105 = vmatpush1.msra.mxu0 %v3675
      %4106 = vmatprep.subr.mxu0 0.0
      %4107 = vmatpush1.msra.mxu0 %v3676
      %4108 = vmatprep.subr.mxu0 0.0
      %4109 = vmatpush1.msra.mxu0 %v3677
      %4110 = vmatprep.subr.mxu0 0.0
      %4111 = vmatpush1.msra.mxu0 %v3678
      %4112 = vmatprep.subr.mxu0 0.0
      %4113 = vmatpush1.msra.mxu0 %v3679
      %4114 = vmatprep.subr.mxu0 0.0
      %4115 = vmatpush1.msra.mxu0 %v3680
      %4116 = vmatprep.subr.mxu0 0.0
      %4117 = vmatpush1.msra.mxu0 %v3710
      %4118 = vmatprep.subr.mxu0 0.0
      %4119 = vmatpush1.msra.mxu0 0.0
      %4120 = vmatprep.subr.mxu0 0.0
      %4121 = vmatpush1.msra.mxu0 0.0
      %4122 = vmatprep.subr.mxu0 0.0
      %4123 = vmatpush1.msra.mxu0 0.0
      %4124 = vmatprep.subr.mxu0 0.0
      %4125 = vmatpush1.msra.mxu0 0.0
      %4126 = vmatprep.subr.mxu0 0.0
      %4127 = vmatpush1.msra.mxu0 0.0
      %4128 = vmatprep.subr.mxu0 0.0
      %4129 = vmatpush1.msra.mxu0 0.0
      %4130 = vmatprep.subr.mxu0 0.0
      %4131 = vmatpush1.msra.mxu0 0.0
      %4132 = vmatprep.subr.mxu0 0.0
      %4133 = vmatpush1.msra.mxu0 0.0
      %4134 = vmatprep.mubr.f32.mxu0 %v4056
      %4135 = vmatmul.mubr.f32.gmra.mrb[0].mxu0 %v4045
      %v4136 = vpop.f32.mrb[0].mxu0
      %v4137 = vadd.f32 0.0, %v4136
      %v4138 = vpop.f32.mrb[0].mxu0
      %4139 = vmatprep.mubr.f32.mxu0 %v4059
      %4140 = vmatmul.mubr.f32.gmra.mrb[0].mxu0 %v4047
      %v4141 = vpop.f32.mrb[0].mxu0
      %v4142 = vadd.f32 0.0, %v4141
      %v4143 = vpop.f32.mrb[0].mxu0
      %4144 = vmatprep.mubr.f32.mxu0 %v4062
      %4145 = vmatmul.mubr.f32.gmra.mrb[0].mxu0 %v4049
      %v4146 = vpop.f32.mrb[0].mxu0
      %v4147 = vadd.f32 0.0, %v4146
      %v4148 = vpop.f32.mrb[0].mxu0
      %4149 = vmatprep.mubr.f32.mxu0 %v4065
      %4150 = vmatmul.mubr.f32.gmra.mrb[0].mxu0 %v4051
      %v4151 = vpop.f32.mrb[0].mxu0
      %v4152 = vadd.f32 0.0, %v4151
      %v4153 = vpop.f32.mrb[0].mxu0
      %4154 = vmatprep.mubr.f32.mxu0 %v4068
      %4155 = vmatmul.mubr.f32.gmra.mrb[0].mxu0 %v4053
      %v4156 = vpop.f32.mrb[0].mxu0
      %v4157 = vadd.f32 0.0, %v4156
      %v4158 = vpop.f32.mrb[0].mxu0
      %4159 = vdwg.mxu0
      %v4160 = vmax.f32 %v4039, %v4137
      %v4161 = vmax.f32 %v4040, %v4142
      %v4162 = vmax.f32 %v4041, %v4147
      %v4163 = vmax.f32 %v4042, %v4152
      %v4164 = vmax.f32 %v4043, %v4157
      %4165 = vst [vmem:[%s278] sm:$0xff] %v4160
      %4166 = vst [vmem:[%s278 + $0x8] sm:$0xff] %v4161
      %4167 = vst [vmem:[%s278 + $0x10] sm:$0xff] %v4162
      %4168 = vst [vmem:[%s278 + $0x18] sm:$0xff] %v4163
      %4169 = vst [vmem:[%s278 + $0x20] sm:$0xf] %v4164
      %p4170 = scmp.lt.s32.totalorder %s18, 1
      %s4171 = scalar_select %p4170, %s18, 1
      %s4172 = smul.addr %s4171, 5
      %s4173 = smul.addr %s4172, 8
      %s4174 = scalar_lea.vmem %s7, %s4173
      // Predicated region
      $region49: #{tpu_custom_call.1} parent=47 // pred_check
        %p4175 = pneg %p188
      $region50: #{tpu_custom_call.1} parent=47 // pred_check_branch
        %4177 = sbr.rel (%p4175) target = $region52
      $region51: #{tpu_custom_call.1} parent=47 // pred_region
        _
      $region52: #{tpu_custom_call.1} parent=47 // pred_fallthru
        _
    $region48: #{tpu_custom_call.1} parent=5 // pred_fallthru
      _
    %p4178 = scmp.le.s32.totalorder 2, %s13
    // Predicated region
    $region53: #{tpu_custom_call.1} parent=5 // pred_check
      %p4179 = pneg %p4178
    $region54: #{tpu_custom_call.1} parent=5 // pred_check_branch
      %4181 = sbr.rel (%p4179) target = $region56
    $region55: #{tpu_custom_call.1} parent=5 // pred_region
      %s4182 = ssub.s32 %s13, 2
      // Predicated region
      $region57: #{tpu_custom_call.1} parent=55 // pred_check
        %p4183 = pneg %p194
      $region58: #{tpu_custom_call.1} parent=55 // pred_check_branch
        %4185 = sbr.rel (%p4183) target = $region60
      $region59: #{tpu_custom_call.1} parent=55 // pred_region
        %p4186 = scmp.lt.s32.totalorder %s19, 1
        %s4187 = scalar_select %p4186, %s19, 1
        %s4188 = smul.addr %s4187, 5
        %s4189 = smul.addr %s4188, 8
        %s4190 = scalar_lea.vmem %s7, %s4189
      $region60: #{tpu_custom_call.1} parent=55 // pred_fallthru
        _
    $region56: #{tpu_custom_call.1} parent=5 // pred_fallthru
      _
  $region6: #{tpu_custom_call.1} parent=0 // loop_footer
    %s17 = sadd.s32 1, %s13
  $region7: #{tpu_custom_call.1} parent=0 // loop_footer_branch
    %12 = sbr.rel target = $region3
  $region8: #{tpu_custom_call.1} parent=0 // loop_exit
    _

</llo_original>
